<compile_context>
chip_gen: v7x
topology: tpu7x:2x2x1
jax: 0.10.0
libtpu: 0.0.40
codegen_flags: <defaults>
</compile_context>

<pallas_src>
import functools

import jax
import jax.numpy as jnp
from jax.experimental import pallas as pl
from jax.experimental.pallas import tpu as pltpu


def mha_kernel(x_ref, wqk_ref, bqk_ref, wp_ref, bp_ref, out_ref, *,
               num_heads, scaling, seq_len, compute_dtype):
    Bb, S, E = x_ref.shape
    D = E // num_heads
    R = Bb * S
    cdt = compute_dtype

    # (Bb, S, E) -> (R, E): free because S is padded to the sublane tile.
    x2 = x_ref[...].reshape(R, E)

    # Additive mask for padded key positions (only materialized when padded).
    kbias = None
    if seq_len < S:
        kpos = jax.lax.broadcasted_iota(jnp.int32, (1, 1, S), 2)
        kbias = jnp.where(kpos < seq_len, 0.0, -1e30).astype(jnp.float32)

    out_acc = None
    for h in range(num_heads):                      # small static unroll
        # Fused per-head Q|K projection: (R, E) @ (E, 2D), f32 accumulation.
        # wqk_ref[h] is a major-axis index into the resident weight slab.
        qk = jnp.dot(x2, wqk_ref[h], preferred_element_type=jnp.float32)
        qk = qk + bqk_ref[h]                         # biases stay f32
        q = qk[:, :D].reshape(Bb, S, D).astype(cdt)
        k = qk[:, D:].reshape(Bb, S, D).astype(cdt)

        # Energies: contract d with the batch dim b (no explicit transpose).
        e = jnp.einsum('bqd,bkd->bqk', q, k,
                       preferred_element_type=jnp.float32)          # (Bb,S,S)
        if kbias is not None:
            e = e + kbias                                            # mask pads

        # f32 softmax math (safe on v5e; VPU/EUP there have no bf16 path).
        m = jnp.max(e, axis=-1, keepdims=True)
        p = jnp.exp(e - m)
        denom = jnp.sum(p, axis=-1, keepdims=True)

        # values == keys, exactly as in the reference forward.
        o = jnp.einsum('bqk,bkd->bqd', p.astype(cdt), k,
                       preferred_element_type=jnp.float32)           # (Bb,S,D)
        # Normalization + post-softmax scale on the (S, D) output (not the
        # (S, S) matrix), with the scale folded into the EUP reciprocal.
        o = o * (scaling * pl.reciprocal(denom, approx=True))

        # Per-head output-projection accumulation: every update is full-E
        # lane width (no D-wide masked stores, no lane concatenate).
        ph = jnp.dot(o.reshape(R, D).astype(cdt), wp_ref[h],
                     preferred_element_type=jnp.float32)             # (R, E)
        out_acc = ph if out_acc is None else out_acc + ph

    out = out_acc + bp_ref[...]
    out_ref[...] = out.reshape(Bb, S, E).astype(out_ref.dtype)


def _vmem_capacity_bytes():
    """Generation-aware VMEM capacity (falls back to v7x's 64 MiB)."""
    try:
        cap = getattr(pltpu.get_tpu_info(), "vmem_capacity_bytes", None)
        if cap:
            return int(cap)
    except Exception:
        pass
    return 64 * 1024 * 1024


def _estimate_vmem(Bb, S, E, H, cdt_bytes, io_bytes):
    """Conservative per-step VMEM estimate incl. in-kernel temporaries."""
    D = E // H
    R = Bb * S
    blocks = 2 * Bb * S * E * (cdt_bytes + io_bytes)       # x + out, double-buffered
    weights = 2 * (H * E * 2 * D + H * D * E) * cdt_bytes  # resident slabs (x2: no Buffered(1))
    weights += 2 * (H * 2 * D + E) * 4                     # f32 biases
    temps = (R * E * 4                                     # output accumulator
             + R * 2 * D * 4                               # per-head qk
             + 2 * Bb * S * S * 4                          # energies + exp(p)
             + Bb * S * S * cdt_bytes                      # p cast for the MXU
             + 2 * R * D * (4 + cdt_bytes))                # q/k/o (+ casts)
    return blocks + weights + temps


def _pick_block_b(B, S, E, H, cdt_bytes, io_bytes, *, vmem_budget,
                  target_rows=256, min_batch_steps=2):
    """Largest divisor of B reaching ~target_rows MXU rows within budget."""
    best = 1
    for bb in range(1, B + 1):
        if B % bb:
            continue
        if _estimate_vmem(bb, S, E, H, cdt_bytes, io_bytes) > vmem_budget:
            break
        best = bb
        if bb * S >= target_rows:
            break
    # Keep >= min_batch_steps grid steps so v7x's two TensorCores both get work.
    if B >= min_batch_steps:
        best = min(best, B // min_batch_steps)
        while B % best:
            best -= 1
    return max(best, 1)


def multi_head_attention(x, wq_t, bq, wk_t, bk, wp_t, bp, *, num_heads,
                         block_b=None, compute_dtype=None):
    """Forward of the reference MultiHeadAttention.

    Weights are passed pre-transposed, (in_features, out_features), so the
    kernel computes y = x @ W^T + b exactly like nn.Linear.
    compute_dtype sets the MXU-operand dtype only (softmax stays f32); the
    default bf16 hits the v6e/v7x MXU peak and is still safe on v5e. Pass
    jnp.float32 for bit-closer parity with the f32 PyTorch module.
    """
    B, S, E = x.shape
    assert E % num_heads == 0
    D = E // num_heads
    scaling = float(D ** -0.5)
    out_dtype = x.dtype

    cdt = jnp.dtype(compute_dtype) if compute_dtype is not None else jnp.dtype(jnp.bfloat16)
    cdt_bytes = cdt.itemsize
    io_bytes = jnp.dtype(out_dtype).itemsize

    # Pad seq to the sublane tile (8 rows for 4-byte, 16 for 2-byte compute
    # dtype) so the in-kernel rank merges are free; padded keys are masked in
    # the kernel and padded query rows sliced off below.
    sub = 8 if cdt_bytes >= 4 else 16
    S_pad = ((S + sub - 1) // sub) * sub
    x_in = x if S_pad == S else jnp.pad(x, ((0, 0), (0, S_pad - S), (0, 0)))
    x_in = x_in.astype(cdt)

    # Head-major weight slabs: indexed w_ref[h] in-kernel (no lane slicing).
    wq_r = wq_t.reshape(E, num_heads, D)
    wk_r = wk_t.reshape(E, num_heads, D)
    wqk_heads = jnp.concatenate([wq_r, wk_r], axis=-1).transpose(1, 0, 2)  # (H,E,2D)
    wqk_heads = wqk_heads.astype(cdt)
    bqk_heads = jnp.concatenate([bq.reshape(num_heads, 1, D),
                                 bk.reshape(num_heads, 1, D)],
                                axis=-1).astype(jnp.float32)               # (H,1,2D)
    wp_heads = wp_t.reshape(num_heads, D, E).astype(cdt)                   # (H,D,E)
    bp2 = bp.reshape(1, E).astype(jnp.float32)

    vmem_cap = _vmem_capacity_bytes()
    Bb = block_b if block_b is not None else _pick_block_b(
        B, S_pad, E, num_heads, cdt_bytes, io_bytes,
        vmem_budget=int(0.6 * vmem_cap))
    assert B % Bb == 0
    grid = (B // Bb,)

    est = _estimate_vmem(Bb, S_pad, E, num_heads, cdt_bytes, io_bytes)
    # Always set the scoped-VMEM limit (16/32 MiB defaults are easy to exceed),
    # but keep headroom below physical capacity (64 MiB on v7x).
    vmem_limit = int(min(max(2 * est, 24 * 1024 * 1024), 0.9 * vmem_cap))

    kernel = functools.partial(mha_kernel, num_heads=num_heads, scaling=scaling,
                               seq_len=S, compute_dtype=cdt)

    def resident(shape):
        # Whole array, same block every step -> fetched once, stays in VMEM.
        return pl.BlockSpec(shape, lambda b: tuple(0 for _ in shape))

    out = pl.pallas_call(
        kernel,
        out_shape=jax.ShapeDtypeStruct((B, S_pad, E), out_dtype),
        grid_spec=pltpu.PrefetchScalarGridSpec(
            num_scalar_prefetch=0,
            grid=grid,
            in_specs=[
                pl.BlockSpec((Bb, S_pad, E), lambda b: (b, 0, 0)),   # x
                resident((num_heads, E, 2 * D)),                     # W_q|W_k (head-major)
                resident((num_heads, 1, 2 * D)),                     # b_q|b_k
                resident((num_heads, D, E)),                         # W_proj (head-major rows)
                resident((1, E)),                                    # b_proj
            ],
            out_specs=pl.BlockSpec((Bb, S_pad, E), lambda b: (b, 0, 0)),
        ),
        compiler_params=pltpu.CompilerParams(
            dimension_semantics=("parallel",),
            vmem_limit_bytes=vmem_limit),
    )(x_in, wqk_heads, bqk_heads, wp_heads, bp2)

    return out if S_pad == S else out[:, :S, :]


def reference(x, wq_t, bq, wk_t, bk, wp_t, bp, *, num_heads):
    """Pure-JAX transcription of the PyTorch forward (for validation)."""
    B, S, E = x.shape
    D = E // num_heads
    scaling = D ** -0.5
    q = x @ wq_t + bq
    k = x @ wk_t + bk
    q = q.reshape(B, S, num_heads, D).transpose(0, 2, 1, 3)
    k = k.reshape(B, S, num_heads, D).transpose(0, 2, 1, 3)
    v = k  # reference uses self.key(x) for values
    e = jnp.einsum('bhqd,bhkd->bhqk', q, k)
    a = jax.nn.softmax(e, axis=-1) * scaling
    o = jnp.einsum('bhqk,bhkd->bhqd', a, v)
    o = o.transpose(0, 2, 1, 3).reshape(B, S, E)
    return o @ wp_t + bp


if __name__ == "__main__":
    # Small shapes consistent with the module: emb_size divisible by num_heads.
    B, S, E, H = 2, 8, 64, 8

    key = jax.random.PRNGKey(0)
    ks = jax.random.split(key, 8)

    def init(k, shape, scale=0.05):
        return jax.random.normal(k, shape, jnp.float32) * scale

    x = jax.random.normal(ks[0], (B, S, E), jnp.float32)
    # Weights stored pre-transposed (in_features, out_features) so the kernel
    # computes y = x @ W^T + b exactly like nn.Linear.
    wq_t = init(ks[1], (E, E)); bq = init(ks[2], (1, E))
    wk_t = init(ks[3], (E, E)); bk = init(ks[4], (1, E))
    wp_t = init(ks[5], (E, E)); bp = init(ks[6], (1, E))

    # 1) f32 MXU-operand path: tight check against the pure-JAX reference
    #    (approx EUP reciprocal contributes ~1e-4 abs error here).
    out = multi_head_attention(x, wq_t, bq, wk_t, bk, wp_t, bp,
                               num_heads=H, compute_dtype=jnp.float32)
    out = jax.block_until_ready(out)
    ref = reference(x, wq_t, bq, wk_t, bk, wp_t, bp, num_heads=H)
    assert out.shape == (B, S, E)
    assert jnp.allclose(out, ref, atol=2e-3, rtol=2e-3), "f32 mismatch vs reference"

    # 2) Default bf16 MXU-operand path + a sequence length that is NOT a
    #    multiple of the sublane tile (exercises the pad + key-mask path).
    S2 = 12
    x2 = jax.random.normal(ks[7], (B, S2, E), jnp.float32)
    out2 = multi_head_attention(x2, wq_t, bq, wk_t, bk, wp_t, bp, num_heads=H)
    out2 = jax.block_until_ready(out2)
    ref2 = reference(x2, wq_t, bq, wk_t, bk, wp_t, bp, num_heads=H)
    assert out2.shape == (B, S2, E)
    assert jnp.allclose(out2, ref2, atol=3e-2, rtol=3e-2), "bf16 mismatch vs reference"

    print("KERNEL_OK")
</pallas_src>

<mosaic_0001>
module attributes {stable_mosaic.version = 11 : i64} {
  func.func @mha_kernel(%arg0: i32, %arg1: memref<1x8x64xf32, #tpu.memory_space<vmem>>, %arg2: memref<8x64x16xf32, #tpu.memory_space<vmem>>, %arg3: memref<8x1x16xf32, #tpu.memory_space<vmem>>, %arg4: memref<8x8x64xf32, #tpu.memory_space<vmem>>, %arg5: memref<1x64xf32, #tpu.memory_space<vmem>>, %arg6: memref<1x8x64xf32, #tpu.memory_space<vmem>>) attributes {dimension_semantics = [#tpu.dimension_semantics<parallel>], iteration_bounds = array<i64: 2>, scalar_prefetch = 0 : i64, scratch_operands = 0 : i64, tpu.core_type = #tpu.core_type<tc>, window_params = [{transform_indices = @transform_0, window_bounds = array<i64: 1, 8, 64>}, {pipeline_mode = #tpu.pipeline_mode<synchronous>, transform_indices = @transform_1, window_bounds = array<i64: 8, 64, 16>}, {pipeline_mode = #tpu.pipeline_mode<synchronous>, transform_indices = @transform_2, window_bounds = array<i64: 8, 1, 16>}, {pipeline_mode = #tpu.pipeline_mode<synchronous>, transform_indices = @transform_3, window_bounds = array<i64: 8, 8, 64>}, {pipeline_mode = #tpu.pipeline_mode<synchronous>, transform_indices = @transform_4, window_bounds = array<i64: 1, 64>}, {transform_indices = @transform_5, window_bounds = array<i64: 1, 8, 64>}]} {
    %c0 = arith.constant 0 : index
    %c0_0 = arith.constant 0 : index
    %c0_1 = arith.constant 0 : index
    %0 = vector.load %arg1[%c0, %c0_0, %c0_1] : memref<1x8x64xf32, #tpu.memory_space<vmem>>, vector<1x8x64xf32>
    %1 = vector.shape_cast %0 : vector<1x8x64xf32> to vector<8x64xf32>
    %c0_2 = arith.constant 0 : index
    %c0_3 = arith.constant 0 : index
    %c0_4 = arith.constant 0 : index
    %2 = vector.load %arg2[%c0_2, %c0_3, %c0_4] : memref<8x64x16xf32, #tpu.memory_space<vmem>>, vector<1x64x16xf32>
    %3 = vector.shape_cast %2 : vector<1x64x16xf32> to vector<64x16xf32>
    %cst = arith.constant dense<0.000000e+00> : vector<8x16xf32>
    %4 = tpu.matmul %1, %3, %cst {dimension_numbers = #tpu.dot_dimension_numbers<[1], [0], [0], [1], [0, 0, 1, 1], [], []>} : vector<8x64xf32>, vector<64x16xf32>, vector<8x16xf32> -> vector<8x16xf32>
    %c0_5 = arith.constant 0 : index
    %c0_6 = arith.constant 0 : index
    %c0_7 = arith.constant 0 : index
    %5 = vector.load %arg3[%c0_5, %c0_6, %c0_7] : memref<8x1x16xf32, #tpu.memory_space<vmem>>, vector<1x1x16xf32>
    %6 = vector.shape_cast %5 : vector<1x1x16xf32> to vector<1x16xf32>
    %7 = vector.broadcast %6 : vector<1x16xf32> to vector<8x16xf32>
    %8 = arith.addf %4, %7 : vector<8x16xf32>
    %9 = vector.extract_strided_slice %8 {offsets = [0, 0], sizes = [8, 8], strides = [1, 1]} : vector<8x16xf32> to vector<8x8xf32>
    %10 = vector.shape_cast %9 : vector<8x8xf32> to vector<1x8x8xf32>
    %11 = vector.extract_strided_slice %8 {offsets = [0, 8], sizes = [8, 8], strides = [1, 1]} : vector<8x16xf32> to vector<8x8xf32>
    %12 = vector.shape_cast %11 : vector<8x8xf32> to vector<1x8x8xf32>
    "tpu.trace_start"() <{level = 10 : i32, message = "bqd,bkd->bqk"}> : () -> ()
    %cst_8 = arith.constant dense<0.000000e+00> : vector<1x8x8xf32>
    %13 = tpu.matmul %10, %12, %cst_8 {dimension_numbers = #tpu.dot_dimension_numbers<[2], [2], [1], [1], [0, 0, 0, 1, 1, 1], [0], [0]>} : vector<1x8x8xf32>, vector<1x8x8xf32>, vector<1x8x8xf32> -> vector<1x8x8xf32>
    "tpu.trace_stop"() : () -> ()
    %cst_9 = arith.constant dense<0xFF800000> : vector<1x8xf32>
    %14 = vector.multi_reduction <maximumf>, %13, %cst_9 [2] : vector<1x8x8xf32> to vector<1x8xf32>
    %15 = vector.shape_cast %14 : vector<1x8xf32> to vector<1x8x1xf32>
    %16 = vector.broadcast %15 : vector<1x8x1xf32> to vector<1x8x8xf32>
    %17 = arith.subf %13, %16 : vector<1x8x8xf32>
    %18 = math.exp %17 : vector<1x8x8xf32>
    %cst_10 = arith.constant dense<0.000000e+00> : vector<1x8xf32>
    %19 = vector.multi_reduction <add>, %18, %cst_10 [2] : vector<1x8x8xf32> to vector<1x8xf32>
    %20 = vector.shape_cast %19 : vector<1x8xf32> to vector<1x8x1xf32>
    "tpu.trace_start"() <{level = 10 : i32, message = "bqk,bkd->bqd"}> : () -> ()
    %cst_11 = arith.constant dense<0.000000e+00> : vector<1x8x8xf32>
    %21 = tpu.matmul %18, %12, %cst_11 {dimension_numbers = #tpu.dot_dimension_numbers<[2], [1], [1], [2], [0, 0, 0, 1, 1, 2], [0], [0]>} : vector<1x8x8xf32>, vector<1x8x8xf32>, vector<1x8x8xf32> -> vector<1x8x8xf32>
    "tpu.trace_stop"() : () -> ()
    %22 = tpu.reciprocal %20 {approx = true} : vector<1x8x1xf32> -> vector<1x8x1xf32>
    %cst_12 = arith.constant 0.353553385 : f32
    %23 = vector.broadcast %cst_12 : f32 to vector<1x8x1xf32>
    %24 = arith.mulf %23, %22 : vector<1x8x1xf32>
    %25 = vector.broadcast %24 : vector<1x8x1xf32> to vector<1x8x8xf32>
    %26 = arith.mulf %21, %25 : vector<1x8x8xf32>
    %27 = vector.shape_cast %26 : vector<1x8x8xf32> to vector<8x8xf32>
    %c0_13 = arith.constant 0 : index
    %c0_14 = arith.constant 0 : index
    %c0_15 = arith.constant 0 : index
    %28 = vector.load %arg4[%c0_13, %c0_14, %c0_15] : memref<8x8x64xf32, #tpu.memory_space<vmem>>, vector<1x8x64xf32>
    %29 = vector.shape_cast %28 : vector<1x8x64xf32> to vector<8x64xf32>
    %cst_16 = arith.constant dense<0.000000e+00> : vector<8x64xf32>
    %30 = tpu.matmul %27, %29, %cst_16 {dimension_numbers = #tpu.dot_dimension_numbers<[1], [0], [0], [1], [0, 0, 1, 1], [], []>} : vector<8x8xf32>, vector<8x64xf32>, vector<8x64xf32> -> vector<8x64xf32>
    %c1 = arith.constant 1 : index
    %c0_17 = arith.constant 0 : index
    %c0_18 = arith.constant 0 : index
    %31 = vector.load %arg2[%c1, %c0_17, %c0_18] : memref<8x64x16xf32, #tpu.memory_space<vmem>>, vector<1x64x16xf32>
    %32 = vector.shape_cast %31 : vector<1x64x16xf32> to vector<64x16xf32>
    %cst_19 = arith.constant dense<0.000000e+00> : vector<8x16xf32>
    %33 = tpu.matmul %1, %32, %cst_19 {dimension_numbers = #tpu.dot_dimension_numbers<[1], [0], [0], [1], [0, 0, 1, 1], [], []>} : vector<8x64xf32>, vector<64x16xf32>, vector<8x16xf32> -> vector<8x16xf32>
    %c1_20 = arith.constant 1 : index
    %c0_21 = arith.constant 0 : index
    %c0_22 = arith.constant 0 : index
    %34 = vector.load %arg3[%c1_20, %c0_21, %c0_22] : memref<8x1x16xf32, #tpu.memory_space<vmem>>, vector<1x1x16xf32>
    %35 = vector.shape_cast %34 : vector<1x1x16xf32> to vector<1x16xf32>
    %36 = vector.broadcast %35 : vector<1x16xf32> to vector<8x16xf32>
    %37 = arith.addf %33, %36 : vector<8x16xf32>
    %38 = vector.extract_strided_slice %37 {offsets = [0, 0], sizes = [8, 8], strides = [1, 1]} : vector<8x16xf32> to vector<8x8xf32>
    %39 = vector.shape_cast %38 : vector<8x8xf32> to vector<1x8x8xf32>
    %40 = vector.extract_strided_slice %37 {offsets = [0, 8], sizes = [8, 8], strides = [1, 1]} : vector<8x16xf32> to vector<8x8xf32>
    %41 = vector.shape_cast %40 : vector<8x8xf32> to vector<1x8x8xf32>
    "tpu.trace_start"() <{level = 10 : i32, message = "bqd,bkd->bqk"}> : () -> ()
    %cst_23 = arith.constant dense<0.000000e+00> : vector<1x8x8xf32>
    %42 = tpu.matmul %39, %41, %cst_23 {dimension_numbers = #tpu.dot_dimension_numbers<[2], [2], [1], [1], [0, 0, 0, 1, 1, 1], [0], [0]>} : vector<1x8x8xf32>, vector<1x8x8xf32>, vector<1x8x8xf32> -> vector<1x8x8xf32>
    "tpu.trace_stop"() : () -> ()
    %cst_24 = arith.constant dense<0xFF800000> : vector<1x8xf32>
    %43 = vector.multi_reduction <maximumf>, %42, %cst_24 [2] : vector<1x8x8xf32> to vector<1x8xf32>
    %44 = vector.shape_cast %43 : vector<1x8xf32> to vector<1x8x1xf32>
    %45 = vector.broadcast %44 : vector<1x8x1xf32> to vector<1x8x8xf32>
    %46 = arith.subf %42, %45 : vector<1x8x8xf32>
    %47 = math.exp %46 : vector<1x8x8xf32>
    %cst_25 = arith.constant dense<0.000000e+00> : vector<1x8xf32>
    %48 = vector.multi_reduction <add>, %47, %cst_25 [2] : vector<1x8x8xf32> to vector<1x8xf32>
    %49 = vector.shape_cast %48 : vector<1x8xf32> to vector<1x8x1xf32>
    "tpu.trace_start"() <{level = 10 : i32, message = "bqk,bkd->bqd"}> : () -> ()
    %cst_26 = arith.constant dense<0.000000e+00> : vector<1x8x8xf32>
    %50 = tpu.matmul %47, %41, %cst_26 {dimension_numbers = #tpu.dot_dimension_numbers<[2], [1], [1], [2], [0, 0, 0, 1, 1, 2], [0], [0]>} : vector<1x8x8xf32>, vector<1x8x8xf32>, vector<1x8x8xf32> -> vector<1x8x8xf32>
    "tpu.trace_stop"() : () -> ()
    %51 = tpu.reciprocal %49 {approx = true} : vector<1x8x1xf32> -> vector<1x8x1xf32>
    %cst_27 = arith.constant 0.353553385 : f32
    %52 = vector.broadcast %cst_27 : f32 to vector<1x8x1xf32>
    %53 = arith.mulf %52, %51 : vector<1x8x1xf32>
    %54 = vector.broadcast %53 : vector<1x8x1xf32> to vector<1x8x8xf32>
    %55 = arith.mulf %50, %54 : vector<1x8x8xf32>
    %56 = vector.shape_cast %55 : vector<1x8x8xf32> to vector<8x8xf32>
    %c1_28 = arith.constant 1 : index
    %c0_29 = arith.constant 0 : index
    %c0_30 = arith.constant 0 : index
    %57 = vector.load %arg4[%c1_28, %c0_29, %c0_30] : memref<8x8x64xf32, #tpu.memory_space<vmem>>, vector<1x8x64xf32>
    %58 = vector.shape_cast %57 : vector<1x8x64xf32> to vector<8x64xf32>
    %cst_31 = arith.constant dense<0.000000e+00> : vector<8x64xf32>
    %59 = tpu.matmul %56, %58, %cst_31 {dimension_numbers = #tpu.dot_dimension_numbers<[1], [0], [0], [1], [0, 0, 1, 1], [], []>} : vector<8x8xf32>, vector<8x64xf32>, vector<8x64xf32> -> vector<8x64xf32>
    %60 = arith.addf %30, %59 : vector<8x64xf32>
    %c2 = arith.constant 2 : index
    %c0_32 = arith.constant 0 : index
    %c0_33 = arith.constant 0 : index
    %61 = vector.load %arg2[%c2, %c0_32, %c0_33] : memref<8x64x16xf32, #tpu.memory_space<vmem>>, vector<1x64x16xf32>
    %62 = vector.shape_cast %61 : vector<1x64x16xf32> to vector<64x16xf32>
    %cst_34 = arith.constant dense<0.000000e+00> : vector<8x16xf32>
    %63 = tpu.matmul %1, %62, %cst_34 {dimension_numbers = #tpu.dot_dimension_numbers<[1], [0], [0], [1], [0, 0, 1, 1], [], []>} : vector<8x64xf32>, vector<64x16xf32>, vector<8x16xf32> -> vector<8x16xf32>
    %c2_35 = arith.constant 2 : index
    %c0_36 = arith.constant 0 : index
    %c0_37 = arith.constant 0 : index
    %64 = vector.load %arg3[%c2_35, %c0_36, %c0_37] : memref<8x1x16xf32, #tpu.memory_space<vmem>>, vector<1x1x16xf32>
    %65 = vector.shape_cast %64 : vector<1x1x16xf32> to vector<1x16xf32>
    %66 = vector.broadcast %65 : vector<1x16xf32> to vector<8x16xf32>
    %67 = arith.addf %63, %66 : vector<8x16xf32>
    %68 = vector.extract_strided_slice %67 {offsets = [0, 0], sizes = [8, 8], strides = [1, 1]} : vector<8x16xf32> to vector<8x8xf32>
    %69 = vector.shape_cast %68 : vector<8x8xf32> to vector<1x8x8xf32>
    %70 = vector.extract_strided_slice %67 {offsets = [0, 8], sizes = [8, 8], strides = [1, 1]} : vector<8x16xf32> to vector<8x8xf32>
    %71 = vector.shape_cast %70 : vector<8x8xf32> to vector<1x8x8xf32>
    "tpu.trace_start"() <{level = 10 : i32, message = "bqd,bkd->bqk"}> : () -> ()
    %cst_38 = arith.constant dense<0.000000e+00> : vector<1x8x8xf32>
    %72 = tpu.matmul %69, %71, %cst_38 {dimension_numbers = #tpu.dot_dimension_numbers<[2], [2], [1], [1], [0, 0, 0, 1, 1, 1], [0], [0]>} : vector<1x8x8xf32>, vector<1x8x8xf32>, vector<1x8x8xf32> -> vector<1x8x8xf32>
    "tpu.trace_stop"() : () -> ()
    %cst_39 = arith.constant dense<0xFF800000> : vector<1x8xf32>
    %73 = vector.multi_reduction <maximumf>, %72, %cst_39 [2] : vector<1x8x8xf32> to vector<1x8xf32>
    %74 = vector.shape_cast %73 : vector<1x8xf32> to vector<1x8x1xf32>
    %75 = vector.broadcast %74 : vector<1x8x1xf32> to vector<1x8x8xf32>
    %76 = arith.subf %72, %75 : vector<1x8x8xf32>
    %77 = math.exp %76 : vector<1x8x8xf32>
    %cst_40 = arith.constant dense<0.000000e+00> : vector<1x8xf32>
    %78 = vector.multi_reduction <add>, %77, %cst_40 [2] : vector<1x8x8xf32> to vector<1x8xf32>
    %79 = vector.shape_cast %78 : vector<1x8xf32> to vector<1x8x1xf32>
    "tpu.trace_start"() <{level = 10 : i32, message = "bqk,bkd->bqd"}> : () -> ()
    %cst_41 = arith.constant dense<0.000000e+00> : vector<1x8x8xf32>
    %80 = tpu.matmul %77, %71, %cst_41 {dimension_numbers = #tpu.dot_dimension_numbers<[2], [1], [1], [2], [0, 0, 0, 1, 1, 2], [0], [0]>} : vector<1x8x8xf32>, vector<1x8x8xf32>, vector<1x8x8xf32> -> vector<1x8x8xf32>
    "tpu.trace_stop"() : () -> ()
    %81 = tpu.reciprocal %79 {approx = true} : vector<1x8x1xf32> -> vector<1x8x1xf32>
    %cst_42 = arith.constant 0.353553385 : f32
    %82 = vector.broadcast %cst_42 : f32 to vector<1x8x1xf32>
    %83 = arith.mulf %82, %81 : vector<1x8x1xf32>
    %84 = vector.broadcast %83 : vector<1x8x1xf32> to vector<1x8x8xf32>
    %85 = arith.mulf %80, %84 : vector<1x8x8xf32>
    %86 = vector.shape_cast %85 : vector<1x8x8xf32> to vector<8x8xf32>
    %c2_43 = arith.constant 2 : index
    %c0_44 = arith.constant 0 : index
    %c0_45 = arith.constant 0 : index
    %87 = vector.load %arg4[%c2_43, %c0_44, %c0_45] : memref<8x8x64xf32, #tpu.memory_space<vmem>>, vector<1x8x64xf32>
    %88 = vector.shape_cast %87 : vector<1x8x64xf32> to vector<8x64xf32>
    %cst_46 = arith.constant dense<0.000000e+00> : vector<8x64xf32>
    %89 = tpu.matmul %86, %88, %cst_46 {dimension_numbers = #tpu.dot_dimension_numbers<[1], [0], [0], [1], [0, 0, 1, 1], [], []>} : vector<8x8xf32>, vector<8x64xf32>, vector<8x64xf32> -> vector<8x64xf32>
    %90 = arith.addf %60, %89 : vector<8x64xf32>
    %c3 = arith.constant 3 : index
    %c0_47 = arith.constant 0 : index
    %c0_48 = arith.constant 0 : index
    %91 = vector.load %arg2[%c3, %c0_47, %c0_48] : memref<8x64x16xf32, #tpu.memory_space<vmem>>, vector<1x64x16xf32>
    %92 = vector.shape_cast %91 : vector<1x64x16xf32> to vector<64x16xf32>
    %cst_49 = arith.constant dense<0.000000e+00> : vector<8x16xf32>
    %93 = tpu.matmul %1, %92, %cst_49 {dimension_numbers = #tpu.dot_dimension_numbers<[1], [0], [0], [1], [0, 0, 1, 1], [], []>} : vector<8x64xf32>, vector<64x16xf32>, vector<8x16xf32> -> vector<8x16xf32>
    %c3_50 = arith.constant 3 : index
    %c0_51 = arith.constant 0 : index
    %c0_52 = arith.constant 0 : index
    %94 = vector.load %arg3[%c3_50, %c0_51, %c0_52] : memref<8x1x16xf32, #tpu.memory_space<vmem>>, vector<1x1x16xf32>
    %95 = vector.shape_cast %94 : vector<1x1x16xf32> to vector<1x16xf32>
    %96 = vector.broadcast %95 : vector<1x16xf32> to vector<8x16xf32>
    %97 = arith.addf %93, %96 : vector<8x16xf32>
    %98 = vector.extract_strided_slice %97 {offsets = [0, 0], sizes = [8, 8], strides = [1, 1]} : vector<8x16xf32> to vector<8x8xf32>
    %99 = vector.shape_cast %98 : vector<8x8xf32> to vector<1x8x8xf32>
    %100 = vector.extract_strided_slice %97 {offsets = [0, 8], sizes = [8, 8], strides = [1, 1]} : vector<8x16xf32> to vector<8x8xf32>
    %101 = vector.shape_cast %100 : vector<8x8xf32> to vector<1x8x8xf32>
    "tpu.trace_start"() <{level = 10 : i32, message = "bqd,bkd->bqk"}> : () -> ()
    %cst_53 = arith.constant dense<0.000000e+00> : vector<1x8x8xf32>
    %102 = tpu.matmul %99, %101, %cst_53 {dimension_numbers = #tpu.dot_dimension_numbers<[2], [2], [1], [1], [0, 0, 0, 1, 1, 1], [0], [0]>} : vector<1x8x8xf32>, vector<1x8x8xf32>, vector<1x8x8xf32> -> vector<1x8x8xf32>
    "tpu.trace_stop"() : () -> ()
    %cst_54 = arith.constant dense<0xFF800000> : vector<1x8xf32>
    %103 = vector.multi_reduction <maximumf>, %102, %cst_54 [2] : vector<1x8x8xf32> to vector<1x8xf32>
    %104 = vector.shape_cast %103 : vector<1x8xf32> to vector<1x8x1xf32>
    %105 = vector.broadcast %104 : vector<1x8x1xf32> to vector<1x8x8xf32>
    %106 = arith.subf %102, %105 : vector<1x8x8xf32>
    %107 = math.exp %106 : vector<1x8x8xf32>
    %cst_55 = arith.constant dense<0.000000e+00> : vector<1x8xf32>
    %108 = vector.multi_reduction <add>, %107, %cst_55 [2] : vector<1x8x8xf32> to vector<1x8xf32>
    %109 = vector.shape_cast %108 : vector<1x8xf32> to vector<1x8x1xf32>
    "tpu.trace_start"() <{level = 10 : i32, message = "bqk,bkd->bqd"}> : () -> ()
    %cst_56 = arith.constant dense<0.000000e+00> : vector<1x8x8xf32>
    %110 = tpu.matmul %107, %101, %cst_56 {dimension_numbers = #tpu.dot_dimension_numbers<[2], [1], [1], [2], [0, 0, 0, 1, 1, 2], [0], [0]>} : vector<1x8x8xf32>, vector<1x8x8xf32>, vector<1x8x8xf32> -> vector<1x8x8xf32>
    "tpu.trace_stop"() : () -> ()
    %111 = tpu.reciprocal %109 {approx = true} : vector<1x8x1xf32> -> vector<1x8x1xf32>
    %cst_57 = arith.constant 0.353553385 : f32
    %112 = vector.broadcast %cst_57 : f32 to vector<1x8x1xf32>
    %113 = arith.mulf %112, %111 : vector<1x8x1xf32>
    %114 = vector.broadcast %113 : vector<1x8x1xf32> to vector<1x8x8xf32>
    %115 = arith.mulf %110, %114 : vector<1x8x8xf32>
    %116 = vector.shape_cast %115 : vector<1x8x8xf32> to vector<8x8xf32>
    %c3_58 = arith.constant 3 : index
    %c0_59 = arith.constant 0 : index
    %c0_60 = arith.constant 0 : index
    %117 = vector.load %arg4[%c3_58, %c0_59, %c0_60] : memref<8x8x64xf32, #tpu.memory_space<vmem>>, vector<1x8x64xf32>
    %118 = vector.shape_cast %117 : vector<1x8x64xf32> to vector<8x64xf32>
    %cst_61 = arith.constant dense<0.000000e+00> : vector<8x64xf32>
    %119 = tpu.matmul %116, %118, %cst_61 {dimension_numbers = #tpu.dot_dimension_numbers<[1], [0], [0], [1], [0, 0, 1, 1], [], []>} : vector<8x8xf32>, vector<8x64xf32>, vector<8x64xf32> -> vector<8x64xf32>
    %120 = arith.addf %90, %119 : vector<8x64xf32>
    %c4 = arith.constant 4 : index
    %c0_62 = arith.constant 0 : index
    %c0_63 = arith.constant 0 : index
    %121 = vector.load %arg2[%c4, %c0_62, %c0_63] : memref<8x64x16xf32, #tpu.memory_space<vmem>>, vector<1x64x16xf32>
    %122 = vector.shape_cast %121 : vector<1x64x16xf32> to vector<64x16xf32>
    %cst_64 = arith.constant dense<0.000000e+00> : vector<8x16xf32>
    %123 = tpu.matmul %1, %122, %cst_64 {dimension_numbers = #tpu.dot_dimension_numbers<[1], [0], [0], [1], [0, 0, 1, 1], [], []>} : vector<8x64xf32>, vector<64x16xf32>, vector<8x16xf32> -> vector<8x16xf32>
    %c4_65 = arith.constant 4 : index
    %c0_66 = arith.constant 0 : index
    %c0_67 = arith.constant 0 : index
    %124 = vector.load %arg3[%c4_65, %c0_66, %c0_67] : memref<8x1x16xf32, #tpu.memory_space<vmem>>, vector<1x1x16xf32>
    %125 = vector.shape_cast %124 : vector<1x1x16xf32> to vector<1x16xf32>
    %126 = vector.broadcast %125 : vector<1x16xf32> to vector<8x16xf32>
    %127 = arith.addf %123, %126 : vector<8x16xf32>
    %128 = vector.extract_strided_slice %127 {offsets = [0, 0], sizes = [8, 8], strides = [1, 1]} : vector<8x16xf32> to vector<8x8xf32>
    %129 = vector.shape_cast %128 : vector<8x8xf32> to vector<1x8x8xf32>
    %130 = vector.extract_strided_slice %127 {offsets = [0, 8], sizes = [8, 8], strides = [1, 1]} : vector<8x16xf32> to vector<8x8xf32>
    %131 = vector.shape_cast %130 : vector<8x8xf32> to vector<1x8x8xf32>
    "tpu.trace_start"() <{level = 10 : i32, message = "bqd,bkd->bqk"}> : () -> ()
    %cst_68 = arith.constant dense<0.000000e+00> : vector<1x8x8xf32>
    %132 = tpu.matmul %129, %131, %cst_68 {dimension_numbers = #tpu.dot_dimension_numbers<[2], [2], [1], [1], [0, 0, 0, 1, 1, 1], [0], [0]>} : vector<1x8x8xf32>, vector<1x8x8xf32>, vector<1x8x8xf32> -> vector<1x8x8xf32>
    "tpu.trace_stop"() : () -> ()
    %cst_69 = arith.constant dense<0xFF800000> : vector<1x8xf32>
    %133 = vector.multi_reduction <maximumf>, %132, %cst_69 [2] : vector<1x8x8xf32> to vector<1x8xf32>
    %134 = vector.shape_cast %133 : vector<1x8xf32> to vector<1x8x1xf32>
    %135 = vector.broadcast %134 : vector<1x8x1xf32> to vector<1x8x8xf32>
    %136 = arith.subf %132, %135 : vector<1x8x8xf32>
    %137 = math.exp %136 : vector<1x8x8xf32>
    %cst_70 = arith.constant dense<0.000000e+00> : vector<1x8xf32>
    %138 = vector.multi_reduction <add>, %137, %cst_70 [2] : vector<1x8x8xf32> to vector<1x8xf32>
    %139 = vector.shape_cast %138 : vector<1x8xf32> to vector<1x8x1xf32>
    "tpu.trace_start"() <{level = 10 : i32, message = "bqk,bkd->bqd"}> : () -> ()
    %cst_71 = arith.constant dense<0.000000e+00> : vector<1x8x8xf32>
    %140 = tpu.matmul %137, %131, %cst_71 {dimension_numbers = #tpu.dot_dimension_numbers<[2], [1], [1], [2], [0, 0, 0, 1, 1, 2], [0], [0]>} : vector<1x8x8xf32>, vector<1x8x8xf32>, vector<1x8x8xf32> -> vector<1x8x8xf32>
    "tpu.trace_stop"() : () -> ()
    %141 = tpu.reciprocal %139 {approx = true} : vector<1x8x1xf32> -> vector<1x8x1xf32>
    %cst_72 = arith.constant 0.353553385 : f32
    %142 = vector.broadcast %cst_72 : f32 to vector<1x8x1xf32>
    %143 = arith.mulf %142, %141 : vector<1x8x1xf32>
    %144 = vector.broadcast %143 : vector<1x8x1xf32> to vector<1x8x8xf32>
    %145 = arith.mulf %140, %144 : vector<1x8x8xf32>
    %146 = vector.shape_cast %145 : vector<1x8x8xf32> to vector<8x8xf32>
    %c4_73 = arith.constant 4 : index
    %c0_74 = arith.constant 0 : index
    %c0_75 = arith.constant 0 : index
    %147 = vector.load %arg4[%c4_73, %c0_74, %c0_75] : memref<8x8x64xf32, #tpu.memory_space<vmem>>, vector<1x8x64xf32>
    %148 = vector.shape_cast %147 : vector<1x8x64xf32> to vector<8x64xf32>
    %cst_76 = arith.constant dense<0.000000e+00> : vector<8x64xf32>
    %149 = tpu.matmul %146, %148, %cst_76 {dimension_numbers = #tpu.dot_dimension_numbers<[1], [0], [0], [1], [0, 0, 1, 1], [], []>} : vector<8x8xf32>, vector<8x64xf32>, vector<8x64xf32> -> vector<8x64xf32>
    %150 = arith.addf %120, %149 : vector<8x64xf32>
    %c5 = arith.constant 5 : index
    %c0_77 = arith.constant 0 : index
    %c0_78 = arith.constant 0 : index
    %151 = vector.load %arg2[%c5, %c0_77, %c0_78] : memref<8x64x16xf32, #tpu.memory_space<vmem>>, vector<1x64x16xf32>
    %152 = vector.shape_cast %151 : vector<1x64x16xf32> to vector<64x16xf32>
    %cst_79 = arith.constant dense<0.000000e+00> : vector<8x16xf32>
    %153 = tpu.matmul %1, %152, %cst_79 {dimension_numbers = #tpu.dot_dimension_numbers<[1], [0], [0], [1], [0, 0, 1, 1], [], []>} : vector<8x64xf32>, vector<64x16xf32>, vector<8x16xf32> -> vector<8x16xf32>
    %c5_80 = arith.constant 5 : index
    %c0_81 = arith.constant 0 : index
    %c0_82 = arith.constant 0 : index
    %154 = vector.load %arg3[%c5_80, %c0_81, %c0_82] : memref<8x1x16xf32, #tpu.memory_space<vmem>>, vector<1x1x16xf32>
    %155 = vector.shape_cast %154 : vector<1x1x16xf32> to vector<1x16xf32>
    %156 = vector.broadcast %155 : vector<1x16xf32> to vector<8x16xf32>
    %157 = arith.addf %153, %156 : vector<8x16xf32>
    %158 = vector.extract_strided_slice %157 {offsets = [0, 0], sizes = [8, 8], strides = [1, 1]} : vector<8x16xf32> to vector<8x8xf32>
    %159 = vector.shape_cast %158 : vector<8x8xf32> to vector<1x8x8xf32>
    %160 = vector.extract_strided_slice %157 {offsets = [0, 8], sizes = [8, 8], strides = [1, 1]} : vector<8x16xf32> to vector<8x8xf32>
    %161 = vector.shape_cast %160 : vector<8x8xf32> to vector<1x8x8xf32>
    "tpu.trace_start"() <{level = 10 : i32, message = "bqd,bkd->bqk"}> : () -> ()
    %cst_83 = arith.constant dense<0.000000e+00> : vector<1x8x8xf32>
    %162 = tpu.matmul %159, %161, %cst_83 {dimension_numbers = #tpu.dot_dimension_numbers<[2], [2], [1], [1], [0, 0, 0, 1, 1, 1], [0], [0]>} : vector<1x8x8xf32>, vector<1x8x8xf32>, vector<1x8x8xf32> -> vector<1x8x8xf32>
    "tpu.trace_stop"() : () -> ()
    %cst_84 = arith.constant dense<0xFF800000> : vector<1x8xf32>
    %163 = vector.multi_reduction <maximumf>, %162, %cst_84 [2] : vector<1x8x8xf32> to vector<1x8xf32>
    %164 = vector.shape_cast %163 : vector<1x8xf32> to vector<1x8x1xf32>
    %165 = vector.broadcast %164 : vector<1x8x1xf32> to vector<1x8x8xf32>
    %166 = arith.subf %162, %165 : vector<1x8x8xf32>
    %167 = math.exp %166 : vector<1x8x8xf32>
    %cst_85 = arith.constant dense<0.000000e+00> : vector<1x8xf32>
    %168 = vector.multi_reduction <add>, %167, %cst_85 [2] : vector<1x8x8xf32> to vector<1x8xf32>
    %169 = vector.shape_cast %168 : vector<1x8xf32> to vector<1x8x1xf32>
    "tpu.trace_start"() <{level = 10 : i32, message = "bqk,bkd->bqd"}> : () -> ()
    %cst_86 = arith.constant dense<0.000000e+00> : vector<1x8x8xf32>
    %170 = tpu.matmul %167, %161, %cst_86 {dimension_numbers = #tpu.dot_dimension_numbers<[2], [1], [1], [2], [0, 0, 0, 1, 1, 2], [0], [0]>} : vector<1x8x8xf32>, vector<1x8x8xf32>, vector<1x8x8xf32> -> vector<1x8x8xf32>
    "tpu.trace_stop"() : () -> ()
    %171 = tpu.reciprocal %169 {approx = true} : vector<1x8x1xf32> -> vector<1x8x1xf32>
    %cst_87 = arith.constant 0.353553385 : f32
    %172 = vector.broadcast %cst_87 : f32 to vector<1x8x1xf32>
    %173 = arith.mulf %172, %171 : vector<1x8x1xf32>
    %174 = vector.broadcast %173 : vector<1x8x1xf32> to vector<1x8x8xf32>
    %175 = arith.mulf %170, %174 : vector<1x8x8xf32>
    %176 = vector.shape_cast %175 : vector<1x8x8xf32> to vector<8x8xf32>
    %c5_88 = arith.constant 5 : index
    %c0_89 = arith.constant 0 : index
    %c0_90 = arith.constant 0 : index
    %177 = vector.load %arg4[%c5_88, %c0_89, %c0_90] : memref<8x8x64xf32, #tpu.memory_space<vmem>>, vector<1x8x64xf32>
    %178 = vector.shape_cast %177 : vector<1x8x64xf32> to vector<8x64xf32>
    %cst_91 = arith.constant dense<0.000000e+00> : vector<8x64xf32>
    %179 = tpu.matmul %176, %178, %cst_91 {dimension_numbers = #tpu.dot_dimension_numbers<[1], [0], [0], [1], [0, 0, 1, 1], [], []>} : vector<8x8xf32>, vector<8x64xf32>, vector<8x64xf32> -> vector<8x64xf32>
    %180 = arith.addf %150, %179 : vector<8x64xf32>
    %c6 = arith.constant 6 : index
    %c0_92 = arith.constant 0 : index
    %c0_93 = arith.constant 0 : index
    %181 = vector.load %arg2[%c6, %c0_92, %c0_93] : memref<8x64x16xf32, #tpu.memory_space<vmem>>, vector<1x64x16xf32>
    %182 = vector.shape_cast %181 : vector<1x64x16xf32> to vector<64x16xf32>
    %cst_94 = arith.constant dense<0.000000e+00> : vector<8x16xf32>
    %183 = tpu.matmul %1, %182, %cst_94 {dimension_numbers = #tpu.dot_dimension_numbers<[1], [0], [0], [1], [0, 0, 1, 1], [], []>} : vector<8x64xf32>, vector<64x16xf32>, vector<8x16xf32> -> vector<8x16xf32>
    %c6_95 = arith.constant 6 : index
    %c0_96 = arith.constant 0 : index
    %c0_97 = arith.constant 0 : index
    %184 = vector.load %arg3[%c6_95, %c0_96, %c0_97] : memref<8x1x16xf32, #tpu.memory_space<vmem>>, vector<1x1x16xf32>
    %185 = vector.shape_cast %184 : vector<1x1x16xf32> to vector<1x16xf32>
    %186 = vector.broadcast %185 : vector<1x16xf32> to vector<8x16xf32>
    %187 = arith.addf %183, %186 : vector<8x16xf32>
    %188 = vector.extract_strided_slice %187 {offsets = [0, 0], sizes = [8, 8], strides = [1, 1]} : vector<8x16xf32> to vector<8x8xf32>
    %189 = vector.shape_cast %188 : vector<8x8xf32> to vector<1x8x8xf32>
    %190 = vector.extract_strided_slice %187 {offsets = [0, 8], sizes = [8, 8], strides = [1, 1]} : vector<8x16xf32> to vector<8x8xf32>
    %191 = vector.shape_cast %190 : vector<8x8xf32> to vector<1x8x8xf32>
    "tpu.trace_start"() <{level = 10 : i32, message = "bqd,bkd->bqk"}> : () -> ()
    %cst_98 = arith.constant dense<0.000000e+00> : vector<1x8x8xf32>
    %192 = tpu.matmul %189, %191, %cst_98 {dimension_numbers = #tpu.dot_dimension_numbers<[2], [2], [1], [1], [0, 0, 0, 1, 1, 1], [0], [0]>} : vector<1x8x8xf32>, vector<1x8x8xf32>, vector<1x8x8xf32> -> vector<1x8x8xf32>
    "tpu.trace_stop"() : () -> ()
    %cst_99 = arith.constant dense<0xFF800000> : vector<1x8xf32>
    %193 = vector.multi_reduction <maximumf>, %192, %cst_99 [2] : vector<1x8x8xf32> to vector<1x8xf32>
    %194 = vector.shape_cast %193 : vector<1x8xf32> to vector<1x8x1xf32>
    %195 = vector.broadcast %194 : vector<1x8x1xf32> to vector<1x8x8xf32>
    %196 = arith.subf %192, %195 : vector<1x8x8xf32>
    %197 = math.exp %196 : vector<1x8x8xf32>
    %cst_100 = arith.constant dense<0.000000e+00> : vector<1x8xf32>
    %198 = vector.multi_reduction <add>, %197, %cst_100 [2] : vector<1x8x8xf32> to vector<1x8xf32>
    %199 = vector.shape_cast %198 : vector<1x8xf32> to vector<1x8x1xf32>
    "tpu.trace_start"() <{level = 10 : i32, message = "bqk,bkd->bqd"}> : () -> ()
    %cst_101 = arith.constant dense<0.000000e+00> : vector<1x8x8xf32>
    %200 = tpu.matmul %197, %191, %cst_101 {dimension_numbers = #tpu.dot_dimension_numbers<[2], [1], [1], [2], [0, 0, 0, 1, 1, 2], [0], [0]>} : vector<1x8x8xf32>, vector<1x8x8xf32>, vector<1x8x8xf32> -> vector<1x8x8xf32>
    "tpu.trace_stop"() : () -> ()
    %201 = tpu.reciprocal %199 {approx = true} : vector<1x8x1xf32> -> vector<1x8x1xf32>
    %cst_102 = arith.constant 0.353553385 : f32
    %202 = vector.broadcast %cst_102 : f32 to vector<1x8x1xf32>
    %203 = arith.mulf %202, %201 : vector<1x8x1xf32>
    %204 = vector.broadcast %203 : vector<1x8x1xf32> to vector<1x8x8xf32>
    %205 = arith.mulf %200, %204 : vector<1x8x8xf32>
    %206 = vector.shape_cast %205 : vector<1x8x8xf32> to vector<8x8xf32>
    %c6_103 = arith.constant 6 : index
    %c0_104 = arith.constant 0 : index
    %c0_105 = arith.constant 0 : index
    %207 = vector.load %arg4[%c6_103, %c0_104, %c0_105] : memref<8x8x64xf32, #tpu.memory_space<vmem>>, vector<1x8x64xf32>
    %208 = vector.shape_cast %207 : vector<1x8x64xf32> to vector<8x64xf32>
    %cst_106 = arith.constant dense<0.000000e+00> : vector<8x64xf32>
    %209 = tpu.matmul %206, %208, %cst_106 {dimension_numbers = #tpu.dot_dimension_numbers<[1], [0], [0], [1], [0, 0, 1, 1], [], []>} : vector<8x8xf32>, vector<8x64xf32>, vector<8x64xf32> -> vector<8x64xf32>
    %210 = arith.addf %180, %209 : vector<8x64xf32>
    %c7 = arith.constant 7 : index
    %c0_107 = arith.constant 0 : index
    %c0_108 = arith.constant 0 : index
    %211 = vector.load %arg2[%c7, %c0_107, %c0_108] : memref<8x64x16xf32, #tpu.memory_space<vmem>>, vector<1x64x16xf32>
    %212 = vector.shape_cast %211 : vector<1x64x16xf32> to vector<64x16xf32>
    %cst_109 = arith.constant dense<0.000000e+00> : vector<8x16xf32>
    %213 = tpu.matmul %1, %212, %cst_109 {dimension_numbers = #tpu.dot_dimension_numbers<[1], [0], [0], [1], [0, 0, 1, 1], [], []>} : vector<8x64xf32>, vector<64x16xf32>, vector<8x16xf32> -> vector<8x16xf32>
    %c7_110 = arith.constant 7 : index
    %c0_111 = arith.constant 0 : index
    %c0_112 = arith.constant 0 : index
    %214 = vector.load %arg3[%c7_110, %c0_111, %c0_112] : memref<8x1x16xf32, #tpu.memory_space<vmem>>, vector<1x1x16xf32>
    %215 = vector.shape_cast %214 : vector<1x1x16xf32> to vector<1x16xf32>
    %216 = vector.broadcast %215 : vector<1x16xf32> to vector<8x16xf32>
    %217 = arith.addf %213, %216 : vector<8x16xf32>
    %218 = vector.extract_strided_slice %217 {offsets = [0, 0], sizes = [8, 8], strides = [1, 1]} : vector<8x16xf32> to vector<8x8xf32>
    %219 = vector.shape_cast %218 : vector<8x8xf32> to vector<1x8x8xf32>
    %220 = vector.extract_strided_slice %217 {offsets = [0, 8], sizes = [8, 8], strides = [1, 1]} : vector<8x16xf32> to vector<8x8xf32>
    %221 = vector.shape_cast %220 : vector<8x8xf32> to vector<1x8x8xf32>
    "tpu.trace_start"() <{level = 10 : i32, message = "bqd,bkd->bqk"}> : () -> ()
    %cst_113 = arith.constant dense<0.000000e+00> : vector<1x8x8xf32>
    %222 = tpu.matmul %219, %221, %cst_113 {dimension_numbers = #tpu.dot_dimension_numbers<[2], [2], [1], [1], [0, 0, 0, 1, 1, 1], [0], [0]>} : vector<1x8x8xf32>, vector<1x8x8xf32>, vector<1x8x8xf32> -> vector<1x8x8xf32>
    "tpu.trace_stop"() : () -> ()
    %cst_114 = arith.constant dense<0xFF800000> : vector<1x8xf32>
    %223 = vector.multi_reduction <maximumf>, %222, %cst_114 [2] : vector<1x8x8xf32> to vector<1x8xf32>
    %224 = vector.shape_cast %223 : vector<1x8xf32> to vector<1x8x1xf32>
    %225 = vector.broadcast %224 : vector<1x8x1xf32> to vector<1x8x8xf32>
    %226 = arith.subf %222, %225 : vector<1x8x8xf32>
    %227 = math.exp %226 : vector<1x8x8xf32>
    %cst_115 = arith.constant dense<0.000000e+00> : vector<1x8xf32>
    %228 = vector.multi_reduction <add>, %227, %cst_115 [2] : vector<1x8x8xf32> to vector<1x8xf32>
    %229 = vector.shape_cast %228 : vector<1x8xf32> to vector<1x8x1xf32>
    "tpu.trace_start"() <{level = 10 : i32, message = "bqk,bkd->bqd"}> : () -> ()
    %cst_116 = arith.constant dense<0.000000e+00> : vector<1x8x8xf32>
    %230 = tpu.matmul %227, %221, %cst_116 {dimension_numbers = #tpu.dot_dimension_numbers<[2], [1], [1], [2], [0, 0, 0, 1, 1, 2], [0], [0]>} : vector<1x8x8xf32>, vector<1x8x8xf32>, vector<1x8x8xf32> -> vector<1x8x8xf32>
    "tpu.trace_stop"() : () -> ()
    %231 = tpu.reciprocal %229 {approx = true} : vector<1x8x1xf32> -> vector<1x8x1xf32>
    %cst_117 = arith.constant 0.353553385 : f32
    %232 = vector.broadcast %cst_117 : f32 to vector<1x8x1xf32>
    %233 = arith.mulf %232, %231 : vector<1x8x1xf32>
    %234 = vector.broadcast %233 : vector<1x8x1xf32> to vector<1x8x8xf32>
    %235 = arith.mulf %230, %234 : vector<1x8x8xf32>
    %236 = vector.shape_cast %235 : vector<1x8x8xf32> to vector<8x8xf32>
    %c7_118 = arith.constant 7 : index
    %c0_119 = arith.constant 0 : index
    %c0_120 = arith.constant 0 : index
    %237 = vector.load %arg4[%c7_118, %c0_119, %c0_120] : memref<8x8x64xf32, #tpu.memory_space<vmem>>, vector<1x8x64xf32>
    %238 = vector.shape_cast %237 : vector<1x8x64xf32> to vector<8x64xf32>
    %cst_121 = arith.constant dense<0.000000e+00> : vector<8x64xf32>
    %239 = tpu.matmul %236, %238, %cst_121 {dimension_numbers = #tpu.dot_dimension_numbers<[1], [0], [0], [1], [0, 0, 1, 1], [], []>} : vector<8x8xf32>, vector<8x64xf32>, vector<8x64xf32> -> vector<8x64xf32>
    %240 = arith.addf %210, %239 : vector<8x64xf32>
    %c0_122 = arith.constant 0 : index
    %c0_123 = arith.constant 0 : index
    %241 = vector.load %arg5[%c0_122, %c0_123] : memref<1x64xf32, #tpu.memory_space<vmem>>, vector<1x64xf32>
    %242 = vector.broadcast %241 : vector<1x64xf32> to vector<8x64xf32>
    %243 = arith.addf %240, %242 : vector<8x64xf32>
    %244 = vector.shape_cast %243 : vector<8x64xf32> to vector<1x8x64xf32>
    %c0_124 = arith.constant 0 : index
    %c0_125 = arith.constant 0 : index
    %c0_126 = arith.constant 0 : index
    %245 = vector.load %arg6[%c0_124, %c0_125, %c0_126] : memref<1x8x64xf32, #tpu.memory_space<vmem>>, vector<1x8x64xf32>
    tpu.vector_store %arg6[%c0_124, %c0_125, %c0_126], %244 {strides = array<i32>} : memref<1x8x64xf32, #tpu.memory_space<vmem>>, vector<1x8x64xf32>,
    return
  }
  func.func @transform_0(%arg0: i32) -> (i32, i32, i32) {
    %c0_i32 = arith.constant 0 : i32
    %c0_i32_0 = arith.constant 0 : i32
    %c0_i32_1 = arith.constant 0 : i32
    return %arg0, %c0_i32, %c0_i32_0 : i32, i32, i32
  }
  func.func @transform_1(%arg0: i32) -> (i32, i32, i32) {
    %c0_i32 = arith.constant 0 : i32
    %c0_i32_0 = arith.constant 0 : i32
    %c0_i32_1 = arith.constant 0 : i32
    %c0_i32_2 = arith.constant 0 : i32
    return %c0_i32, %c0_i32_0, %c0_i32_1 : i32, i32, i32
  }
  func.func @transform_2(%arg0: i32) -> (i32, i32, i32) {
    %c0_i32 = arith.constant 0 : i32
    %c0_i32_0 = arith.constant 0 : i32
    %c0_i32_1 = arith.constant 0 : i32
    %c0_i32_2 = arith.constant 0 : i32
    return %c0_i32, %c0_i32_0, %c0_i32_1 : i32, i32, i32
  }
  func.func @transform_3(%arg0: i32) -> (i32, i32, i32) {
    %c0_i32 = arith.constant 0 : i32
    %c0_i32_0 = arith.constant 0 : i32
    %c0_i32_1 = arith.constant 0 : i32
    %c0_i32_2 = arith.constant 0 : i32
    return %c0_i32, %c0_i32_0, %c0_i32_1 : i32, i32, i32
  }
  func.func @transform_4(%arg0: i32) -> (i32, i32) {
    %c0_i32 = arith.constant 0 : i32
    %c0_i32_0 = arith.constant 0 : i32
    %c0_i32_1 = arith.constant 0 : i32
    return %c0_i32, %c0_i32_0 : i32, i32
  }
  func.func @transform_5(%arg0: i32) -> (i32, i32, i32) {
    %c0_i32 = arith.constant 0 : i32
    %c0_i32_0 = arith.constant 0 : i32
    %c0_i32_1 = arith.constant 0 : i32
    return %arg0, %c0_i32, %c0_i32_0 : i32, i32, i32
  }
}

</mosaic_0001>

<llo_original>
// kernel: tpu_custom_call.1
$region0: #{tpu_custom_call.1}
  #allocation0 [shape = 'u32[]', space=smem, size = 0x4, offset = 0x4, fixed_abs, tag = 'smem constant byte address 0x4 - core index']
  #allocation1 [shape = 'u32[144,128]{1,0:T(1,128)}', space=vmem, size = 0x12000, scoped, tag = 'internal scratch']
  %s0 = inlined_call_operand.vmem [shape: f32[2,8,64], index: 0, kind: input, shape index: {}]
  %s1 = inlined_call_operand.vmem [shape: f32[8,64,16], index: 1, kind: input, shape index: {}]
  %s2 = inlined_call_operand.vmem [shape: f32[8,1,16], index: 2, kind: input, shape index: {}]
  %s3 = inlined_call_operand.vmem [shape: f32[8,8,64], index: 3, kind: input, shape index: {}]
  %s4 = inlined_call_operand.vmem [shape: f32[1,64], index: 4, kind: input, shape index: {}]
  %s5 = inlined_call_operand.hbm [shape: f32[2,8,64], index: 5, kind: output, shape index: {}]
  %s6 = sld [smem:[#allocation0]]
  $region53: #{tpu_custom_call.1} parent=0
    _
  %s8 = ssub.s32 1, %s6
  %s9 = scalar_select 0, %s8, %s6
  $region1: #{tpu_custom_call.1} parent=0
    #allocation2 [shape = 'u8[8192]{0}', space=vmem, size = 0x2000, scoped, tag = 'output window, operand 0']
    #allocation3 [shape = 's32[2]{0}', space=sflag, size = 0x8, scoped, tag = 'scoped memory for tpu_custom_call.1']
    %10 = vsyncpa [#allocation3], 0
    %s11 = scalar_lea.sflag [#allocation3], 1
    %12 = vsyncpa %s11, 0
    loop: start=0, step=1, limit=4
    $region2: #{tpu_custom_call.1} parent=1 // loop_pre_header
      _
    $region3: #{tpu_custom_call.1} parent=1 // loop_header
      %s14 = sphi 0, %s18
      %p15 = scmp.ge.s32.totalorder %s14, 4
      %s24 = sphi 0, %s26
      %s27 = sphi 0, %s24
      %s28 = sphi 0, %s27
      %s44 = sphi 0, %s28
      %s48 = sphi 0, %s48
      %s50 = sphi 0, %s48
      %s51 = sphi 0, %s50
      %s65 = sphi 0, %s51
      %s69 = sphi 0, %s69
      %s71 = sphi 0, %s69
      %s72 = sphi 0, %s71
      %s86 = sphi 0, %s72
      %s90 = sphi 0, %s90
      %s92 = sphi 0, %s90
      %s93 = sphi 0, %s92
      %s107 = sphi 0, %s93
      %s111 = sphi 0, %s111
      %s113 = sphi 0, %s111
      %s114 = sphi 0, %s113
      %s128 = sphi 0, %s114
      %s134 = sphi 0, %s136
      %s137 = sphi 0, %s134
      %s138 = sphi 0, %s137
      %s154 = sphi 0, %s138
    $region4: #{tpu_custom_call.1} parent=1 // loop_header_branch
      %17 = sbr.rel (%p15) target = $region8
    $region5: #{tpu_custom_call.1} parent=1 // loop_body
      %s19 = ssub.s32 %s14, 1
      %s20 = ssub.s32 %s14, 2
      %s21 = sadd.s32 %s14, 1
      %s22 = ssub.s32 %s14, %s21
      %p23 = scmp.eq.s32.totalorder %s22, 0
      %s25 = sadd.s32 %s24, 1
      %s26 = scalar_select %p23, %s24, %s25
      %p29 = pneg %p23
      %p30 = scmp.eq.s32.totalorder %s14, 1
      %p31 = por %p29, %p30
      %p32 = scmp.ne.s32.totalorder %s24, %s27
      %p33 = scmp.eq.s32.totalorder %s14, 0
      %p34 = por %p32, %p33
      %p35 = scmp.ne.s32.totalorder %s24, %s27
      %p36 = scmp.eq.s32.totalorder %s19, 1
      %p37 = por %p35, %p36
      %p38 = scmp.ne.s32.totalorder %s27, %s28
      %p39 = scmp.eq.s32.totalorder %s19, 0
      %p40 = por %p38, %p39
      %p41 = scmp.ne.s32.totalorder %s27, %s28
      %p42 = scmp.eq.s32.totalorder %s20, 1
      %p43 = por %p41, %p42
      %p45 = scmp.ne.s32.totalorder %s28, %s44
      %p46 = scmp.eq.s32.totalorder %s20, 0
      %p47 = por %p45, %p46
      %s49 = sadd.s32 %s48, 1
      %p52 = scmp.eq.s32.totalorder %s14, 1
      %p53 = scmp.ne.s32.totalorder %s48, %s50
      %p54 = scmp.eq.s32.totalorder %s14, 0
      %p55 = por %p53, %p54
      %p56 = scmp.ne.s32.totalorder %s48, %s50
      %p57 = scmp.eq.s32.totalorder %s19, 1
      %p58 = por %p56, %p57
      %p59 = scmp.ne.s32.totalorder %s50, %s51
      %p60 = scmp.eq.s32.totalorder %s19, 0
      %p61 = por %p59, %p60
      %p62 = scmp.ne.s32.totalorder %s50, %s51
      %p63 = scmp.eq.s32.totalorder %s20, 1
      %p64 = por %p62, %p63
      %p66 = scmp.ne.s32.totalorder %s51, %s65
      %p67 = scmp.eq.s32.totalorder %s20, 0
      %p68 = por %p66, %p67
      %s70 = sadd.s32 %s69, 1
      %p73 = scmp.eq.s32.totalorder %s14, 1
      %p74 = scmp.ne.s32.totalorder %s69, %s71
      %p75 = scmp.eq.s32.totalorder %s14, 0
      %p76 = por %p74, %p75
      %p77 = scmp.ne.s32.totalorder %s69, %s71
      %p78 = scmp.eq.s32.totalorder %s19, 1
      %p79 = por %p77, %p78
      %p80 = scmp.ne.s32.totalorder %s71, %s72
      %p81 = scmp.eq.s32.totalorder %s19, 0
      %p82 = por %p80, %p81
      %p83 = scmp.ne.s32.totalorder %s71, %s72
      %p84 = scmp.eq.s32.totalorder %s20, 1
      %p85 = por %p83, %p84
      %p87 = scmp.ne.s32.totalorder %s72, %s86
      %p88 = scmp.eq.s32.totalorder %s20, 0
      %p89 = por %p87, %p88
      %s91 = sadd.s32 %s90, 1
      %p94 = scmp.eq.s32.totalorder %s14, 1
      %p95 = scmp.ne.s32.totalorder %s90, %s92
      %p96 = scmp.eq.s32.totalorder %s14, 0
      %p97 = por %p95, %p96
      %p98 = scmp.ne.s32.totalorder %s90, %s92
      %p99 = scmp.eq.s32.totalorder %s19, 1
      %p100 = por %p98, %p99
      %p101 = scmp.ne.s32.totalorder %s92, %s93
      %p102 = scmp.eq.s32.totalorder %s19, 0
      %p103 = por %p101, %p102
      %p104 = scmp.ne.s32.totalorder %s92, %s93
      %p105 = scmp.eq.s32.totalorder %s20, 1
      %p106 = por %p104, %p105
      %p108 = scmp.ne.s32.totalorder %s93, %s107
      %p109 = scmp.eq.s32.totalorder %s20, 0
      %p110 = por %p108, %p109
      %s112 = sadd.s32 %s111, 1
      %p115 = scmp.eq.s32.totalorder %s14, 1
      %p116 = scmp.ne.s32.totalorder %s111, %s113
      %p117 = scmp.eq.s32.totalorder %s14, 0
      %p118 = por %p116, %p117
      %p119 = scmp.ne.s32.totalorder %s111, %s113
      %p120 = scmp.eq.s32.totalorder %s19, 1
      %p121 = por %p119, %p120
      %p122 = scmp.ne.s32.totalorder %s113, %s114
      %p123 = scmp.eq.s32.totalorder %s19, 0
      %p124 = por %p122, %p123
      %p125 = scmp.ne.s32.totalorder %s113, %s114
      %p126 = scmp.eq.s32.totalorder %s20, 1
      %p127 = por %p125, %p126
      %p129 = scmp.ne.s32.totalorder %s114, %s128
      %p130 = scmp.eq.s32.totalorder %s20, 0
      %p131 = por %p129, %p130
      %s132 = ssub.s32 %s14, %s21
      %p133 = scmp.eq.s32.totalorder %s132, 0
      %s135 = sadd.s32 %s134, 1
      %s136 = scalar_select %p133, %s134, %s135
      %p139 = pneg %p133
      %p140 = scmp.eq.s32.totalorder %s14, 1
      %p141 = por %p139, %p140
      %p142 = scmp.ne.s32.totalorder %s134, %s137
      %p143 = scmp.eq.s32.totalorder %s14, 0
      %p144 = por %p142, %p143
      %p145 = scmp.ne.s32.totalorder %s134, %s137
      %p146 = scmp.eq.s32.totalorder %s19, 1
      %p147 = por %p145, %p146
      %p148 = scmp.ne.s32.totalorder %s137, %s138
      %p149 = scmp.eq.s32.totalorder %s19, 0
      %p150 = por %p148, %p149
      %p151 = scmp.ne.s32.totalorder %s137, %s138
      %p152 = scmp.eq.s32.totalorder %s20, 1
      %p153 = por %p151, %p152
      %p155 = scmp.ne.s32.totalorder %s138, %s154
      %p156 = scmp.eq.s32.totalorder %s20, 0
      %p157 = por %p155, %p156
      %p158 = scmp.le.s32.totalorder 1, %s14
      %p159 = scmp.lt.s32.totalorder %s14, 3
      %p160 = pnand %p158, %p159
      %p161 = pneg %p160
      // Predicated region
      $region9: #{tpu_custom_call.1} parent=5 // pred_check
        _
      $region10: #{tpu_custom_call.1} parent=5 // pred_check_branch
        %163 = sbr.rel (%p160) target = $region12
      $region11: #{tpu_custom_call.1} parent=5 // pred_region
        %s164 = ssub.s32 %s14, 1
        // Predicated region
        $region13: #{tpu_custom_call.1} parent=11 // pred_check
          %p165 = pneg %p61
        $region14: #{tpu_custom_call.1} parent=11 // pred_check_branch
          %167 = sbr.rel (%p165) target = $region16
        $region15: #{tpu_custom_call.1} parent=11 // pred_region
          _
        $region16: #{tpu_custom_call.1} parent=11 // pred_fallthru
          _
        // Predicated region
        $region17: #{tpu_custom_call.1} parent=11 // pred_check
          %p168 = pneg %p82
        $region18: #{tpu_custom_call.1} parent=11 // pred_check_branch
          %170 = sbr.rel (%p168) target = $region20
        $region19: #{tpu_custom_call.1} parent=11 // pred_region
          _
        $region20: #{tpu_custom_call.1} parent=11 // pred_fallthru
          _
        // Predicated region
        $region21: #{tpu_custom_call.1} parent=11 // pred_check
          %p171 = pneg %p103
        $region22: #{tpu_custom_call.1} parent=11 // pred_check_branch
          %173 = sbr.rel (%p171) target = $region24
        $region23: #{tpu_custom_call.1} parent=11 // pred_region
          _
        $region24: #{tpu_custom_call.1} parent=11 // pred_fallthru
          _
        // Predicated region
        $region25: #{tpu_custom_call.1} parent=11 // pred_check
          %p174 = pneg %p124
        $region26: #{tpu_custom_call.1} parent=11 // pred_check_branch
          %176 = sbr.rel (%p174) target = $region28
        $region27: #{tpu_custom_call.1} parent=11 // pred_region
          _
        $region28: #{tpu_custom_call.1} parent=11 // pred_fallthru
          _
      $region12: #{tpu_custom_call.1} parent=5 // pred_fallthru
        _
      %p177 = scmp.lt.s32.totalorder %s14, 2
      // Predicated region
      $region29: #{tpu_custom_call.1} parent=5 // pred_check
        %p178 = pneg %p177
      $region30: #{tpu_custom_call.1} parent=5 // pred_check_branch
        %180 = sbr.rel (%p178) target = $region32
      $region31: #{tpu_custom_call.1} parent=5 // pred_region
        // Predicated region
        $region33: #{tpu_custom_call.1} parent=31 // pred_check
          %p181 = pneg %p34
        $region34: #{tpu_custom_call.1} parent=31 // pred_check_branch
          %183 = sbr.rel (%p181) target = $region36
        $region35: #{tpu_custom_call.1} parent=31 // pred_region
          %p184 = scmp.lt.s32.totalorder %s14, 1
          %s185 = scalar_select %p184, %s14, 1
          %s186 = smul.addr %s185, 8
          %s187 = scalar_lea.vmem %s0, %s186
        $region36: #{tpu_custom_call.1} parent=31 // pred_fallthru
          _
      $region32: #{tpu_custom_call.1} parent=5 // pred_fallthru
        _
      %p188 = scmp.le.s32.totalorder 1, %s14
      %p189 = scmp.lt.s32.totalorder %s14, 3
      %p190 = pnand %p188, %p189
      %p191 = pneg %p190
      // Predicated region
      $region37: #{tpu_custom_call.1} parent=5 // pred_check
        _
      $region38: #{tpu_custom_call.1} parent=5 // pred_check_branch
        %193 = sbr.rel (%p190) target = $region40
      $region39: #{tpu_custom_call.1} parent=5 // pred_region
        %s194 = ssub.s32 %s14, 1
        %p195 = scmp.lt.s32.totalorder %s19, 1
        %s196 = scalar_select %p195, %s19, 1
        %s197 = smul.addr %s196, 8
        %s198 = scalar_lea.vmem %s0, %s197
        %p199 = pneg %p40
        %p200 = pneg %p37
        %p201 = pneg %p61
        %p202 = pneg %p58
        %p203 = pneg %p82
        %p204 = pneg %p79
        %p205 = pneg %p103
        %p206 = pneg %p100
        %p207 = pneg %p124
        %p208 = pneg %p121
        %p209 = pneg %p150
        %p210 = pneg %p147
        %s211 = sand.u32 %s137, 1
        %s212 = scalar_lea.sflag [#allocation3], %s211
        %s213 = sand.u32 %s137, 1
        %s214 = smul.addr %s213, 8
        %s215 = scalar_lea.vmem [#allocation2], %s214
        %p216 = scmp.lt.s32.totalorder %s19, 1
        %s217 = scalar_select %p216, %s19, 1
        %s218 = smul.addr %s217, 8
        %s219 = scalar_lea.vmem %s0, %s218
        %v220 = vld [vmem:[%s219] sm:$0xff]
        %v221 = vld [vmem:[%s1] sm:$0xff]
        %v222 = vld [vmem:[%s1 + $0x8] sm:$0xff]
        %v223 = vld [vmem:[%s1 + $0x10] sm:$0xff]
        %v224 = vld [vmem:[%s1 + $0x18] sm:$0xff]
        %v225 = vld [vmem:[%s1 + $0x20] sm:$0xff]
        %v226 = vld [vmem:[%s1 + $0x28] sm:$0xff]
        %v227 = vld [vmem:[%s1 + $0x30] sm:$0xff]
        %v228 = vld [vmem:[%s1 + $0x38] sm:$0xff]
        %v229 = vld [vmem:[%s2] sm:$0x1]
        %v231 = vlaneseq
        %v232 = vshrl.u32 %v231, 7
        %v233 = vsub.s32 0, %v232
        %v234 = vrot.slane %v229, %v233
        %vm236 = vcmask 523264
        %v238 = vsel %vm236, %v220, 0
        %240 = vmatprep.subr.mxu0 0.0
        %241 = vmatpush1.msra.mxu0 %v221
        %242 = vmatprep.subr.mxu0 0.0
        %243 = vmatpush1.msra.mxu0 %v222
        %244 = vmatprep.subr.mxu0 0.0
        %245 = vmatpush1.msra.mxu0 %v223
        %246 = vmatprep.subr.mxu0 0.0
        %247 = vmatpush1.msra.mxu0 %v224
        %248 = vmatprep.subr.mxu0 0.0
        %249 = vmatpush1.msra.mxu0 %v225
        %250 = vmatprep.subr.mxu0 0.0
        %251 = vmatpush1.msra.mxu0 %v226
        %252 = vmatprep.subr.mxu0 0.0
        %253 = vmatpush1.msra.mxu0 %v227
        %254 = vmatprep.subr.mxu0 0.0
        %255 = vmatpush1.msra.mxu0 %v228
        %256 = vmatprep.subr.mxu0 0.0
        %257 = vmatpush1.msra.mxu0 0.0
        %258 = vmatprep.subr.mxu0 0.0
        %259 = vmatpush1.msra.mxu0 0.0
        %260 = vmatprep.subr.mxu0 0.0
        %261 = vmatpush1.msra.mxu0 0.0
        %262 = vmatprep.subr.mxu0 0.0
        %263 = vmatpush1.msra.mxu0 0.0
        %264 = vmatprep.subr.mxu0 0.0
        %265 = vmatpush1.msra.mxu0 0.0
        %266 = vmatprep.subr.mxu0 0.0
        %267 = vmatpush1.msra.mxu0 0.0
        %268 = vmatprep.subr.mxu0 0.0
        %269 = vmatpush1.msra.mxu0 0.0
        %270 = vmatprep.subr.mxu0 0.0
        %271 = vmatpush1.msra.mxu0 0.0
        %272 = vmatprep.subr.mxu0 0.0
        %273 = vmatpush1.msra.mxu0 0.0
        %274 = vmatprep.subr.mxu0 0.0
        %275 = vmatpush1.msra.mxu0 0.0
        %276 = vmatprep.subr.mxu0 0.0
        %277 = vmatpush1.msra.mxu0 0.0
        %278 = vmatprep.subr.mxu0 0.0
        %279 = vmatpush1.msra.mxu0 0.0
        %280 = vmatprep.subr.mxu0 0.0
        %281 = vmatpush1.msra.mxu0 0.0
        %282 = vmatprep.subr.mxu0 0.0
        %283 = vmatpush1.msra.mxu0 0.0
        %284 = vmatprep.subr.mxu0 0.0
        %285 = vmatpush1.msra.mxu0 0.0
        %286 = vmatprep.subr.mxu0 0.0
        %287 = vmatpush1.msra.mxu0 0.0
        %288 = vmatprep.subr.mxu0 0.0
        %289 = vmatpush1.msra.mxu0 0.0
        %290 = vmatprep.subr.mxu0 0.0
        %291 = vmatpush1.msra.mxu0 0.0
        %292 = vmatprep.subr.mxu0 0.0
        %293 = vmatpush1.msra.mxu0 0.0
        %294 = vmatprep.subr.mxu0 0.0
        %295 = vmatpush1.msra.mxu0 0.0
        %296 = vmatprep.subr.mxu0 0.0
        %297 = vmatpush1.msra.mxu0 0.0
        %298 = vmatprep.subr.mxu0 0.0
        %299 = vmatpush1.msra.mxu0 0.0
        %300 = vmatprep.subr.mxu0 0.0
        %301 = vmatpush1.msra.mxu0 0.0
        %302 = vmatprep.subr.mxu0 0.0
        %303 = vmatpush1.msra.mxu0 0.0
        %304 = vmatprep.mubr.f32.mxu0 0.0
        %305 = vmatmul.mubr.f32.gmra.mrb[0].mxu0 %v238
        %v306 = vpop.f32.mrb[0].mxu0
        %v307 = vadd.f32 %v234, %v306
        %v308 = vpop.f32.mrb[0].mxu0
        %309 = vdwg.mxu0
        %311 = vrot.lane.b32.xlu0 %v307, 120
        %v312 = vpop.permute.xlu0 %311
        %vm313 = vcmask 64512
        %v314 = vsel %vm313, %v307, 0
        %v316 = vsel %vm313, %v312, 0
        %318 = vmatprep.subr.mxu0 0.0
        %319 = vmatpush1.xpose.msra.mxu0 %v316
        %320 = vmatprep.subr.mxu0 0.0
        %321 = vmatpush1.xpose.msra.mxu0 0.0
        %322 = vmatprep.subr.mxu0 0.0
        %323 = vmatpush1.xpose.msra.mxu0 0.0
        %324 = vmatprep.subr.mxu0 0.0
        %325 = vmatpush1.xpose.msra.mxu0 0.0
        %326 = vmatprep.subr.mxu0 0.0
        %327 = vmatpush1.xpose.msra.mxu0 0.0
        %328 = vmatprep.subr.mxu0 0.0
        %329 = vmatpush1.xpose.msra.mxu0 0.0
        %330 = vmatprep.subr.mxu0 0.0
        %331 = vmatpush1.xpose.msra.mxu0 0.0
        %332 = vmatprep.subr.mxu0 0.0
        %333 = vmatpush1.xpose.msra.mxu0 0.0
        %334 = vmatprep.subr.mxu0 0.0
        %335 = vmatpush1.xpose.msra.mxu0 0.0
        %336 = vmatprep.subr.mxu0 0.0
        %337 = vmatpush1.xpose.msra.mxu0 0.0
        %338 = vmatprep.subr.mxu0 0.0
        %339 = vmatpush1.xpose.msra.mxu0 0.0
        %340 = vmatprep.subr.mxu0 0.0
        %341 = vmatpush1.xpose.msra.mxu0 0.0
        %342 = vmatprep.subr.mxu0 0.0
        %343 = vmatpush1.xpose.msra.mxu0 0.0
        %344 = vmatprep.subr.mxu0 0.0
        %345 = vmatpush1.xpose.msra.mxu0 0.0
        %346 = vmatprep.subr.mxu0 0.0
        %347 = vmatpush1.xpose.msra.mxu0 0.0
        %348 = vmatprep.subr.mxu0 0.0
        %349 = vmatpush1.xpose.msra.mxu0 0.0
        %350 = vmatprep.subr.mxu0 0.0
        %351 = vmatpush1.xpose.msra.mxu0 0.0
        %352 = vmatprep.subr.mxu0 0.0
        %353 = vmatpush1.xpose.msra.mxu0 0.0
        %354 = vmatprep.subr.mxu0 0.0
        %355 = vmatpush1.xpose.msra.mxu0 0.0
        %356 = vmatprep.subr.mxu0 0.0
        %357 = vmatpush1.xpose.msra.mxu0 0.0
        %358 = vmatprep.subr.mxu0 0.0
        %359 = vmatpush1.xpose.msra.mxu0 0.0
        %360 = vmatprep.subr.mxu0 0.0
        %361 = vmatpush1.xpose.msra.mxu0 0.0
        %362 = vmatprep.subr.mxu0 0.0
        %363 = vmatpush1.xpose.msra.mxu0 0.0
        %364 = vmatprep.subr.mxu0 0.0
        %365 = vmatpush1.xpose.msra.mxu0 0.0
        %366 = vmatprep.subr.mxu0 0.0
        %367 = vmatpush1.xpose.msra.mxu0 0.0
        %368 = vmatprep.subr.mxu0 0.0
        %369 = vmatpush1.xpose.msra.mxu0 0.0
        %370 = vmatprep.subr.mxu0 0.0
        %371 = vmatpush1.xpose.msra.mxu0 0.0
        %372 = vmatprep.subr.mxu0 0.0
        %373 = vmatpush1.xpose.msra.mxu0 0.0
        %374 = vmatprep.subr.mxu0 0.0
        %375 = vmatpush1.xpose.msra.mxu0 0.0
        %376 = vmatprep.subr.mxu0 0.0
        %377 = vmatpush1.xpose.msra.mxu0 0.0
        %378 = vmatprep.subr.mxu0 0.0
        %379 = vmatpush1.xpose.msra.mxu0 0.0
        %380 = vmatprep.subr.mxu0 0.0
        %381 = vmatpush1.xpose.msra.mxu0 0.0
        %382 = vmatprep.mubr.f32.mxu0 0.0
        %383 = vmatmul.mubr.f32.gmra.mrb[0].mxu0 %v314
        %v384 = vpop.f32.mrb[0].mxu0
        %v385 = vadd.f32 0.0, %v384
        %v386 = vpop.f32.mrb[0].mxu0
        %387 = vdwg.mxu0
        %v388 = vsel %vm313, %v385, -inf
        %389 = vmax.xlane.f32.xlu0 %v388
        %v390 = vpop.xlane.xlu0 %389
        %v391 = vsub.f32 %v385, %v390
        %v392 = vmul.f32 %v391, 1.442695
        %v393 = vpow.pop %v392
        %v394 = vsel %vm313, %v393, 0.0
        %395 = vadd.xlane.f32.xlu0 %v394
        %v396 = vpop.xlane.xlu0 %395
        %v399 = vsel %vm313, %v393, 0
        %401 = vmatprep.subr.mxu0 0.0
        %402 = vmatpush1.msra.mxu0 %v312
        %403 = vmatprep.subr.mxu0 0.0
        %404 = vmatpush1.msra.mxu0 0.0
        %405 = vmatprep.subr.mxu0 0.0
        %406 = vmatpush1.msra.mxu0 0.0
        %407 = vmatprep.subr.mxu0 0.0
        %408 = vmatpush1.msra.mxu0 0.0
        %409 = vmatprep.subr.mxu0 0.0
        %410 = vmatpush1.msra.mxu0 0.0
        %411 = vmatprep.subr.mxu0 0.0
        %412 = vmatpush1.msra.mxu0 0.0
        %413 = vmatprep.subr.mxu0 0.0
        %414 = vmatpush1.msra.mxu0 0.0
        %415 = vmatprep.subr.mxu0 0.0
        %416 = vmatpush1.msra.mxu0 0.0
        %417 = vmatprep.subr.mxu0 0.0
        %418 = vmatpush1.msra.mxu0 0.0
        %419 = vmatprep.subr.mxu0 0.0
        %420 = vmatpush1.msra.mxu0 0.0
        %421 = vmatprep.subr.mxu0 0.0
        %422 = vmatpush1.msra.mxu0 0.0
        %423 = vmatprep.subr.mxu0 0.0
        %424 = vmatpush1.msra.mxu0 0.0
        %425 = vmatprep.subr.mxu0 0.0
        %426 = vmatpush1.msra.mxu0 0.0
        %427 = vmatprep.subr.mxu0 0.0
        %428 = vmatpush1.msra.mxu0 0.0
        %429 = vmatprep.subr.mxu0 0.0
        %430 = vmatpush1.msra.mxu0 0.0
        %431 = vmatprep.subr.mxu0 0.0
        %432 = vmatpush1.msra.mxu0 0.0
        %433 = vmatprep.subr.mxu0 0.0
        %434 = vmatpush1.msra.mxu0 0.0
        %435 = vmatprep.subr.mxu0 0.0
        %436 = vmatpush1.msra.mxu0 0.0
        %437 = vmatprep.subr.mxu0 0.0
        %438 = vmatpush1.msra.mxu0 0.0
        %439 = vmatprep.subr.mxu0 0.0
        %440 = vmatpush1.msra.mxu0 0.0
        %441 = vmatprep.subr.mxu0 0.0
        %442 = vmatpush1.msra.mxu0 0.0
        %443 = vmatprep.subr.mxu0 0.0
        %444 = vmatpush1.msra.mxu0 0.0
        %445 = vmatprep.subr.mxu0 0.0
        %446 = vmatpush1.msra.mxu0 0.0
        %447 = vmatprep.subr.mxu0 0.0
        %448 = vmatpush1.msra.mxu0 0.0
        %449 = vmatprep.subr.mxu0 0.0
        %450 = vmatpush1.msra.mxu0 0.0
        %451 = vmatprep.subr.mxu0 0.0
        %452 = vmatpush1.msra.mxu0 0.0
        %453 = vmatprep.subr.mxu0 0.0
        %454 = vmatpush1.msra.mxu0 0.0
        %455 = vmatprep.subr.mxu0 0.0
        %456 = vmatpush1.msra.mxu0 0.0
        %457 = vmatprep.subr.mxu0 0.0
        %458 = vmatpush1.msra.mxu0 0.0
        %459 = vmatprep.subr.mxu0 0.0
        %460 = vmatpush1.msra.mxu0 0.0
        %461 = vmatprep.subr.mxu0 0.0
        %462 = vmatpush1.msra.mxu0 0.0
        %463 = vmatprep.subr.mxu0 0.0
        %464 = vmatpush1.msra.mxu0 0.0
        %465 = vmatprep.mubr.f32.mxu0 0.0
        %466 = vmatmul.mubr.f32.gmra.mrb[0].mxu0 %v399
        %v467 = vpop.f32.mrb[0].mxu0
        %v468 = vadd.f32 0.0, %v467
        %v469 = vpop.f32.mrb[0].mxu0
        %470 = vdwg.mxu0
        %v471 = vrcp.pop %v396
        %v472 = vmul.f32 %v471, 0.35355338
        %v473 = vmul.f32 %v468, %v472
        %v474 = vld [vmem:[%s3] sm:$0xff]
        %s475 = scalar_lea.vmem %s1, 64
        %v476 = vld [vmem:[%s475] sm:$0xff]
        %v477 = vld [vmem:[%s475 + $0x8] sm:$0xff]
        %v478 = vld [vmem:[%s475 + $0x10] sm:$0xff]
        %v479 = vld [vmem:[%s475 + $0x18] sm:$0xff]
        %v480 = vld [vmem:[%s475 + $0x20] sm:$0xff]
        %v481 = vld [vmem:[%s475 + $0x28] sm:$0xff]
        %v482 = vld [vmem:[%s475 + $0x30] sm:$0xff]
        %v483 = vld [vmem:[%s475 + $0x38] sm:$0xff]
        %s484 = scalar_lea.vmem %s2, 1
        %v485 = vld [vmem:[%s484] sm:$0x1]
        %v487 = vlaneseq
        %v488 = vshrl.u32 %v487, 7
        %v489 = vsub.s32 0, %v488
        %v490 = vrot.slane %v485, %v489
        %492 = vmatprep.subr.mxu0 0.0
        %493 = vmatpush1.msra.mxu0 %v476
        %494 = vmatprep.subr.mxu0 0.0
        %495 = vmatpush1.msra.mxu0 %v477
        %496 = vmatprep.subr.mxu0 0.0
        %497 = vmatpush1.msra.mxu0 %v478
        %498 = vmatprep.subr.mxu0 0.0
        %499 = vmatpush1.msra.mxu0 %v479
        %500 = vmatprep.subr.mxu0 0.0
        %501 = vmatpush1.msra.mxu0 %v480
        %502 = vmatprep.subr.mxu0 0.0
        %503 = vmatpush1.msra.mxu0 %v481
        %504 = vmatprep.subr.mxu0 0.0
        %505 = vmatpush1.msra.mxu0 %v482
        %506 = vmatprep.subr.mxu0 0.0
        %507 = vmatpush1.msra.mxu0 %v483
        %508 = vmatprep.subr.mxu0 0.0
        %509 = vmatpush1.msra.mxu0 0.0
        %510 = vmatprep.subr.mxu0 0.0
        %511 = vmatpush1.msra.mxu0 0.0
        %512 = vmatprep.subr.mxu0 0.0
        %513 = vmatpush1.msra.mxu0 0.0
        %514 = vmatprep.subr.mxu0 0.0
        %515 = vmatpush1.msra.mxu0 0.0
        %516 = vmatprep.subr.mxu0 0.0
        %517 = vmatpush1.msra.mxu0 0.0
        %518 = vmatprep.subr.mxu0 0.0
        %519 = vmatpush1.msra.mxu0 0.0
        %520 = vmatprep.subr.mxu0 0.0
        %521 = vmatpush1.msra.mxu0 0.0
        %522 = vmatprep.subr.mxu0 0.0
        %523 = vmatpush1.msra.mxu0 0.0
        %524 = vmatprep.subr.mxu0 0.0
        %525 = vmatpush1.msra.mxu0 0.0
        %526 = vmatprep.subr.mxu0 0.0
        %527 = vmatpush1.msra.mxu0 0.0
        %528 = vmatprep.subr.mxu0 0.0
        %529 = vmatpush1.msra.mxu0 0.0
        %530 = vmatprep.subr.mxu0 0.0
        %531 = vmatpush1.msra.mxu0 0.0
        %532 = vmatprep.subr.mxu0 0.0
        %533 = vmatpush1.msra.mxu0 0.0
        %534 = vmatprep.subr.mxu0 0.0
        %535 = vmatpush1.msra.mxu0 0.0
        %536 = vmatprep.subr.mxu0 0.0
        %537 = vmatpush1.msra.mxu0 0.0
        %538 = vmatprep.subr.mxu0 0.0
        %539 = vmatpush1.msra.mxu0 0.0
        %540 = vmatprep.subr.mxu0 0.0
        %541 = vmatpush1.msra.mxu0 0.0
        %542 = vmatprep.subr.mxu0 0.0
        %543 = vmatpush1.msra.mxu0 0.0
        %544 = vmatprep.subr.mxu0 0.0
        %545 = vmatpush1.msra.mxu0 0.0
        %546 = vmatprep.subr.mxu0 0.0
        %547 = vmatpush1.msra.mxu0 0.0
        %548 = vmatprep.subr.mxu0 0.0
        %549 = vmatpush1.msra.mxu0 0.0
        %550 = vmatprep.subr.mxu0 0.0
        %551 = vmatpush1.msra.mxu0 0.0
        %552 = vmatprep.subr.mxu0 0.0
        %553 = vmatpush1.msra.mxu0 0.0
        %554 = vmatprep.subr.mxu0 0.0
        %555 = vmatpush1.msra.mxu0 0.0
        %556 = vmatprep.mubr.f32.mxu0 0.0
        %557 = vmatmul.mubr.f32.gmra.mrb[0].mxu0 %v238
        %v558 = vpop.f32.mrb[0].mxu0
        %v559 = vadd.f32 %v490, %v558
        %v560 = vpop.f32.mrb[0].mxu0
        %561 = vdwg.mxu0
        %563 = vrot.lane.b32.xlu0 %v559, 120
        %v564 = vpop.permute.xlu0 %563
        %v565 = vsel %vm313, %v559, 0
        %v567 = vsel %vm313, %v564, 0
        %569 = vmatprep.subr.mxu0 0.0
        %570 = vmatpush1.xpose.msra.mxu0 %v567
        %571 = vmatprep.subr.mxu0 0.0
        %572 = vmatpush1.xpose.msra.mxu0 0.0
        %573 = vmatprep.subr.mxu0 0.0
        %574 = vmatpush1.xpose.msra.mxu0 0.0
        %575 = vmatprep.subr.mxu0 0.0
        %576 = vmatpush1.xpose.msra.mxu0 0.0
        %577 = vmatprep.subr.mxu0 0.0
        %578 = vmatpush1.xpose.msra.mxu0 0.0
        %579 = vmatprep.subr.mxu0 0.0
        %580 = vmatpush1.xpose.msra.mxu0 0.0
        %581 = vmatprep.subr.mxu0 0.0
        %582 = vmatpush1.xpose.msra.mxu0 0.0
        %583 = vmatprep.subr.mxu0 0.0
        %584 = vmatpush1.xpose.msra.mxu0 0.0
        %585 = vmatprep.subr.mxu0 0.0
        %586 = vmatpush1.xpose.msra.mxu0 0.0
        %587 = vmatprep.subr.mxu0 0.0
        %588 = vmatpush1.xpose.msra.mxu0 0.0
        %589 = vmatprep.subr.mxu0 0.0
        %590 = vmatpush1.xpose.msra.mxu0 0.0
        %591 = vmatprep.subr.mxu0 0.0
        %592 = vmatpush1.xpose.msra.mxu0 0.0
        %593 = vmatprep.subr.mxu0 0.0
        %594 = vmatpush1.xpose.msra.mxu0 0.0
        %595 = vmatprep.subr.mxu0 0.0
        %596 = vmatpush1.xpose.msra.mxu0 0.0
        %597 = vmatprep.subr.mxu0 0.0
        %598 = vmatpush1.xpose.msra.mxu0 0.0
        %599 = vmatprep.subr.mxu0 0.0
        %600 = vmatpush1.xpose.msra.mxu0 0.0
        %601 = vmatprep.subr.mxu0 0.0
        %602 = vmatpush1.xpose.msra.mxu0 0.0
        %603 = vmatprep.subr.mxu0 0.0
        %604 = vmatpush1.xpose.msra.mxu0 0.0
        %605 = vmatprep.subr.mxu0 0.0
        %606 = vmatpush1.xpose.msra.mxu0 0.0
        %607 = vmatprep.subr.mxu0 0.0
        %608 = vmatpush1.xpose.msra.mxu0 0.0
        %609 = vmatprep.subr.mxu0 0.0
        %610 = vmatpush1.xpose.msra.mxu0 0.0
        %611 = vmatprep.subr.mxu0 0.0
        %612 = vmatpush1.xpose.msra.mxu0 0.0
        %613 = vmatprep.subr.mxu0 0.0
        %614 = vmatpush1.xpose.msra.mxu0 0.0
        %615 = vmatprep.subr.mxu0 0.0
        %616 = vmatpush1.xpose.msra.mxu0 0.0
        %617 = vmatprep.subr.mxu0 0.0
        %618 = vmatpush1.xpose.msra.mxu0 0.0
        %619 = vmatprep.subr.mxu0 0.0
        %620 = vmatpush1.xpose.msra.mxu0 0.0
        %621 = vmatprep.subr.mxu0 0.0
        %622 = vmatpush1.xpose.msra.mxu0 0.0
        %623 = vmatprep.subr.mxu0 0.0
        %624 = vmatpush1.xpose.msra.mxu0 0.0
        %625 = vmatprep.subr.mxu0 0.0
        %626 = vmatpush1.xpose.msra.mxu0 0.0
        %627 = vmatprep.subr.mxu0 0.0
        %628 = vmatpush1.xpose.msra.mxu0 0.0
        %629 = vmatprep.subr.mxu0 0.0
        %630 = vmatpush1.xpose.msra.mxu0 0.0
        %631 = vmatprep.subr.mxu0 0.0
        %632 = vmatpush1.xpose.msra.mxu0 0.0
        %633 = vmatprep.mubr.f32.mxu0 0.0
        %634 = vmatmul.mubr.f32.gmra.mrb[0].mxu0 %v565
        %v635 = vpop.f32.mrb[0].mxu0
        %v636 = vadd.f32 0.0, %v635
        %v637 = vpop.f32.mrb[0].mxu0
        %638 = vdwg.mxu0
        %v639 = vsel %vm313, %v636, -inf
        %640 = vmax.xlane.f32.xlu0 %v639
        %v641 = vpop.xlane.xlu0 %640
        %v642 = vsub.f32 %v636, %v641
        %v643 = vmul.f32 %v642, 1.442695
        %v644 = vpow.pop %v643
        %v645 = vsel %vm313, %v644, 0.0
        %646 = vadd.xlane.f32.xlu0 %v645
        %v647 = vpop.xlane.xlu0 %646
        %v650 = vsel %vm313, %v644, 0
        %652 = vmatprep.subr.mxu0 0.0
        %653 = vmatpush1.msra.mxu0 %v564
        %654 = vmatprep.subr.mxu0 0.0
        %655 = vmatpush1.msra.mxu0 0.0
        %656 = vmatprep.subr.mxu0 0.0
        %657 = vmatpush1.msra.mxu0 0.0
        %658 = vmatprep.subr.mxu0 0.0
        %659 = vmatpush1.msra.mxu0 0.0
        %660 = vmatprep.subr.mxu0 0.0
        %661 = vmatpush1.msra.mxu0 0.0
        %662 = vmatprep.subr.mxu0 0.0
        %663 = vmatpush1.msra.mxu0 0.0
        %664 = vmatprep.subr.mxu0 0.0
        %665 = vmatpush1.msra.mxu0 0.0
        %666 = vmatprep.subr.mxu0 0.0
        %667 = vmatpush1.msra.mxu0 0.0
        %668 = vmatprep.subr.mxu0 0.0
        %669 = vmatpush1.msra.mxu0 0.0
        %670 = vmatprep.subr.mxu0 0.0
        %671 = vmatpush1.msra.mxu0 0.0
        %672 = vmatprep.subr.mxu0 0.0
        %673 = vmatpush1.msra.mxu0 0.0
        %674 = vmatprep.subr.mxu0 0.0
        %675 = vmatpush1.msra.mxu0 0.0
        %676 = vmatprep.subr.mxu0 0.0
        %677 = vmatpush1.msra.mxu0 0.0
        %678 = vmatprep.subr.mxu0 0.0
        %679 = vmatpush1.msra.mxu0 0.0
        %680 = vmatprep.subr.mxu0 0.0
        %681 = vmatpush1.msra.mxu0 0.0
        %682 = vmatprep.subr.mxu0 0.0
        %683 = vmatpush1.msra.mxu0 0.0
        %684 = vmatprep.subr.mxu0 0.0
        %685 = vmatpush1.msra.mxu0 0.0
        %686 = vmatprep.subr.mxu0 0.0
        %687 = vmatpush1.msra.mxu0 0.0
        %688 = vmatprep.subr.mxu0 0.0
        %689 = vmatpush1.msra.mxu0 0.0
        %690 = vmatprep.subr.mxu0 0.0
        %691 = vmatpush1.msra.mxu0 0.0
        %692 = vmatprep.subr.mxu0 0.0
        %693 = vmatpush1.msra.mxu0 0.0
        %694 = vmatprep.subr.mxu0 0.0
        %695 = vmatpush1.msra.mxu0 0.0
        %696 = vmatprep.subr.mxu0 0.0
        %697 = vmatpush1.msra.mxu0 0.0
        %698 = vmatprep.subr.mxu0 0.0
        %699 = vmatpush1.msra.mxu0 0.0
        %700 = vmatprep.subr.mxu0 0.0
        %701 = vmatpush1.msra.mxu0 0.0
        %702 = vmatprep.subr.mxu0 0.0
        %703 = vmatpush1.msra.mxu0 0.0
        %704 = vmatprep.subr.mxu0 0.0
        %705 = vmatpush1.msra.mxu0 0.0
        %706 = vmatprep.subr.mxu0 0.0
        %707 = vmatpush1.msra.mxu0 0.0
        %708 = vmatprep.subr.mxu0 0.0
        %709 = vmatpush1.msra.mxu0 0.0
        %710 = vmatprep.subr.mxu0 0.0
        %711 = vmatpush1.msra.mxu0 0.0
        %712 = vmatprep.subr.mxu0 0.0
        %713 = vmatpush1.msra.mxu0 0.0
        %714 = vmatprep.subr.mxu0 0.0
        %715 = vmatpush1.msra.mxu0 0.0
        %716 = vmatprep.mubr.f32.mxu0 0.0
        %717 = vmatmul.mubr.f32.gmra.mrb[0].mxu0 %v650
        %v718 = vpop.f32.mrb[0].mxu0
        %v719 = vadd.f32 0.0, %v718
        %v720 = vpop.f32.mrb[0].mxu0
        %721 = vdwg.mxu0
        %v722 = vrcp.pop %v647
        %v723 = vmul.f32 %v722, 0.35355338
        %v724 = vmul.f32 %v719, %v723
        %s725 = scalar_lea.vmem %s3, 8
        %v726 = vld [vmem:[%s725] sm:$0xff]
        %v728 = vsel %vm313, %v724, 0
        %730 = vmatprep.subr.mxu0 0.0
        %731 = vmatpush1.msra.mxu0 %v726
        %732 = vmatprep.subr.mxu0 0.0
        %733 = vmatpush1.msra.mxu0 0.0
        %734 = vmatprep.subr.mxu0 0.0
        %735 = vmatpush1.msra.mxu0 0.0
        %736 = vmatprep.subr.mxu0 0.0
        %737 = vmatpush1.msra.mxu0 0.0
        %738 = vmatprep.subr.mxu0 0.0
        %739 = vmatpush1.msra.mxu0 0.0
        %740 = vmatprep.subr.mxu0 0.0
        %741 = vmatpush1.msra.mxu0 0.0
        %742 = vmatprep.subr.mxu0 0.0
        %743 = vmatpush1.msra.mxu0 0.0
        %744 = vmatprep.subr.mxu0 0.0
        %745 = vmatpush1.msra.mxu0 0.0
        %746 = vmatprep.subr.mxu0 0.0
        %747 = vmatpush1.msra.mxu0 0.0
        %748 = vmatprep.subr.mxu0 0.0
        %749 = vmatpush1.msra.mxu0 0.0
        %750 = vmatprep.subr.mxu0 0.0
        %751 = vmatpush1.msra.mxu0 0.0
        %752 = vmatprep.subr.mxu0 0.0
        %753 = vmatpush1.msra.mxu0 0.0
        %754 = vmatprep.subr.mxu0 0.0
        %755 = vmatpush1.msra.mxu0 0.0
        %756 = vmatprep.subr.mxu0 0.0
        %757 = vmatpush1.msra.mxu0 0.0
        %758 = vmatprep.subr.mxu0 0.0
        %759 = vmatpush1.msra.mxu0 0.0
        %760 = vmatprep.subr.mxu0 0.0
        %761 = vmatpush1.msra.mxu0 0.0
        %762 = vmatprep.subr.mxu0 0.0
        %763 = vmatpush1.msra.mxu0 0.0
        %764 = vmatprep.subr.mxu0 0.0
        %765 = vmatpush1.msra.mxu0 0.0
        %766 = vmatprep.subr.mxu0 0.0
        %767 = vmatpush1.msra.mxu0 0.0
        %768 = vmatprep.subr.mxu0 0.0
        %769 = vmatpush1.msra.mxu0 0.0
        %770 = vmatprep.subr.mxu0 0.0
        %771 = vmatpush1.msra.mxu0 0.0
        %772 = vmatprep.subr.mxu0 0.0
        %773 = vmatpush1.msra.mxu0 0.0
        %774 = vmatprep.subr.mxu0 0.0
        %775 = vmatpush1.msra.mxu0 0.0
        %776 = vmatprep.subr.mxu0 0.0
        %777 = vmatpush1.msra.mxu0 0.0
        %778 = vmatprep.subr.mxu0 0.0
        %779 = vmatpush1.msra.mxu0 0.0
        %780 = vmatprep.subr.mxu0 0.0
        %781 = vmatpush1.msra.mxu0 0.0
        %782 = vmatprep.subr.mxu0 0.0
        %783 = vmatpush1.msra.mxu0 0.0
        %784 = vmatprep.subr.mxu0 0.0
        %785 = vmatpush1.msra.mxu0 0.0
        %786 = vmatprep.subr.mxu0 0.0
        %787 = vmatpush1.msra.mxu0 0.0
        %788 = vmatprep.subr.mxu0 0.0
        %789 = vmatpush1.msra.mxu0 0.0
        %790 = vmatprep.subr.mxu0 0.0
        %791 = vmatpush1.msra.mxu0 0.0
        %792 = vmatprep.subr.mxu0 0.0
        %793 = vmatpush1.msra.mxu0 0.0
        %794 = vmatprep.mubr.f32.mxu0 0.0
        %795 = vmatmul.mubr.f32.gmra.mrb[0].mxu0 %v728
        %v796 = vpop.f32.mrb[0].mxu0
        %v797 = vadd.f32 0.0, %v796
        %v798 = vpop.f32.mrb[0].mxu0
        %799 = vdwg.mxu0
        %v801 = vsel %vm313, %v473, 0
        %803 = vmatprep.subr.mxu0 0.0
        %804 = vmatpush1.msra.mxu0 %v474
        %805 = vmatprep.subr.mxu0 0.0
        %806 = vmatpush1.msra.mxu0 0.0
        %807 = vmatprep.subr.mxu0 0.0
        %808 = vmatpush1.msra.mxu0 0.0
        %809 = vmatprep.subr.mxu0 0.0
        %810 = vmatpush1.msra.mxu0 0.0
        %811 = vmatprep.subr.mxu0 0.0
        %812 = vmatpush1.msra.mxu0 0.0
        %813 = vmatprep.subr.mxu0 0.0
        %814 = vmatpush1.msra.mxu0 0.0
        %815 = vmatprep.subr.mxu0 0.0
        %816 = vmatpush1.msra.mxu0 0.0
        %817 = vmatprep.subr.mxu0 0.0
        %818 = vmatpush1.msra.mxu0 0.0
        %819 = vmatprep.subr.mxu0 0.0
        %820 = vmatpush1.msra.mxu0 0.0
        %821 = vmatprep.subr.mxu0 0.0
        %822 = vmatpush1.msra.mxu0 0.0
        %823 = vmatprep.subr.mxu0 0.0
        %824 = vmatpush1.msra.mxu0 0.0
        %825 = vmatprep.subr.mxu0 0.0
        %826 = vmatpush1.msra.mxu0 0.0
        %827 = vmatprep.subr.mxu0 0.0
        %828 = vmatpush1.msra.mxu0 0.0
        %829 = vmatprep.subr.mxu0 0.0
        %830 = vmatpush1.msra.mxu0 0.0
        %831 = vmatprep.subr.mxu0 0.0
        %832 = vmatpush1.msra.mxu0 0.0
        %833 = vmatprep.subr.mxu0 0.0
        %834 = vmatpush1.msra.mxu0 0.0
        %835 = vmatprep.subr.mxu0 0.0
        %836 = vmatpush1.msra.mxu0 0.0
        %837 = vmatprep.subr.mxu0 0.0
        %838 = vmatpush1.msra.mxu0 0.0
        %839 = vmatprep.subr.mxu0 0.0
        %840 = vmatpush1.msra.mxu0 0.0
        %841 = vmatprep.subr.mxu0 0.0
        %842 = vmatpush1.msra.mxu0 0.0
        %843 = vmatprep.subr.mxu0 0.0
        %844 = vmatpush1.msra.mxu0 0.0
        %845 = vmatprep.subr.mxu0 0.0
        %846 = vmatpush1.msra.mxu0 0.0
        %847 = vmatprep.subr.mxu0 0.0
        %848 = vmatpush1.msra.mxu0 0.0
        %849 = vmatprep.subr.mxu0 0.0
        %850 = vmatpush1.msra.mxu0 0.0
        %851 = vmatprep.subr.mxu0 0.0
        %852 = vmatpush1.msra.mxu0 0.0
        %853 = vmatprep.subr.mxu0 0.0
        %854 = vmatpush1.msra.mxu0 0.0
        %855 = vmatprep.subr.mxu0 0.0
        %856 = vmatpush1.msra.mxu0 0.0
        %857 = vmatprep.subr.mxu0 0.0
        %858 = vmatpush1.msra.mxu0 0.0
        %859 = vmatprep.subr.mxu0 0.0
        %860 = vmatpush1.msra.mxu0 0.0
        %861 = vmatprep.subr.mxu0 0.0
        %862 = vmatpush1.msra.mxu0 0.0
        %863 = vmatprep.subr.mxu0 0.0
        %864 = vmatpush1.msra.mxu0 0.0
        %865 = vmatprep.subr.mxu0 0.0
        %866 = vmatpush1.msra.mxu0 0.0
        %867 = vmatprep.mubr.f32.mxu0 0.0
        %868 = vmatmul.mubr.f32.gmra.mrb[0].mxu0 %v801
        %v869 = vpop.f32.mrb[0].mxu0
        %v870 = vadd.f32 %v797, %v869
        %v871 = vpop.f32.mrb[0].mxu0
        %872 = vdwg.mxu0
        %s873 = scalar_lea.vmem %s1, 128
        %v874 = vld [vmem:[%s873] sm:$0xff]
        %v875 = vld [vmem:[%s873 + $0x8] sm:$0xff]
        %v876 = vld [vmem:[%s873 + $0x10] sm:$0xff]
        %v877 = vld [vmem:[%s873 + $0x18] sm:$0xff]
        %v878 = vld [vmem:[%s873 + $0x20] sm:$0xff]
        %v879 = vld [vmem:[%s873 + $0x28] sm:$0xff]
        %v880 = vld [vmem:[%s873 + $0x30] sm:$0xff]
        %v881 = vld [vmem:[%s873 + $0x38] sm:$0xff]
        %s882 = scalar_lea.vmem %s2, 2
        %v883 = vld [vmem:[%s882] sm:$0x1]
        %v885 = vlaneseq
        %v886 = vshrl.u32 %v885, 7
        %v887 = vsub.s32 0, %v886
        %v888 = vrot.slane %v883, %v887
        %890 = vmatprep.subr.mxu0 0.0
        %891 = vmatpush1.msra.mxu0 %v874
        %892 = vmatprep.subr.mxu0 0.0
        %893 = vmatpush1.msra.mxu0 %v875
        %894 = vmatprep.subr.mxu0 0.0
        %895 = vmatpush1.msra.mxu0 %v876
        %896 = vmatprep.subr.mxu0 0.0
        %897 = vmatpush1.msra.mxu0 %v877
        %898 = vmatprep.subr.mxu0 0.0
        %899 = vmatpush1.msra.mxu0 %v878
        %900 = vmatprep.subr.mxu0 0.0
        %901 = vmatpush1.msra.mxu0 %v879
        %902 = vmatprep.subr.mxu0 0.0
        %903 = vmatpush1.msra.mxu0 %v880
        %904 = vmatprep.subr.mxu0 0.0
        %905 = vmatpush1.msra.mxu0 %v881
        %906 = vmatprep.subr.mxu0 0.0
        %907 = vmatpush1.msra.mxu0 0.0
        %908 = vmatprep.subr.mxu0 0.0
        %909 = vmatpush1.msra.mxu0 0.0
        %910 = vmatprep.subr.mxu0 0.0
        %911 = vmatpush1.msra.mxu0 0.0
        %912 = vmatprep.subr.mxu0 0.0
        %913 = vmatpush1.msra.mxu0 0.0
        %914 = vmatprep.subr.mxu0 0.0
        %915 = vmatpush1.msra.mxu0 0.0
        %916 = vmatprep.subr.mxu0 0.0
        %917 = vmatpush1.msra.mxu0 0.0
        %918 = vmatprep.subr.mxu0 0.0
        %919 = vmatpush1.msra.mxu0 0.0
        %920 = vmatprep.subr.mxu0 0.0
        %921 = vmatpush1.msra.mxu0 0.0
        %922 = vmatprep.subr.mxu0 0.0
        %923 = vmatpush1.msra.mxu0 0.0
        %924 = vmatprep.subr.mxu0 0.0
        %925 = vmatpush1.msra.mxu0 0.0
        %926 = vmatprep.subr.mxu0 0.0
        %927 = vmatpush1.msra.mxu0 0.0
        %928 = vmatprep.subr.mxu0 0.0
        %929 = vmatpush1.msra.mxu0 0.0
        %930 = vmatprep.subr.mxu0 0.0
        %931 = vmatpush1.msra.mxu0 0.0
        %932 = vmatprep.subr.mxu0 0.0
        %933 = vmatpush1.msra.mxu0 0.0
        %934 = vmatprep.subr.mxu0 0.0
        %935 = vmatpush1.msra.mxu0 0.0
        %936 = vmatprep.subr.mxu0 0.0
        %937 = vmatpush1.msra.mxu0 0.0
        %938 = vmatprep.subr.mxu0 0.0
        %939 = vmatpush1.msra.mxu0 0.0
        %940 = vmatprep.subr.mxu0 0.0
        %941 = vmatpush1.msra.mxu0 0.0
        %942 = vmatprep.subr.mxu0 0.0
        %943 = vmatpush1.msra.mxu0 0.0
        %944 = vmatprep.subr.mxu0 0.0
        %945 = vmatpush1.msra.mxu0 0.0
        %946 = vmatprep.subr.mxu0 0.0
        %947 = vmatpush1.msra.mxu0 0.0
        %948 = vmatprep.subr.mxu0 0.0
        %949 = vmatpush1.msra.mxu0 0.0
        %950 = vmatprep.subr.mxu0 0.0
        %951 = vmatpush1.msra.mxu0 0.0
        %952 = vmatprep.subr.mxu0 0.0
        %953 = vmatpush1.msra.mxu0 0.0
        %954 = vmatprep.mubr.f32.mxu0 0.0
        %955 = vmatmul.mubr.f32.gmra.mrb[0].mxu0 %v238
        %v956 = vpop.f32.mrb[0].mxu0
        %v957 = vadd.f32 %v888, %v956
        %v958 = vpop.f32.mrb[0].mxu0
        %959 = vdwg.mxu0
        %961 = vrot.lane.b32.xlu0 %v957, 120
        %v962 = vpop.permute.xlu0 %961
        %v963 = vsel %vm313, %v957, 0
        %v965 = vsel %vm313, %v962, 0
        %967 = vmatprep.subr.mxu0 0.0
        %968 = vmatpush1.xpose.msra.mxu0 %v965
        %969 = vmatprep.subr.mxu0 0.0
        %970 = vmatpush1.xpose.msra.mxu0 0.0
        %971 = vmatprep.subr.mxu0 0.0
        %972 = vmatpush1.xpose.msra.mxu0 0.0
        %973 = vmatprep.subr.mxu0 0.0
        %974 = vmatpush1.xpose.msra.mxu0 0.0
        %975 = vmatprep.subr.mxu0 0.0
        %976 = vmatpush1.xpose.msra.mxu0 0.0
        %977 = vmatprep.subr.mxu0 0.0
        %978 = vmatpush1.xpose.msra.mxu0 0.0
        %979 = vmatprep.subr.mxu0 0.0
        %980 = vmatpush1.xpose.msra.mxu0 0.0
        %981 = vmatprep.subr.mxu0 0.0
        %982 = vmatpush1.xpose.msra.mxu0 0.0
        %983 = vmatprep.subr.mxu0 0.0
        %984 = vmatpush1.xpose.msra.mxu0 0.0
        %985 = vmatprep.subr.mxu0 0.0
        %986 = vmatpush1.xpose.msra.mxu0 0.0
        %987 = vmatprep.subr.mxu0 0.0
        %988 = vmatpush1.xpose.msra.mxu0 0.0
        %989 = vmatprep.subr.mxu0 0.0
        %990 = vmatpush1.xpose.msra.mxu0 0.0
        %991 = vmatprep.subr.mxu0 0.0
        %992 = vmatpush1.xpose.msra.mxu0 0.0
        %993 = vmatprep.subr.mxu0 0.0
        %994 = vmatpush1.xpose.msra.mxu0 0.0
        %995 = vmatprep.subr.mxu0 0.0
        %996 = vmatpush1.xpose.msra.mxu0 0.0
        %997 = vmatprep.subr.mxu0 0.0
        %998 = vmatpush1.xpose.msra.mxu0 0.0
        %999 = vmatprep.subr.mxu0 0.0
        %1000 = vmatpush1.xpose.msra.mxu0 0.0
        %1001 = vmatprep.subr.mxu0 0.0
        %1002 = vmatpush1.xpose.msra.mxu0 0.0
        %1003 = vmatprep.subr.mxu0 0.0
        %1004 = vmatpush1.xpose.msra.mxu0 0.0
        %1005 = vmatprep.subr.mxu0 0.0
        %1006 = vmatpush1.xpose.msra.mxu0 0.0
        %1007 = vmatprep.subr.mxu0 0.0
        %1008 = vmatpush1.xpose.msra.mxu0 0.0
        %1009 = vmatprep.subr.mxu0 0.0
        %1010 = vmatpush1.xpose.msra.mxu0 0.0
        %1011 = vmatprep.subr.mxu0 0.0
        %1012 = vmatpush1.xpose.msra.mxu0 0.0
        %1013 = vmatprep.subr.mxu0 0.0
        %1014 = vmatpush1.xpose.msra.mxu0 0.0
        %1015 = vmatprep.subr.mxu0 0.0
        %1016 = vmatpush1.xpose.msra.mxu0 0.0
        %1017 = vmatprep.subr.mxu0 0.0
        %1018 = vmatpush1.xpose.msra.mxu0 0.0
        %1019 = vmatprep.subr.mxu0 0.0
        %1020 = vmatpush1.xpose.msra.mxu0 0.0
        %1021 = vmatprep.subr.mxu0 0.0
        %1022 = vmatpush1.xpose.msra.mxu0 0.0
        %1023 = vmatprep.subr.mxu0 0.0
        %1024 = vmatpush1.xpose.msra.mxu0 0.0
        %1025 = vmatprep.subr.mxu0 0.0
        %1026 = vmatpush1.xpose.msra.mxu0 0.0
        %1027 = vmatprep.subr.mxu0 0.0
        %1028 = vmatpush1.xpose.msra.mxu0 0.0
        %1029 = vmatprep.subr.mxu0 0.0
        %1030 = vmatpush1.xpose.msra.mxu0 0.0
        %1031 = vmatprep.mubr.f32.mxu0 0.0
        %1032 = vmatmul.mubr.f32.gmra.mrb[0].mxu0 %v963
        %v1033 = vpop.f32.mrb[0].mxu0
        %v1034 = vadd.f32 0.0, %v1033
        %v1035 = vpop.f32.mrb[0].mxu0
        %1036 = vdwg.mxu0
        %v1037 = vsel %vm313, %v1034, -inf
        %1038 = vmax.xlane.f32.xlu0 %v1037
        %v1039 = vpop.xlane.xlu0 %1038
        %v1040 = vsub.f32 %v1034, %v1039
        %v1041 = vmul.f32 %v1040, 1.442695
        %v1042 = vpow.pop %v1041
        %v1043 = vsel %vm313, %v1042, 0.0
        %1044 = vadd.xlane.f32.xlu0 %v1043
        %v1045 = vpop.xlane.xlu0 %1044
        %v1048 = vsel %vm313, %v1042, 0
        %1050 = vmatprep.subr.mxu0 0.0
        %1051 = vmatpush1.msra.mxu0 %v962
        %1052 = vmatprep.subr.mxu0 0.0
        %1053 = vmatpush1.msra.mxu0 0.0
        %1054 = vmatprep.subr.mxu0 0.0
        %1055 = vmatpush1.msra.mxu0 0.0
        %1056 = vmatprep.subr.mxu0 0.0
        %1057 = vmatpush1.msra.mxu0 0.0
        %1058 = vmatprep.subr.mxu0 0.0
        %1059 = vmatpush1.msra.mxu0 0.0
        %1060 = vmatprep.subr.mxu0 0.0
        %1061 = vmatpush1.msra.mxu0 0.0
        %1062 = vmatprep.subr.mxu0 0.0
        %1063 = vmatpush1.msra.mxu0 0.0
        %1064 = vmatprep.subr.mxu0 0.0
        %1065 = vmatpush1.msra.mxu0 0.0
        %1066 = vmatprep.subr.mxu0 0.0
        %1067 = vmatpush1.msra.mxu0 0.0
        %1068 = vmatprep.subr.mxu0 0.0
        %1069 = vmatpush1.msra.mxu0 0.0
        %1070 = vmatprep.subr.mxu0 0.0
        %1071 = vmatpush1.msra.mxu0 0.0
        %1072 = vmatprep.subr.mxu0 0.0
        %1073 = vmatpush1.msra.mxu0 0.0
        %1074 = vmatprep.subr.mxu0 0.0
        %1075 = vmatpush1.msra.mxu0 0.0
        %1076 = vmatprep.subr.mxu0 0.0
        %1077 = vmatpush1.msra.mxu0 0.0
        %1078 = vmatprep.subr.mxu0 0.0
        %1079 = vmatpush1.msra.mxu0 0.0
        %1080 = vmatprep.subr.mxu0 0.0
        %1081 = vmatpush1.msra.mxu0 0.0
        %1082 = vmatprep.subr.mxu0 0.0
        %1083 = vmatpush1.msra.mxu0 0.0
        %1084 = vmatprep.subr.mxu0 0.0
        %1085 = vmatpush1.msra.mxu0 0.0
        %1086 = vmatprep.subr.mxu0 0.0
        %1087 = vmatpush1.msra.mxu0 0.0
        %1088 = vmatprep.subr.mxu0 0.0
        %1089 = vmatpush1.msra.mxu0 0.0
        %1090 = vmatprep.subr.mxu0 0.0
        %1091 = vmatpush1.msra.mxu0 0.0
        %1092 = vmatprep.subr.mxu0 0.0
        %1093 = vmatpush1.msra.mxu0 0.0
        %1094 = vmatprep.subr.mxu0 0.0
        %1095 = vmatpush1.msra.mxu0 0.0
        %1096 = vmatprep.subr.mxu0 0.0
        %1097 = vmatpush1.msra.mxu0 0.0
        %1098 = vmatprep.subr.mxu0 0.0
        %1099 = vmatpush1.msra.mxu0 0.0
        %1100 = vmatprep.subr.mxu0 0.0
        %1101 = vmatpush1.msra.mxu0 0.0
        %1102 = vmatprep.subr.mxu0 0.0
        %1103 = vmatpush1.msra.mxu0 0.0
        %1104 = vmatprep.subr.mxu0 0.0
        %1105 = vmatpush1.msra.mxu0 0.0
        %1106 = vmatprep.subr.mxu0 0.0
        %1107 = vmatpush1.msra.mxu0 0.0
        %1108 = vmatprep.subr.mxu0 0.0
        %1109 = vmatpush1.msra.mxu0 0.0
        %1110 = vmatprep.subr.mxu0 0.0
        %1111 = vmatpush1.msra.mxu0 0.0
        %1112 = vmatprep.subr.mxu0 0.0
        %1113 = vmatpush1.msra.mxu0 0.0
        %1114 = vmatprep.mubr.f32.mxu0 0.0
        %1115 = vmatmul.mubr.f32.gmra.mrb[0].mxu0 %v1048
        %v1116 = vpop.f32.mrb[0].mxu0
        %v1117 = vadd.f32 0.0, %v1116
        %v1118 = vpop.f32.mrb[0].mxu0
        %1119 = vdwg.mxu0
        %v1120 = vrcp.pop %v1045
        %v1121 = vmul.f32 %v1120, 0.35355338
        %v1122 = vmul.f32 %v1117, %v1121
        %s1123 = scalar_lea.vmem %s3, 16
        %v1124 = vld [vmem:[%s1123] sm:$0xff]
        %v1126 = vsel %vm313, %v1122, 0
        %1128 = vmatprep.subr.mxu0 0.0
        %1129 = vmatpush1.msra.mxu0 %v1124
        %1130 = vmatprep.subr.mxu0 0.0
        %1131 = vmatpush1.msra.mxu0 0.0
        %1132 = vmatprep.subr.mxu0 0.0
        %1133 = vmatpush1.msra.mxu0 0.0
        %1134 = vmatprep.subr.mxu0 0.0
        %1135 = vmatpush1.msra.mxu0 0.0
        %1136 = vmatprep.subr.mxu0 0.0
        %1137 = vmatpush1.msra.mxu0 0.0
        %1138 = vmatprep.subr.mxu0 0.0
        %1139 = vmatpush1.msra.mxu0 0.0
        %1140 = vmatprep.subr.mxu0 0.0
        %1141 = vmatpush1.msra.mxu0 0.0
        %1142 = vmatprep.subr.mxu0 0.0
        %1143 = vmatpush1.msra.mxu0 0.0
        %1144 = vmatprep.subr.mxu0 0.0
        %1145 = vmatpush1.msra.mxu0 0.0
        %1146 = vmatprep.subr.mxu0 0.0
        %1147 = vmatpush1.msra.mxu0 0.0
        %1148 = vmatprep.subr.mxu0 0.0
        %1149 = vmatpush1.msra.mxu0 0.0
        %1150 = vmatprep.subr.mxu0 0.0
        %1151 = vmatpush1.msra.mxu0 0.0
        %1152 = vmatprep.subr.mxu0 0.0
        %1153 = vmatpush1.msra.mxu0 0.0
        %1154 = vmatprep.subr.mxu0 0.0
        %1155 = vmatpush1.msra.mxu0 0.0
        %1156 = vmatprep.subr.mxu0 0.0
        %1157 = vmatpush1.msra.mxu0 0.0
        %1158 = vmatprep.subr.mxu0 0.0
        %1159 = vmatpush1.msra.mxu0 0.0
        %1160 = vmatprep.subr.mxu0 0.0
        %1161 = vmatpush1.msra.mxu0 0.0
        %1162 = vmatprep.subr.mxu0 0.0
        %1163 = vmatpush1.msra.mxu0 0.0
        %1164 = vmatprep.subr.mxu0 0.0
        %1165 = vmatpush1.msra.mxu0 0.0
        %1166 = vmatprep.subr.mxu0 0.0
        %1167 = vmatpush1.msra.mxu0 0.0
        %1168 = vmatprep.subr.mxu0 0.0
        %1169 = vmatpush1.msra.mxu0 0.0
        %1170 = vmatprep.subr.mxu0 0.0
        %1171 = vmatpush1.msra.mxu0 0.0
        %1172 = vmatprep.subr.mxu0 0.0
        %1173 = vmatpush1.msra.mxu0 0.0
        %1174 = vmatprep.subr.mxu0 0.0
        %1175 = vmatpush1.msra.mxu0 0.0
        %1176 = vmatprep.subr.mxu0 0.0
        %1177 = vmatpush1.msra.mxu0 0.0
        %1178 = vmatprep.subr.mxu0 0.0
        %1179 = vmatpush1.msra.mxu0 0.0
        %1180 = vmatprep.subr.mxu0 0.0
        %1181 = vmatpush1.msra.mxu0 0.0
        %1182 = vmatprep.subr.mxu0 0.0
        %1183 = vmatpush1.msra.mxu0 0.0
        %1184 = vmatprep.subr.mxu0 0.0
        %1185 = vmatpush1.msra.mxu0 0.0
        %1186 = vmatprep.subr.mxu0 0.0
        %1187 = vmatpush1.msra.mxu0 0.0
        %1188 = vmatprep.subr.mxu0 0.0
        %1189 = vmatpush1.msra.mxu0 0.0
        %1190 = vmatprep.subr.mxu0 0.0
        %1191 = vmatpush1.msra.mxu0 0.0
        %1192 = vmatprep.mubr.f32.mxu0 0.0
        %1193 = vmatmul.mubr.f32.gmra.mrb[0].mxu0 %v1126
        %v1194 = vpop.f32.mrb[0].mxu0
        %v1195 = vadd.f32 0.0, %v1194
        %v1196 = vpop.f32.mrb[0].mxu0
        %1197 = vdwg.mxu0
        %v1198 = vadd.f32 %v870, %v1195
        %s1199 = scalar_lea.vmem %s1, 192
        %v1200 = vld [vmem:[%s1199] sm:$0xff]
        %v1201 = vld [vmem:[%s1199 + $0x8] sm:$0xff]
        %v1202 = vld [vmem:[%s1199 + $0x10] sm:$0xff]
        %v1203 = vld [vmem:[%s1199 + $0x18] sm:$0xff]
        %v1204 = vld [vmem:[%s1199 + $0x20] sm:$0xff]
        %v1205 = vld [vmem:[%s1199 + $0x28] sm:$0xff]
        %v1206 = vld [vmem:[%s1199 + $0x30] sm:$0xff]
        %v1207 = vld [vmem:[%s1199 + $0x38] sm:$0xff]
        %s1208 = scalar_lea.vmem %s2, 3
        %v1209 = vld [vmem:[%s1208] sm:$0x1]
        %v1211 = vlaneseq
        %v1212 = vshrl.u32 %v1211, 7
        %v1213 = vsub.s32 0, %v1212
        %v1214 = vrot.slane %v1209, %v1213
        %1216 = vmatprep.subr.mxu0 0.0
        %1217 = vmatpush1.msra.mxu0 %v1200
        %1218 = vmatprep.subr.mxu0 0.0
        %1219 = vmatpush1.msra.mxu0 %v1201
        %1220 = vmatprep.subr.mxu0 0.0
        %1221 = vmatpush1.msra.mxu0 %v1202
        %1222 = vmatprep.subr.mxu0 0.0
        %1223 = vmatpush1.msra.mxu0 %v1203
        %1224 = vmatprep.subr.mxu0 0.0
        %1225 = vmatpush1.msra.mxu0 %v1204
        %1226 = vmatprep.subr.mxu0 0.0
        %1227 = vmatpush1.msra.mxu0 %v1205
        %1228 = vmatprep.subr.mxu0 0.0
        %1229 = vmatpush1.msra.mxu0 %v1206
        %1230 = vmatprep.subr.mxu0 0.0
        %1231 = vmatpush1.msra.mxu0 %v1207
        %1232 = vmatprep.subr.mxu0 0.0
        %1233 = vmatpush1.msra.mxu0 0.0
        %1234 = vmatprep.subr.mxu0 0.0
        %1235 = vmatpush1.msra.mxu0 0.0
        %1236 = vmatprep.subr.mxu0 0.0
        %1237 = vmatpush1.msra.mxu0 0.0
        %1238 = vmatprep.subr.mxu0 0.0
        %1239 = vmatpush1.msra.mxu0 0.0
        %1240 = vmatprep.subr.mxu0 0.0
        %1241 = vmatpush1.msra.mxu0 0.0
        %1242 = vmatprep.subr.mxu0 0.0
        %1243 = vmatpush1.msra.mxu0 0.0
        %1244 = vmatprep.subr.mxu0 0.0
        %1245 = vmatpush1.msra.mxu0 0.0
        %1246 = vmatprep.subr.mxu0 0.0
        %1247 = vmatpush1.msra.mxu0 0.0
        %1248 = vmatprep.subr.mxu0 0.0
        %1249 = vmatpush1.msra.mxu0 0.0
        %1250 = vmatprep.subr.mxu0 0.0
        %1251 = vmatpush1.msra.mxu0 0.0
        %1252 = vmatprep.subr.mxu0 0.0
        %1253 = vmatpush1.msra.mxu0 0.0
        %1254 = vmatprep.subr.mxu0 0.0
        %1255 = vmatpush1.msra.mxu0 0.0
        %1256 = vmatprep.subr.mxu0 0.0
        %1257 = vmatpush1.msra.mxu0 0.0
        %1258 = vmatprep.subr.mxu0 0.0
        %1259 = vmatpush1.msra.mxu0 0.0
        %1260 = vmatprep.subr.mxu0 0.0
        %1261 = vmatpush1.msra.mxu0 0.0
        %1262 = vmatprep.subr.mxu0 0.0
        %1263 = vmatpush1.msra.mxu0 0.0
        %1264 = vmatprep.subr.mxu0 0.0
        %1265 = vmatpush1.msra.mxu0 0.0
        %1266 = vmatprep.subr.mxu0 0.0
        %1267 = vmatpush1.msra.mxu0 0.0
        %1268 = vmatprep.subr.mxu0 0.0
        %1269 = vmatpush1.msra.mxu0 0.0
        %1270 = vmatprep.subr.mxu0 0.0
        %1271 = vmatpush1.msra.mxu0 0.0
        %1272 = vmatprep.subr.mxu0 0.0
        %1273 = vmatpush1.msra.mxu0 0.0
        %1274 = vmatprep.subr.mxu0 0.0
        %1275 = vmatpush1.msra.mxu0 0.0
        %1276 = vmatprep.subr.mxu0 0.0
        %1277 = vmatpush1.msra.mxu0 0.0
        %1278 = vmatprep.subr.mxu0 0.0
        %1279 = vmatpush1.msra.mxu0 0.0
        %1280 = vmatprep.mubr.f32.mxu0 0.0
        %1281 = vmatmul.mubr.f32.gmra.mrb[0].mxu0 %v238
        %v1282 = vpop.f32.mrb[0].mxu0
        %v1283 = vadd.f32 %v1214, %v1282
        %v1284 = vpop.f32.mrb[0].mxu0
        %1285 = vdwg.mxu0
        %1287 = vrot.lane.b32.xlu0 %v1283, 120
        %v1288 = vpop.permute.xlu0 %1287
        %v1289 = vsel %vm313, %v1283, 0
        %v1291 = vsel %vm313, %v1288, 0
        %1293 = vmatprep.subr.mxu0 0.0
        %1294 = vmatpush1.xpose.msra.mxu0 %v1291
        %1295 = vmatprep.subr.mxu0 0.0
        %1296 = vmatpush1.xpose.msra.mxu0 0.0
        %1297 = vmatprep.subr.mxu0 0.0
        %1298 = vmatpush1.xpose.msra.mxu0 0.0
        %1299 = vmatprep.subr.mxu0 0.0
        %1300 = vmatpush1.xpose.msra.mxu0 0.0
        %1301 = vmatprep.subr.mxu0 0.0
        %1302 = vmatpush1.xpose.msra.mxu0 0.0
        %1303 = vmatprep.subr.mxu0 0.0
        %1304 = vmatpush1.xpose.msra.mxu0 0.0
        %1305 = vmatprep.subr.mxu0 0.0
        %1306 = vmatpush1.xpose.msra.mxu0 0.0
        %1307 = vmatprep.subr.mxu0 0.0
        %1308 = vmatpush1.xpose.msra.mxu0 0.0
        %1309 = vmatprep.subr.mxu0 0.0
        %1310 = vmatpush1.xpose.msra.mxu0 0.0
        %1311 = vmatprep.subr.mxu0 0.0
        %1312 = vmatpush1.xpose.msra.mxu0 0.0
        %1313 = vmatprep.subr.mxu0 0.0
        %1314 = vmatpush1.xpose.msra.mxu0 0.0
        %1315 = vmatprep.subr.mxu0 0.0
        %1316 = vmatpush1.xpose.msra.mxu0 0.0
        %1317 = vmatprep.subr.mxu0 0.0
        %1318 = vmatpush1.xpose.msra.mxu0 0.0
        %1319 = vmatprep.subr.mxu0 0.0
        %1320 = vmatpush1.xpose.msra.mxu0 0.0
        %1321 = vmatprep.subr.mxu0 0.0
        %1322 = vmatpush1.xpose.msra.mxu0 0.0
        %1323 = vmatprep.subr.mxu0 0.0
        %1324 = vmatpush1.xpose.msra.mxu0 0.0
        %1325 = vmatprep.subr.mxu0 0.0
        %1326 = vmatpush1.xpose.msra.mxu0 0.0
        %1327 = vmatprep.subr.mxu0 0.0
        %1328 = vmatpush1.xpose.msra.mxu0 0.0
        %1329 = vmatprep.subr.mxu0 0.0
        %1330 = vmatpush1.xpose.msra.mxu0 0.0
        %1331 = vmatprep.subr.mxu0 0.0
        %1332 = vmatpush1.xpose.msra.mxu0 0.0
        %1333 = vmatprep.subr.mxu0 0.0
        %1334 = vmatpush1.xpose.msra.mxu0 0.0
        %1335 = vmatprep.subr.mxu0 0.0
        %1336 = vmatpush1.xpose.msra.mxu0 0.0
        %1337 = vmatprep.subr.mxu0 0.0
        %1338 = vmatpush1.xpose.msra.mxu0 0.0
        %1339 = vmatprep.subr.mxu0 0.0
        %1340 = vmatpush1.xpose.msra.mxu0 0.0
        %1341 = vmatprep.subr.mxu0 0.0
        %1342 = vmatpush1.xpose.msra.mxu0 0.0
        %1343 = vmatprep.subr.mxu0 0.0
        %1344 = vmatpush1.xpose.msra.mxu0 0.0
        %1345 = vmatprep.subr.mxu0 0.0
        %1346 = vmatpush1.xpose.msra.mxu0 0.0
        %1347 = vmatprep.subr.mxu0 0.0
        %1348 = vmatpush1.xpose.msra.mxu0 0.0
        %1349 = vmatprep.subr.mxu0 0.0
        %1350 = vmatpush1.xpose.msra.mxu0 0.0
        %1351 = vmatprep.subr.mxu0 0.0
        %1352 = vmatpush1.xpose.msra.mxu0 0.0
        %1353 = vmatprep.subr.mxu0 0.0
        %1354 = vmatpush1.xpose.msra.mxu0 0.0
        %1355 = vmatprep.subr.mxu0 0.0
        %1356 = vmatpush1.xpose.msra.mxu0 0.0
        %1357 = vmatprep.mubr.f32.mxu0 0.0
        %1358 = vmatmul.mubr.f32.gmra.mrb[0].mxu0 %v1289
        %v1359 = vpop.f32.mrb[0].mxu0
        %v1360 = vadd.f32 0.0, %v1359
        %v1361 = vpop.f32.mrb[0].mxu0
        %1362 = vdwg.mxu0
        %v1363 = vsel %vm313, %v1360, -inf
        %1364 = vmax.xlane.f32.xlu0 %v1363
        %v1365 = vpop.xlane.xlu0 %1364
        %v1366 = vsub.f32 %v1360, %v1365
        %v1367 = vmul.f32 %v1366, 1.442695
        %v1368 = vpow.pop %v1367
        %v1369 = vsel %vm313, %v1368, 0.0
        %1370 = vadd.xlane.f32.xlu0 %v1369
        %v1371 = vpop.xlane.xlu0 %1370
        %v1374 = vsel %vm313, %v1368, 0
        %1376 = vmatprep.subr.mxu0 0.0
        %1377 = vmatpush1.msra.mxu0 %v1288
        %1378 = vmatprep.subr.mxu0 0.0
        %1379 = vmatpush1.msra.mxu0 0.0
        %1380 = vmatprep.subr.mxu0 0.0
        %1381 = vmatpush1.msra.mxu0 0.0
        %1382 = vmatprep.subr.mxu0 0.0
        %1383 = vmatpush1.msra.mxu0 0.0
        %1384 = vmatprep.subr.mxu0 0.0
        %1385 = vmatpush1.msra.mxu0 0.0
        %1386 = vmatprep.subr.mxu0 0.0
        %1387 = vmatpush1.msra.mxu0 0.0
        %1388 = vmatprep.subr.mxu0 0.0
        %1389 = vmatpush1.msra.mxu0 0.0
        %1390 = vmatprep.subr.mxu0 0.0
        %1391 = vmatpush1.msra.mxu0 0.0
        %1392 = vmatprep.subr.mxu0 0.0
        %1393 = vmatpush1.msra.mxu0 0.0
        %1394 = vmatprep.subr.mxu0 0.0
        %1395 = vmatpush1.msra.mxu0 0.0
        %1396 = vmatprep.subr.mxu0 0.0
        %1397 = vmatpush1.msra.mxu0 0.0
        %1398 = vmatprep.subr.mxu0 0.0
        %1399 = vmatpush1.msra.mxu0 0.0
        %1400 = vmatprep.subr.mxu0 0.0
        %1401 = vmatpush1.msra.mxu0 0.0
        %1402 = vmatprep.subr.mxu0 0.0
        %1403 = vmatpush1.msra.mxu0 0.0
        %1404 = vmatprep.subr.mxu0 0.0
        %1405 = vmatpush1.msra.mxu0 0.0
        %1406 = vmatprep.subr.mxu0 0.0
        %1407 = vmatpush1.msra.mxu0 0.0
        %1408 = vmatprep.subr.mxu0 0.0
        %1409 = vmatpush1.msra.mxu0 0.0
        %1410 = vmatprep.subr.mxu0 0.0
        %1411 = vmatpush1.msra.mxu0 0.0
        %1412 = vmatprep.subr.mxu0 0.0
        %1413 = vmatpush1.msra.mxu0 0.0
        %1414 = vmatprep.subr.mxu0 0.0
        %1415 = vmatpush1.msra.mxu0 0.0
        %1416 = vmatprep.subr.mxu0 0.0
        %1417 = vmatpush1.msra.mxu0 0.0
        %1418 = vmatprep.subr.mxu0 0.0
        %1419 = vmatpush1.msra.mxu0 0.0
        %1420 = vmatprep.subr.mxu0 0.0
        %1421 = vmatpush1.msra.mxu0 0.0
        %1422 = vmatprep.subr.mxu0 0.0
        %1423 = vmatpush1.msra.mxu0 0.0
        %1424 = vmatprep.subr.mxu0 0.0
        %1425 = vmatpush1.msra.mxu0 0.0
        %1426 = vmatprep.subr.mxu0 0.0
        %1427 = vmatpush1.msra.mxu0 0.0
        %1428 = vmatprep.subr.mxu0 0.0
        %1429 = vmatpush1.msra.mxu0 0.0
        %1430 = vmatprep.subr.mxu0 0.0
        %1431 = vmatpush1.msra.mxu0 0.0
        %1432 = vmatprep.subr.mxu0 0.0
        %1433 = vmatpush1.msra.mxu0 0.0
        %1434 = vmatprep.subr.mxu0 0.0
        %1435 = vmatpush1.msra.mxu0 0.0
        %1436 = vmatprep.subr.mxu0 0.0
        %1437 = vmatpush1.msra.mxu0 0.0
        %1438 = vmatprep.subr.mxu0 0.0
        %1439 = vmatpush1.msra.mxu0 0.0
        %1440 = vmatprep.mubr.f32.mxu0 0.0
        %1441 = vmatmul.mubr.f32.gmra.mrb[0].mxu0 %v1374
        %v1442 = vpop.f32.mrb[0].mxu0
        %v1443 = vadd.f32 0.0, %v1442
        %v1444 = vpop.f32.mrb[0].mxu0
        %1445 = vdwg.mxu0
        %v1446 = vrcp.pop %v1371
        %v1447 = vmul.f32 %v1446, 0.35355338
        %v1448 = vmul.f32 %v1443, %v1447
        %s1449 = scalar_lea.vmem %s3, 24
        %v1450 = vld [vmem:[%s1449] sm:$0xff]
        %v1452 = vsel %vm313, %v1448, 0
        %1454 = vmatprep.subr.mxu0 0.0
        %1455 = vmatpush1.msra.mxu0 %v1450
        %1456 = vmatprep.subr.mxu0 0.0
        %1457 = vmatpush1.msra.mxu0 0.0
        %1458 = vmatprep.subr.mxu0 0.0
        %1459 = vmatpush1.msra.mxu0 0.0
        %1460 = vmatprep.subr.mxu0 0.0
        %1461 = vmatpush1.msra.mxu0 0.0
        %1462 = vmatprep.subr.mxu0 0.0
        %1463 = vmatpush1.msra.mxu0 0.0
        %1464 = vmatprep.subr.mxu0 0.0
        %1465 = vmatpush1.msra.mxu0 0.0
        %1466 = vmatprep.subr.mxu0 0.0
        %1467 = vmatpush1.msra.mxu0 0.0
        %1468 = vmatprep.subr.mxu0 0.0
        %1469 = vmatpush1.msra.mxu0 0.0
        %1470 = vmatprep.subr.mxu0 0.0
        %1471 = vmatpush1.msra.mxu0 0.0
        %1472 = vmatprep.subr.mxu0 0.0
        %1473 = vmatpush1.msra.mxu0 0.0
        %1474 = vmatprep.subr.mxu0 0.0
        %1475 = vmatpush1.msra.mxu0 0.0
        %1476 = vmatprep.subr.mxu0 0.0
        %1477 = vmatpush1.msra.mxu0 0.0
        %1478 = vmatprep.subr.mxu0 0.0
        %1479 = vmatpush1.msra.mxu0 0.0
        %1480 = vmatprep.subr.mxu0 0.0
        %1481 = vmatpush1.msra.mxu0 0.0
        %1482 = vmatprep.subr.mxu0 0.0
        %1483 = vmatpush1.msra.mxu0 0.0
        %1484 = vmatprep.subr.mxu0 0.0
        %1485 = vmatpush1.msra.mxu0 0.0
        %1486 = vmatprep.subr.mxu0 0.0
        %1487 = vmatpush1.msra.mxu0 0.0
        %1488 = vmatprep.subr.mxu0 0.0
        %1489 = vmatpush1.msra.mxu0 0.0
        %1490 = vmatprep.subr.mxu0 0.0
        %1491 = vmatpush1.msra.mxu0 0.0
        %1492 = vmatprep.subr.mxu0 0.0
        %1493 = vmatpush1.msra.mxu0 0.0
        %1494 = vmatprep.subr.mxu0 0.0
        %1495 = vmatpush1.msra.mxu0 0.0
        %1496 = vmatprep.subr.mxu0 0.0
        %1497 = vmatpush1.msra.mxu0 0.0
        %1498 = vmatprep.subr.mxu0 0.0
        %1499 = vmatpush1.msra.mxu0 0.0
        %1500 = vmatprep.subr.mxu0 0.0
        %1501 = vmatpush1.msra.mxu0 0.0
        %1502 = vmatprep.subr.mxu0 0.0
        %1503 = vmatpush1.msra.mxu0 0.0
        %1504 = vmatprep.subr.mxu0 0.0
        %1505 = vmatpush1.msra.mxu0 0.0
        %1506 = vmatprep.subr.mxu0 0.0
        %1507 = vmatpush1.msra.mxu0 0.0
        %1508 = vmatprep.subr.mxu0 0.0
        %1509 = vmatpush1.msra.mxu0 0.0
        %1510 = vmatprep.subr.mxu0 0.0
        %1511 = vmatpush1.msra.mxu0 0.0
        %1512 = vmatprep.subr.mxu0 0.0
        %1513 = vmatpush1.msra.mxu0 0.0
        %1514 = vmatprep.subr.mxu0 0.0
        %1515 = vmatpush1.msra.mxu0 0.0
        %1516 = vmatprep.subr.mxu0 0.0
        %1517 = vmatpush1.msra.mxu0 0.0
        %1518 = vmatprep.mubr.f32.mxu0 0.0
        %1519 = vmatmul.mubr.f32.gmra.mrb[0].mxu0 %v1452
        %v1520 = vpop.f32.mrb[0].mxu0
        %v1521 = vadd.f32 0.0, %v1520
        %v1522 = vpop.f32.mrb[0].mxu0
        %1523 = vdwg.mxu0
        %v1524 = vadd.f32 %v1198, %v1521
        %s1525 = scalar_lea.vmem %s1, 256
        %v1526 = vld [vmem:[%s1525] sm:$0xff]
        %v1527 = vld [vmem:[%s1525 + $0x8] sm:$0xff]
        %v1528 = vld [vmem:[%s1525 + $0x10] sm:$0xff]
        %v1529 = vld [vmem:[%s1525 + $0x18] sm:$0xff]
        %v1530 = vld [vmem:[%s1525 + $0x20] sm:$0xff]
        %v1531 = vld [vmem:[%s1525 + $0x28] sm:$0xff]
        %v1532 = vld [vmem:[%s1525 + $0x30] sm:$0xff]
        %v1533 = vld [vmem:[%s1525 + $0x38] sm:$0xff]
        %s1534 = scalar_lea.vmem %s2, 4
        %v1535 = vld [vmem:[%s1534] sm:$0x1]
        %v1537 = vlaneseq
        %v1538 = vshrl.u32 %v1537, 7
        %v1539 = vsub.s32 0, %v1538
        %v1540 = vrot.slane %v1535, %v1539
        %1542 = vmatprep.subr.mxu0 0.0
        %1543 = vmatpush1.msra.mxu0 %v1526
        %1544 = vmatprep.subr.mxu0 0.0
        %1545 = vmatpush1.msra.mxu0 %v1527
        %1546 = vmatprep.subr.mxu0 0.0
        %1547 = vmatpush1.msra.mxu0 %v1528
        %1548 = vmatprep.subr.mxu0 0.0
        %1549 = vmatpush1.msra.mxu0 %v1529
        %1550 = vmatprep.subr.mxu0 0.0
        %1551 = vmatpush1.msra.mxu0 %v1530
        %1552 = vmatprep.subr.mxu0 0.0
        %1553 = vmatpush1.msra.mxu0 %v1531
        %1554 = vmatprep.subr.mxu0 0.0
        %1555 = vmatpush1.msra.mxu0 %v1532
        %1556 = vmatprep.subr.mxu0 0.0
        %1557 = vmatpush1.msra.mxu0 %v1533
        %1558 = vmatprep.subr.mxu0 0.0
        %1559 = vmatpush1.msra.mxu0 0.0
        %1560 = vmatprep.subr.mxu0 0.0
        %1561 = vmatpush1.msra.mxu0 0.0
        %1562 = vmatprep.subr.mxu0 0.0
        %1563 = vmatpush1.msra.mxu0 0.0
        %1564 = vmatprep.subr.mxu0 0.0
        %1565 = vmatpush1.msra.mxu0 0.0
        %1566 = vmatprep.subr.mxu0 0.0
        %1567 = vmatpush1.msra.mxu0 0.0
        %1568 = vmatprep.subr.mxu0 0.0
        %1569 = vmatpush1.msra.mxu0 0.0
        %1570 = vmatprep.subr.mxu0 0.0
        %1571 = vmatpush1.msra.mxu0 0.0
        %1572 = vmatprep.subr.mxu0 0.0
        %1573 = vmatpush1.msra.mxu0 0.0
        %1574 = vmatprep.subr.mxu0 0.0
        %1575 = vmatpush1.msra.mxu0 0.0
        %1576 = vmatprep.subr.mxu0 0.0
        %1577 = vmatpush1.msra.mxu0 0.0
        %1578 = vmatprep.subr.mxu0 0.0
        %1579 = vmatpush1.msra.mxu0 0.0
        %1580 = vmatprep.subr.mxu0 0.0
        %1581 = vmatpush1.msra.mxu0 0.0
        %1582 = vmatprep.subr.mxu0 0.0
        %1583 = vmatpush1.msra.mxu0 0.0
        %1584 = vmatprep.subr.mxu0 0.0
        %1585 = vmatpush1.msra.mxu0 0.0
        %1586 = vmatprep.subr.mxu0 0.0
        %1587 = vmatpush1.msra.mxu0 0.0
        %1588 = vmatprep.subr.mxu0 0.0
        %1589 = vmatpush1.msra.mxu0 0.0
        %1590 = vmatprep.subr.mxu0 0.0
        %1591 = vmatpush1.msra.mxu0 0.0
        %1592 = vmatprep.subr.mxu0 0.0
        %1593 = vmatpush1.msra.mxu0 0.0
        %1594 = vmatprep.subr.mxu0 0.0
        %1595 = vmatpush1.msra.mxu0 0.0
        %1596 = vmatprep.subr.mxu0 0.0
        %1597 = vmatpush1.msra.mxu0 0.0
        %1598 = vmatprep.subr.mxu0 0.0
        %1599 = vmatpush1.msra.mxu0 0.0
        %1600 = vmatprep.subr.mxu0 0.0
        %1601 = vmatpush1.msra.mxu0 0.0
        %1602 = vmatprep.subr.mxu0 0.0
        %1603 = vmatpush1.msra.mxu0 0.0
        %1604 = vmatprep.subr.mxu0 0.0
        %1605 = vmatpush1.msra.mxu0 0.0
        %1606 = vmatprep.mubr.f32.mxu0 0.0
        %1607 = vmatmul.mubr.f32.gmra.mrb[0].mxu0 %v238
        %v1608 = vpop.f32.mrb[0].mxu0
        %v1609 = vadd.f32 %v1540, %v1608
        %v1610 = vpop.f32.mrb[0].mxu0
        %1611 = vdwg.mxu0
        %1613 = vrot.lane.b32.xlu0 %v1609, 120
        %v1614 = vpop.permute.xlu0 %1613
        %v1615 = vsel %vm313, %v1609, 0
        %v1617 = vsel %vm313, %v1614, 0
        %1619 = vmatprep.subr.mxu0 0.0
        %1620 = vmatpush1.xpose.msra.mxu0 %v1617
        %1621 = vmatprep.subr.mxu0 0.0
        %1622 = vmatpush1.xpose.msra.mxu0 0.0
        %1623 = vmatprep.subr.mxu0 0.0
        %1624 = vmatpush1.xpose.msra.mxu0 0.0
        %1625 = vmatprep.subr.mxu0 0.0
        %1626 = vmatpush1.xpose.msra.mxu0 0.0
        %1627 = vmatprep.subr.mxu0 0.0
        %1628 = vmatpush1.xpose.msra.mxu0 0.0
        %1629 = vmatprep.subr.mxu0 0.0
        %1630 = vmatpush1.xpose.msra.mxu0 0.0
        %1631 = vmatprep.subr.mxu0 0.0
        %1632 = vmatpush1.xpose.msra.mxu0 0.0
        %1633 = vmatprep.subr.mxu0 0.0
        %1634 = vmatpush1.xpose.msra.mxu0 0.0
        %1635 = vmatprep.subr.mxu0 0.0
        %1636 = vmatpush1.xpose.msra.mxu0 0.0
        %1637 = vmatprep.subr.mxu0 0.0
        %1638 = vmatpush1.xpose.msra.mxu0 0.0
        %1639 = vmatprep.subr.mxu0 0.0
        %1640 = vmatpush1.xpose.msra.mxu0 0.0
        %1641 = vmatprep.subr.mxu0 0.0
        %1642 = vmatpush1.xpose.msra.mxu0 0.0
        %1643 = vmatprep.subr.mxu0 0.0
        %1644 = vmatpush1.xpose.msra.mxu0 0.0
        %1645 = vmatprep.subr.mxu0 0.0
        %1646 = vmatpush1.xpose.msra.mxu0 0.0
        %1647 = vmatprep.subr.mxu0 0.0
        %1648 = vmatpush1.xpose.msra.mxu0 0.0
        %1649 = vmatprep.subr.mxu0 0.0
        %1650 = vmatpush1.xpose.msra.mxu0 0.0
        %1651 = vmatprep.subr.mxu0 0.0
        %1652 = vmatpush1.xpose.msra.mxu0 0.0
        %1653 = vmatprep.subr.mxu0 0.0
        %1654 = vmatpush1.xpose.msra.mxu0 0.0
        %1655 = vmatprep.subr.mxu0 0.0
        %1656 = vmatpush1.xpose.msra.mxu0 0.0
        %1657 = vmatprep.subr.mxu0 0.0
        %1658 = vmatpush1.xpose.msra.mxu0 0.0
        %1659 = vmatprep.subr.mxu0 0.0
        %1660 = vmatpush1.xpose.msra.mxu0 0.0
        %1661 = vmatprep.subr.mxu0 0.0
        %1662 = vmatpush1.xpose.msra.mxu0 0.0
        %1663 = vmatprep.subr.mxu0 0.0
        %1664 = vmatpush1.xpose.msra.mxu0 0.0
        %1665 = vmatprep.subr.mxu0 0.0
        %1666 = vmatpush1.xpose.msra.mxu0 0.0
        %1667 = vmatprep.subr.mxu0 0.0
        %1668 = vmatpush1.xpose.msra.mxu0 0.0
        %1669 = vmatprep.subr.mxu0 0.0
        %1670 = vmatpush1.xpose.msra.mxu0 0.0
        %1671 = vmatprep.subr.mxu0 0.0
        %1672 = vmatpush1.xpose.msra.mxu0 0.0
        %1673 = vmatprep.subr.mxu0 0.0
        %1674 = vmatpush1.xpose.msra.mxu0 0.0
        %1675 = vmatprep.subr.mxu0 0.0
        %1676 = vmatpush1.xpose.msra.mxu0 0.0
        %1677 = vmatprep.subr.mxu0 0.0
        %1678 = vmatpush1.xpose.msra.mxu0 0.0
        %1679 = vmatprep.subr.mxu0 0.0
        %1680 = vmatpush1.xpose.msra.mxu0 0.0
        %1681 = vmatprep.subr.mxu0 0.0
        %1682 = vmatpush1.xpose.msra.mxu0 0.0
        %1683 = vmatprep.mubr.f32.mxu0 0.0
        %1684 = vmatmul.mubr.f32.gmra.mrb[0].mxu0 %v1615
        %v1685 = vpop.f32.mrb[0].mxu0
        %v1686 = vadd.f32 0.0, %v1685
        %v1687 = vpop.f32.mrb[0].mxu0
        %1688 = vdwg.mxu0
        %v1689 = vsel %vm313, %v1686, -inf
        %1690 = vmax.xlane.f32.xlu0 %v1689
        %v1691 = vpop.xlane.xlu0 %1690
        %v1692 = vsub.f32 %v1686, %v1691
        %v1693 = vmul.f32 %v1692, 1.442695
        %v1694 = vpow.pop %v1693
        %v1695 = vsel %vm313, %v1694, 0.0
        %1696 = vadd.xlane.f32.xlu0 %v1695
        %v1697 = vpop.xlane.xlu0 %1696
        %v1700 = vsel %vm313, %v1694, 0
        %1702 = vmatprep.subr.mxu0 0.0
        %1703 = vmatpush1.msra.mxu0 %v1614
        %1704 = vmatprep.subr.mxu0 0.0
        %1705 = vmatpush1.msra.mxu0 0.0
        %1706 = vmatprep.subr.mxu0 0.0
        %1707 = vmatpush1.msra.mxu0 0.0
        %1708 = vmatprep.subr.mxu0 0.0
        %1709 = vmatpush1.msra.mxu0 0.0
        %1710 = vmatprep.subr.mxu0 0.0
        %1711 = vmatpush1.msra.mxu0 0.0
        %1712 = vmatprep.subr.mxu0 0.0
        %1713 = vmatpush1.msra.mxu0 0.0
        %1714 = vmatprep.subr.mxu0 0.0
        %1715 = vmatpush1.msra.mxu0 0.0
        %1716 = vmatprep.subr.mxu0 0.0
        %1717 = vmatpush1.msra.mxu0 0.0
        %1718 = vmatprep.subr.mxu0 0.0
        %1719 = vmatpush1.msra.mxu0 0.0
        %1720 = vmatprep.subr.mxu0 0.0
        %1721 = vmatpush1.msra.mxu0 0.0
        %1722 = vmatprep.subr.mxu0 0.0
        %1723 = vmatpush1.msra.mxu0 0.0
        %1724 = vmatprep.subr.mxu0 0.0
        %1725 = vmatpush1.msra.mxu0 0.0
        %1726 = vmatprep.subr.mxu0 0.0
        %1727 = vmatpush1.msra.mxu0 0.0
        %1728 = vmatprep.subr.mxu0 0.0
        %1729 = vmatpush1.msra.mxu0 0.0
        %1730 = vmatprep.subr.mxu0 0.0
        %1731 = vmatpush1.msra.mxu0 0.0
        %1732 = vmatprep.subr.mxu0 0.0
        %1733 = vmatpush1.msra.mxu0 0.0
        %1734 = vmatprep.subr.mxu0 0.0
        %1735 = vmatpush1.msra.mxu0 0.0
        %1736 = vmatprep.subr.mxu0 0.0
        %1737 = vmatpush1.msra.mxu0 0.0
        %1738 = vmatprep.subr.mxu0 0.0
        %1739 = vmatpush1.msra.mxu0 0.0
        %1740 = vmatprep.subr.mxu0 0.0
        %1741 = vmatpush1.msra.mxu0 0.0
        %1742 = vmatprep.subr.mxu0 0.0
        %1743 = vmatpush1.msra.mxu0 0.0
        %1744 = vmatprep.subr.mxu0 0.0
        %1745 = vmatpush1.msra.mxu0 0.0
        %1746 = vmatprep.subr.mxu0 0.0
        %1747 = vmatpush1.msra.mxu0 0.0
        %1748 = vmatprep.subr.mxu0 0.0
        %1749 = vmatpush1.msra.mxu0 0.0
        %1750 = vmatprep.subr.mxu0 0.0
        %1751 = vmatpush1.msra.mxu0 0.0
        %1752 = vmatprep.subr.mxu0 0.0
        %1753 = vmatpush1.msra.mxu0 0.0
        %1754 = vmatprep.subr.mxu0 0.0
        %1755 = vmatpush1.msra.mxu0 0.0
        %1756 = vmatprep.subr.mxu0 0.0
        %1757 = vmatpush1.msra.mxu0 0.0
        %1758 = vmatprep.subr.mxu0 0.0
        %1759 = vmatpush1.msra.mxu0 0.0
        %1760 = vmatprep.subr.mxu0 0.0
        %1761 = vmatpush1.msra.mxu0 0.0
        %1762 = vmatprep.subr.mxu0 0.0
        %1763 = vmatpush1.msra.mxu0 0.0
        %1764 = vmatprep.subr.mxu0 0.0
        %1765 = vmatpush1.msra.mxu0 0.0
        %1766 = vmatprep.mubr.f32.mxu0 0.0
        %1767 = vmatmul.mubr.f32.gmra.mrb[0].mxu0 %v1700
        %v1768 = vpop.f32.mrb[0].mxu0
        %v1769 = vadd.f32 0.0, %v1768
        %v1770 = vpop.f32.mrb[0].mxu0
        %1771 = vdwg.mxu0
        %v1772 = vrcp.pop %v1697
        %v1773 = vmul.f32 %v1772, 0.35355338
        %v1774 = vmul.f32 %v1769, %v1773
        %s1775 = scalar_lea.vmem %s3, 32
        %v1776 = vld [vmem:[%s1775] sm:$0xff]
        %v1778 = vsel %vm313, %v1774, 0
        %1780 = vmatprep.subr.mxu0 0.0
        %1781 = vmatpush1.msra.mxu0 %v1776
        %1782 = vmatprep.subr.mxu0 0.0
        %1783 = vmatpush1.msra.mxu0 0.0
        %1784 = vmatprep.subr.mxu0 0.0
        %1785 = vmatpush1.msra.mxu0 0.0
        %1786 = vmatprep.subr.mxu0 0.0
        %1787 = vmatpush1.msra.mxu0 0.0
        %1788 = vmatprep.subr.mxu0 0.0
        %1789 = vmatpush1.msra.mxu0 0.0
        %1790 = vmatprep.subr.mxu0 0.0
        %1791 = vmatpush1.msra.mxu0 0.0
        %1792 = vmatprep.subr.mxu0 0.0
        %1793 = vmatpush1.msra.mxu0 0.0
        %1794 = vmatprep.subr.mxu0 0.0
        %1795 = vmatpush1.msra.mxu0 0.0
        %1796 = vmatprep.subr.mxu0 0.0
        %1797 = vmatpush1.msra.mxu0 0.0
        %1798 = vmatprep.subr.mxu0 0.0
        %1799 = vmatpush1.msra.mxu0 0.0
        %1800 = vmatprep.subr.mxu0 0.0
        %1801 = vmatpush1.msra.mxu0 0.0
        %1802 = vmatprep.subr.mxu0 0.0
        %1803 = vmatpush1.msra.mxu0 0.0
        %1804 = vmatprep.subr.mxu0 0.0
        %1805 = vmatpush1.msra.mxu0 0.0
        %1806 = vmatprep.subr.mxu0 0.0
        %1807 = vmatpush1.msra.mxu0 0.0
        %1808 = vmatprep.subr.mxu0 0.0
        %1809 = vmatpush1.msra.mxu0 0.0
        %1810 = vmatprep.subr.mxu0 0.0
        %1811 = vmatpush1.msra.mxu0 0.0
        %1812 = vmatprep.subr.mxu0 0.0
        %1813 = vmatpush1.msra.mxu0 0.0
        %1814 = vmatprep.subr.mxu0 0.0
        %1815 = vmatpush1.msra.mxu0 0.0
        %1816 = vmatprep.subr.mxu0 0.0
        %1817 = vmatpush1.msra.mxu0 0.0
        %1818 = vmatprep.subr.mxu0 0.0
        %1819 = vmatpush1.msra.mxu0 0.0
        %1820 = vmatprep.subr.mxu0 0.0
        %1821 = vmatpush1.msra.mxu0 0.0
        %1822 = vmatprep.subr.mxu0 0.0
        %1823 = vmatpush1.msra.mxu0 0.0
        %1824 = vmatprep.subr.mxu0 0.0
        %1825 = vmatpush1.msra.mxu0 0.0
        %1826 = vmatprep.subr.mxu0 0.0
        %1827 = vmatpush1.msra.mxu0 0.0
        %1828 = vmatprep.subr.mxu0 0.0
        %1829 = vmatpush1.msra.mxu0 0.0
        %1830 = vmatprep.subr.mxu0 0.0
        %1831 = vmatpush1.msra.mxu0 0.0
        %1832 = vmatprep.subr.mxu0 0.0
        %1833 = vmatpush1.msra.mxu0 0.0
        %1834 = vmatprep.subr.mxu0 0.0
        %1835 = vmatpush1.msra.mxu0 0.0
        %1836 = vmatprep.subr.mxu0 0.0
        %1837 = vmatpush1.msra.mxu0 0.0
        %1838 = vmatprep.subr.mxu0 0.0
        %1839 = vmatpush1.msra.mxu0 0.0
        %1840 = vmatprep.subr.mxu0 0.0
        %1841 = vmatpush1.msra.mxu0 0.0
        %1842 = vmatprep.subr.mxu0 0.0
        %1843 = vmatpush1.msra.mxu0 0.0
        %1844 = vmatprep.mubr.f32.mxu0 0.0
        %1845 = vmatmul.mubr.f32.gmra.mrb[0].mxu0 %v1778
        %v1846 = vpop.f32.mrb[0].mxu0
        %v1847 = vadd.f32 0.0, %v1846
        %v1848 = vpop.f32.mrb[0].mxu0
        %1849 = vdwg.mxu0
        %v1850 = vadd.f32 %v1524, %v1847
        %s1851 = scalar_lea.vmem %s1, 320
        %v1852 = vld [vmem:[%s1851] sm:$0xff]
        %v1853 = vld [vmem:[%s1851 + $0x8] sm:$0xff]
        %v1854 = vld [vmem:[%s1851 + $0x10] sm:$0xff]
        %v1855 = vld [vmem:[%s1851 + $0x18] sm:$0xff]
        %v1856 = vld [vmem:[%s1851 + $0x20] sm:$0xff]
        %v1857 = vld [vmem:[%s1851 + $0x28] sm:$0xff]
        %v1858 = vld [vmem:[%s1851 + $0x30] sm:$0xff]
        %v1859 = vld [vmem:[%s1851 + $0x38] sm:$0xff]
        %s1860 = scalar_lea.vmem %s2, 5
        %v1861 = vld [vmem:[%s1860] sm:$0x1]
        %v1863 = vlaneseq
        %v1864 = vshrl.u32 %v1863, 7
        %v1865 = vsub.s32 0, %v1864
        %v1866 = vrot.slane %v1861, %v1865
        %1868 = vmatprep.subr.mxu0 0.0
        %1869 = vmatpush1.msra.mxu0 %v1852
        %1870 = vmatprep.subr.mxu0 0.0
        %1871 = vmatpush1.msra.mxu0 %v1853
        %1872 = vmatprep.subr.mxu0 0.0
        %1873 = vmatpush1.msra.mxu0 %v1854
        %1874 = vmatprep.subr.mxu0 0.0
        %1875 = vmatpush1.msra.mxu0 %v1855
        %1876 = vmatprep.subr.mxu0 0.0
        %1877 = vmatpush1.msra.mxu0 %v1856
        %1878 = vmatprep.subr.mxu0 0.0
        %1879 = vmatpush1.msra.mxu0 %v1857
        %1880 = vmatprep.subr.mxu0 0.0
        %1881 = vmatpush1.msra.mxu0 %v1858
        %1882 = vmatprep.subr.mxu0 0.0
        %1883 = vmatpush1.msra.mxu0 %v1859
        %1884 = vmatprep.subr.mxu0 0.0
        %1885 = vmatpush1.msra.mxu0 0.0
        %1886 = vmatprep.subr.mxu0 0.0
        %1887 = vmatpush1.msra.mxu0 0.0
        %1888 = vmatprep.subr.mxu0 0.0
        %1889 = vmatpush1.msra.mxu0 0.0
        %1890 = vmatprep.subr.mxu0 0.0
        %1891 = vmatpush1.msra.mxu0 0.0
        %1892 = vmatprep.subr.mxu0 0.0
        %1893 = vmatpush1.msra.mxu0 0.0
        %1894 = vmatprep.subr.mxu0 0.0
        %1895 = vmatpush1.msra.mxu0 0.0
        %1896 = vmatprep.subr.mxu0 0.0
        %1897 = vmatpush1.msra.mxu0 0.0
        %1898 = vmatprep.subr.mxu0 0.0
        %1899 = vmatpush1.msra.mxu0 0.0
        %1900 = vmatprep.subr.mxu0 0.0
        %1901 = vmatpush1.msra.mxu0 0.0
        %1902 = vmatprep.subr.mxu0 0.0
        %1903 = vmatpush1.msra.mxu0 0.0
        %1904 = vmatprep.subr.mxu0 0.0
        %1905 = vmatpush1.msra.mxu0 0.0
        %1906 = vmatprep.subr.mxu0 0.0
        %1907 = vmatpush1.msra.mxu0 0.0
        %1908 = vmatprep.subr.mxu0 0.0
        %1909 = vmatpush1.msra.mxu0 0.0
        %1910 = vmatprep.subr.mxu0 0.0
        %1911 = vmatpush1.msra.mxu0 0.0
        %1912 = vmatprep.subr.mxu0 0.0
        %1913 = vmatpush1.msra.mxu0 0.0
        %1914 = vmatprep.subr.mxu0 0.0
        %1915 = vmatpush1.msra.mxu0 0.0
        %1916 = vmatprep.subr.mxu0 0.0
        %1917 = vmatpush1.msra.mxu0 0.0
        %1918 = vmatprep.subr.mxu0 0.0
        %1919 = vmatpush1.msra.mxu0 0.0
        %1920 = vmatprep.subr.mxu0 0.0
        %1921 = vmatpush1.msra.mxu0 0.0
        %1922 = vmatprep.subr.mxu0 0.0
        %1923 = vmatpush1.msra.mxu0 0.0
        %1924 = vmatprep.subr.mxu0 0.0
        %1925 = vmatpush1.msra.mxu0 0.0
        %1926 = vmatprep.subr.mxu0 0.0
        %1927 = vmatpush1.msra.mxu0 0.0
        %1928 = vmatprep.subr.mxu0 0.0
        %1929 = vmatpush1.msra.mxu0 0.0
        %1930 = vmatprep.subr.mxu0 0.0
        %1931 = vmatpush1.msra.mxu0 0.0
        %1932 = vmatprep.mubr.f32.mxu0 0.0
        %1933 = vmatmul.mubr.f32.gmra.mrb[0].mxu0 %v238
        %v1934 = vpop.f32.mrb[0].mxu0
        %v1935 = vadd.f32 %v1866, %v1934
        %v1936 = vpop.f32.mrb[0].mxu0
        %1937 = vdwg.mxu0
        %1939 = vrot.lane.b32.xlu0 %v1935, 120
        %v1940 = vpop.permute.xlu0 %1939
        %v1941 = vsel %vm313, %v1935, 0
        %v1943 = vsel %vm313, %v1940, 0
        %1945 = vmatprep.subr.mxu0 0.0
        %1946 = vmatpush1.xpose.msra.mxu0 %v1943
        %1947 = vmatprep.subr.mxu0 0.0
        %1948 = vmatpush1.xpose.msra.mxu0 0.0
        %1949 = vmatprep.subr.mxu0 0.0
        %1950 = vmatpush1.xpose.msra.mxu0 0.0
        %1951 = vmatprep.subr.mxu0 0.0
        %1952 = vmatpush1.xpose.msra.mxu0 0.0
        %1953 = vmatprep.subr.mxu0 0.0
        %1954 = vmatpush1.xpose.msra.mxu0 0.0
        %1955 = vmatprep.subr.mxu0 0.0
        %1956 = vmatpush1.xpose.msra.mxu0 0.0
        %1957 = vmatprep.subr.mxu0 0.0
        %1958 = vmatpush1.xpose.msra.mxu0 0.0
        %1959 = vmatprep.subr.mxu0 0.0
        %1960 = vmatpush1.xpose.msra.mxu0 0.0
        %1961 = vmatprep.subr.mxu0 0.0
        %1962 = vmatpush1.xpose.msra.mxu0 0.0
        %1963 = vmatprep.subr.mxu0 0.0
        %1964 = vmatpush1.xpose.msra.mxu0 0.0
        %1965 = vmatprep.subr.mxu0 0.0
        %1966 = vmatpush1.xpose.msra.mxu0 0.0
        %1967 = vmatprep.subr.mxu0 0.0
        %1968 = vmatpush1.xpose.msra.mxu0 0.0
        %1969 = vmatprep.subr.mxu0 0.0
        %1970 = vmatpush1.xpose.msra.mxu0 0.0
        %1971 = vmatprep.subr.mxu0 0.0
        %1972 = vmatpush1.xpose.msra.mxu0 0.0
        %1973 = vmatprep.subr.mxu0 0.0
        %1974 = vmatpush1.xpose.msra.mxu0 0.0
        %1975 = vmatprep.subr.mxu0 0.0
        %1976 = vmatpush1.xpose.msra.mxu0 0.0
        %1977 = vmatprep.subr.mxu0 0.0
        %1978 = vmatpush1.xpose.msra.mxu0 0.0
        %1979 = vmatprep.subr.mxu0 0.0
        %1980 = vmatpush1.xpose.msra.mxu0 0.0
        %1981 = vmatprep.subr.mxu0 0.0
        %1982 = vmatpush1.xpose.msra.mxu0 0.0
        %1983 = vmatprep.subr.mxu0 0.0
        %1984 = vmatpush1.xpose.msra.mxu0 0.0
        %1985 = vmatprep.subr.mxu0 0.0
        %1986 = vmatpush1.xpose.msra.mxu0 0.0
        %1987 = vmatprep.subr.mxu0 0.0
        %1988 = vmatpush1.xpose.msra.mxu0 0.0
        %1989 = vmatprep.subr.mxu0 0.0
        %1990 = vmatpush1.xpose.msra.mxu0 0.0
        %1991 = vmatprep.subr.mxu0 0.0
        %1992 = vmatpush1.xpose.msra.mxu0 0.0
        %1993 = vmatprep.subr.mxu0 0.0
        %1994 = vmatpush1.xpose.msra.mxu0 0.0
        %1995 = vmatprep.subr.mxu0 0.0
        %1996 = vmatpush1.xpose.msra.mxu0 0.0
        %1997 = vmatprep.subr.mxu0 0.0
        %1998 = vmatpush1.xpose.msra.mxu0 0.0
        %1999 = vmatprep.subr.mxu0 0.0
        %2000 = vmatpush1.xpose.msra.mxu0 0.0
        %2001 = vmatprep.subr.mxu0 0.0
        %2002 = vmatpush1.xpose.msra.mxu0 0.0
        %2003 = vmatprep.subr.mxu0 0.0
        %2004 = vmatpush1.xpose.msra.mxu0 0.0
        %2005 = vmatprep.subr.mxu0 0.0
        %2006 = vmatpush1.xpose.msra.mxu0 0.0
        %2007 = vmatprep.subr.mxu0 0.0
        %2008 = vmatpush1.xpose.msra.mxu0 0.0
        %2009 = vmatprep.mubr.f32.mxu0 0.0
        %2010 = vmatmul.mubr.f32.gmra.mrb[0].mxu0 %v1941
        %v2011 = vpop.f32.mrb[0].mxu0
        %v2012 = vadd.f32 0.0, %v2011
        %v2013 = vpop.f32.mrb[0].mxu0
        %2014 = vdwg.mxu0
        %v2015 = vsel %vm313, %v2012, -inf
        %2016 = vmax.xlane.f32.xlu0 %v2015
        %v2017 = vpop.xlane.xlu0 %2016
        %v2018 = vsub.f32 %v2012, %v2017
        %v2019 = vmul.f32 %v2018, 1.442695
        %v2020 = vpow.pop %v2019
        %v2021 = vsel %vm313, %v2020, 0.0
        %2022 = vadd.xlane.f32.xlu0 %v2021
        %v2023 = vpop.xlane.xlu0 %2022
        %v2026 = vsel %vm313, %v2020, 0
        %2028 = vmatprep.subr.mxu0 0.0
        %2029 = vmatpush1.msra.mxu0 %v1940
        %2030 = vmatprep.subr.mxu0 0.0
        %2031 = vmatpush1.msra.mxu0 0.0
        %2032 = vmatprep.subr.mxu0 0.0
        %2033 = vmatpush1.msra.mxu0 0.0
        %2034 = vmatprep.subr.mxu0 0.0
        %2035 = vmatpush1.msra.mxu0 0.0
        %2036 = vmatprep.subr.mxu0 0.0
        %2037 = vmatpush1.msra.mxu0 0.0
        %2038 = vmatprep.subr.mxu0 0.0
        %2039 = vmatpush1.msra.mxu0 0.0
        %2040 = vmatprep.subr.mxu0 0.0
        %2041 = vmatpush1.msra.mxu0 0.0
        %2042 = vmatprep.subr.mxu0 0.0
        %2043 = vmatpush1.msra.mxu0 0.0
        %2044 = vmatprep.subr.mxu0 0.0
        %2045 = vmatpush1.msra.mxu0 0.0
        %2046 = vmatprep.subr.mxu0 0.0
        %2047 = vmatpush1.msra.mxu0 0.0
        %2048 = vmatprep.subr.mxu0 0.0
        %2049 = vmatpush1.msra.mxu0 0.0
        %2050 = vmatprep.subr.mxu0 0.0
        %2051 = vmatpush1.msra.mxu0 0.0
        %2052 = vmatprep.subr.mxu0 0.0
        %2053 = vmatpush1.msra.mxu0 0.0
        %2054 = vmatprep.subr.mxu0 0.0
        %2055 = vmatpush1.msra.mxu0 0.0
        %2056 = vmatprep.subr.mxu0 0.0
        %2057 = vmatpush1.msra.mxu0 0.0
        %2058 = vmatprep.subr.mxu0 0.0
        %2059 = vmatpush1.msra.mxu0 0.0
        %2060 = vmatprep.subr.mxu0 0.0
        %2061 = vmatpush1.msra.mxu0 0.0
        %2062 = vmatprep.subr.mxu0 0.0
        %2063 = vmatpush1.msra.mxu0 0.0
        %2064 = vmatprep.subr.mxu0 0.0
        %2065 = vmatpush1.msra.mxu0 0.0
        %2066 = vmatprep.subr.mxu0 0.0
        %2067 = vmatpush1.msra.mxu0 0.0
        %2068 = vmatprep.subr.mxu0 0.0
        %2069 = vmatpush1.msra.mxu0 0.0
        %2070 = vmatprep.subr.mxu0 0.0
        %2071 = vmatpush1.msra.mxu0 0.0
        %2072 = vmatprep.subr.mxu0 0.0
        %2073 = vmatpush1.msra.mxu0 0.0
        %2074 = vmatprep.subr.mxu0 0.0
        %2075 = vmatpush1.msra.mxu0 0.0
        %2076 = vmatprep.subr.mxu0 0.0
        %2077 = vmatpush1.msra.mxu0 0.0
        %2078 = vmatprep.subr.mxu0 0.0
        %2079 = vmatpush1.msra.mxu0 0.0
        %2080 = vmatprep.subr.mxu0 0.0
        %2081 = vmatpush1.msra.mxu0 0.0
        %2082 = vmatprep.subr.mxu0 0.0
        %2083 = vmatpush1.msra.mxu0 0.0
        %2084 = vmatprep.subr.mxu0 0.0
        %2085 = vmatpush1.msra.mxu0 0.0
        %2086 = vmatprep.subr.mxu0 0.0
        %2087 = vmatpush1.msra.mxu0 0.0
        %2088 = vmatprep.subr.mxu0 0.0
        %2089 = vmatpush1.msra.mxu0 0.0
        %2090 = vmatprep.subr.mxu0 0.0
        %2091 = vmatpush1.msra.mxu0 0.0
        %2092 = vmatprep.mubr.f32.mxu0 0.0
        %2093 = vmatmul.mubr.f32.gmra.mrb[0].mxu0 %v2026
        %v2094 = vpop.f32.mrb[0].mxu0
        %v2095 = vadd.f32 0.0, %v2094
        %v2096 = vpop.f32.mrb[0].mxu0
        %2097 = vdwg.mxu0
        %v2098 = vrcp.pop %v2023
        %v2099 = vmul.f32 %v2098, 0.35355338
        %v2100 = vmul.f32 %v2095, %v2099
        %s2101 = scalar_lea.vmem %s3, 40
        %v2102 = vld [vmem:[%s2101] sm:$0xff]
        %v2104 = vsel %vm313, %v2100, 0
        %2106 = vmatprep.subr.mxu0 0.0
        %2107 = vmatpush1.msra.mxu0 %v2102
        %2108 = vmatprep.subr.mxu0 0.0
        %2109 = vmatpush1.msra.mxu0 0.0
        %2110 = vmatprep.subr.mxu0 0.0
        %2111 = vmatpush1.msra.mxu0 0.0
        %2112 = vmatprep.subr.mxu0 0.0
        %2113 = vmatpush1.msra.mxu0 0.0
        %2114 = vmatprep.subr.mxu0 0.0
        %2115 = vmatpush1.msra.mxu0 0.0
        %2116 = vmatprep.subr.mxu0 0.0
        %2117 = vmatpush1.msra.mxu0 0.0
        %2118 = vmatprep.subr.mxu0 0.0
        %2119 = vmatpush1.msra.mxu0 0.0
        %2120 = vmatprep.subr.mxu0 0.0
        %2121 = vmatpush1.msra.mxu0 0.0
        %2122 = vmatprep.subr.mxu0 0.0
        %2123 = vmatpush1.msra.mxu0 0.0
        %2124 = vmatprep.subr.mxu0 0.0
        %2125 = vmatpush1.msra.mxu0 0.0
        %2126 = vmatprep.subr.mxu0 0.0
        %2127 = vmatpush1.msra.mxu0 0.0
        %2128 = vmatprep.subr.mxu0 0.0
        %2129 = vmatpush1.msra.mxu0 0.0
        %2130 = vmatprep.subr.mxu0 0.0
        %2131 = vmatpush1.msra.mxu0 0.0
        %2132 = vmatprep.subr.mxu0 0.0
        %2133 = vmatpush1.msra.mxu0 0.0
        %2134 = vmatprep.subr.mxu0 0.0
        %2135 = vmatpush1.msra.mxu0 0.0
        %2136 = vmatprep.subr.mxu0 0.0
        %2137 = vmatpush1.msra.mxu0 0.0
        %2138 = vmatprep.subr.mxu0 0.0
        %2139 = vmatpush1.msra.mxu0 0.0
        %2140 = vmatprep.subr.mxu0 0.0
        %2141 = vmatpush1.msra.mxu0 0.0
        %2142 = vmatprep.subr.mxu0 0.0
        %2143 = vmatpush1.msra.mxu0 0.0
        %2144 = vmatprep.subr.mxu0 0.0
        %2145 = vmatpush1.msra.mxu0 0.0
        %2146 = vmatprep.subr.mxu0 0.0
        %2147 = vmatpush1.msra.mxu0 0.0
        %2148 = vmatprep.subr.mxu0 0.0
        %2149 = vmatpush1.msra.mxu0 0.0
        %2150 = vmatprep.subr.mxu0 0.0
        %2151 = vmatpush1.msra.mxu0 0.0
        %2152 = vmatprep.subr.mxu0 0.0
        %2153 = vmatpush1.msra.mxu0 0.0
        %2154 = vmatprep.subr.mxu0 0.0
        %2155 = vmatpush1.msra.mxu0 0.0
        %2156 = vmatprep.subr.mxu0 0.0
        %2157 = vmatpush1.msra.mxu0 0.0
        %2158 = vmatprep.subr.mxu0 0.0
        %2159 = vmatpush1.msra.mxu0 0.0
        %2160 = vmatprep.subr.mxu0 0.0
        %2161 = vmatpush1.msra.mxu0 0.0
        %2162 = vmatprep.subr.mxu0 0.0
        %2163 = vmatpush1.msra.mxu0 0.0
        %2164 = vmatprep.subr.mxu0 0.0
        %2165 = vmatpush1.msra.mxu0 0.0
        %2166 = vmatprep.subr.mxu0 0.0
        %2167 = vmatpush1.msra.mxu0 0.0
        %2168 = vmatprep.subr.mxu0 0.0
        %2169 = vmatpush1.msra.mxu0 0.0
        %2170 = vmatprep.mubr.f32.mxu0 0.0
        %2171 = vmatmul.mubr.f32.gmra.mrb[0].mxu0 %v2104
        %v2172 = vpop.f32.mrb[0].mxu0
        %v2173 = vadd.f32 0.0, %v2172
        %v2174 = vpop.f32.mrb[0].mxu0
        %2175 = vdwg.mxu0
        %v2176 = vadd.f32 %v1850, %v2173
        %s2177 = scalar_lea.vmem %s1, 384
        %v2178 = vld [vmem:[%s2177] sm:$0xff]
        %v2179 = vld [vmem:[%s2177 + $0x8] sm:$0xff]
        %v2180 = vld [vmem:[%s2177 + $0x10] sm:$0xff]
        %v2181 = vld [vmem:[%s2177 + $0x18] sm:$0xff]
        %v2182 = vld [vmem:[%s2177 + $0x20] sm:$0xff]
        %v2183 = vld [vmem:[%s2177 + $0x28] sm:$0xff]
        %v2184 = vld [vmem:[%s2177 + $0x30] sm:$0xff]
        %v2185 = vld [vmem:[%s2177 + $0x38] sm:$0xff]
        %s2186 = scalar_lea.vmem %s2, 6
        %v2187 = vld [vmem:[%s2186] sm:$0x1]
        %v2189 = vlaneseq
        %v2190 = vshrl.u32 %v2189, 7
        %v2191 = vsub.s32 0, %v2190
        %v2192 = vrot.slane %v2187, %v2191
        %2194 = vmatprep.subr.mxu0 0.0
        %2195 = vmatpush1.msra.mxu0 %v2178
        %2196 = vmatprep.subr.mxu0 0.0
        %2197 = vmatpush1.msra.mxu0 %v2179
        %2198 = vmatprep.subr.mxu0 0.0
        %2199 = vmatpush1.msra.mxu0 %v2180
        %2200 = vmatprep.subr.mxu0 0.0
        %2201 = vmatpush1.msra.mxu0 %v2181
        %2202 = vmatprep.subr.mxu0 0.0
        %2203 = vmatpush1.msra.mxu0 %v2182
        %2204 = vmatprep.subr.mxu0 0.0
        %2205 = vmatpush1.msra.mxu0 %v2183
        %2206 = vmatprep.subr.mxu0 0.0
        %2207 = vmatpush1.msra.mxu0 %v2184
        %2208 = vmatprep.subr.mxu0 0.0
        %2209 = vmatpush1.msra.mxu0 %v2185
        %2210 = vmatprep.subr.mxu0 0.0
        %2211 = vmatpush1.msra.mxu0 0.0
        %2212 = vmatprep.subr.mxu0 0.0
        %2213 = vmatpush1.msra.mxu0 0.0
        %2214 = vmatprep.subr.mxu0 0.0
        %2215 = vmatpush1.msra.mxu0 0.0
        %2216 = vmatprep.subr.mxu0 0.0
        %2217 = vmatpush1.msra.mxu0 0.0
        %2218 = vmatprep.subr.mxu0 0.0
        %2219 = vmatpush1.msra.mxu0 0.0
        %2220 = vmatprep.subr.mxu0 0.0
        %2221 = vmatpush1.msra.mxu0 0.0
        %2222 = vmatprep.subr.mxu0 0.0
        %2223 = vmatpush1.msra.mxu0 0.0
        %2224 = vmatprep.subr.mxu0 0.0
        %2225 = vmatpush1.msra.mxu0 0.0
        %2226 = vmatprep.subr.mxu0 0.0
        %2227 = vmatpush1.msra.mxu0 0.0
        %2228 = vmatprep.subr.mxu0 0.0
        %2229 = vmatpush1.msra.mxu0 0.0
        %2230 = vmatprep.subr.mxu0 0.0
        %2231 = vmatpush1.msra.mxu0 0.0
        %2232 = vmatprep.subr.mxu0 0.0
        %2233 = vmatpush1.msra.mxu0 0.0
        %2234 = vmatprep.subr.mxu0 0.0
        %2235 = vmatpush1.msra.mxu0 0.0
        %2236 = vmatprep.subr.mxu0 0.0
        %2237 = vmatpush1.msra.mxu0 0.0
        %2238 = vmatprep.subr.mxu0 0.0
        %2239 = vmatpush1.msra.mxu0 0.0
        %2240 = vmatprep.subr.mxu0 0.0
        %2241 = vmatpush1.msra.mxu0 0.0
        %2242 = vmatprep.subr.mxu0 0.0
        %2243 = vmatpush1.msra.mxu0 0.0
        %2244 = vmatprep.subr.mxu0 0.0
        %2245 = vmatpush1.msra.mxu0 0.0
        %2246 = vmatprep.subr.mxu0 0.0
        %2247 = vmatpush1.msra.mxu0 0.0
        %2248 = vmatprep.subr.mxu0 0.0
        %2249 = vmatpush1.msra.mxu0 0.0
        %2250 = vmatprep.subr.mxu0 0.0
        %2251 = vmatpush1.msra.mxu0 0.0
        %2252 = vmatprep.subr.mxu0 0.0
        %2253 = vmatpush1.msra.mxu0 0.0
        %2254 = vmatprep.subr.mxu0 0.0
        %2255 = vmatpush1.msra.mxu0 0.0
        %2256 = vmatprep.subr.mxu0 0.0
        %2257 = vmatpush1.msra.mxu0 0.0
        %2258 = vmatprep.mubr.f32.mxu0 0.0
        %2259 = vmatmul.mubr.f32.gmra.mrb[0].mxu0 %v238
        %v2260 = vpop.f32.mrb[0].mxu0
        %v2261 = vadd.f32 %v2192, %v2260
        %v2262 = vpop.f32.mrb[0].mxu0
        %2263 = vdwg.mxu0
        %2265 = vrot.lane.b32.xlu0 %v2261, 120
        %v2266 = vpop.permute.xlu0 %2265
        %v2267 = vsel %vm313, %v2261, 0
        %v2269 = vsel %vm313, %v2266, 0
        %2271 = vmatprep.subr.mxu0 0.0
        %2272 = vmatpush1.xpose.msra.mxu0 %v2269
        %2273 = vmatprep.subr.mxu0 0.0
        %2274 = vmatpush1.xpose.msra.mxu0 0.0
        %2275 = vmatprep.subr.mxu0 0.0
        %2276 = vmatpush1.xpose.msra.mxu0 0.0
        %2277 = vmatprep.subr.mxu0 0.0
        %2278 = vmatpush1.xpose.msra.mxu0 0.0
        %2279 = vmatprep.subr.mxu0 0.0
        %2280 = vmatpush1.xpose.msra.mxu0 0.0
        %2281 = vmatprep.subr.mxu0 0.0
        %2282 = vmatpush1.xpose.msra.mxu0 0.0
        %2283 = vmatprep.subr.mxu0 0.0
        %2284 = vmatpush1.xpose.msra.mxu0 0.0
        %2285 = vmatprep.subr.mxu0 0.0
        %2286 = vmatpush1.xpose.msra.mxu0 0.0
        %2287 = vmatprep.subr.mxu0 0.0
        %2288 = vmatpush1.xpose.msra.mxu0 0.0
        %2289 = vmatprep.subr.mxu0 0.0
        %2290 = vmatpush1.xpose.msra.mxu0 0.0
        %2291 = vmatprep.subr.mxu0 0.0
        %2292 = vmatpush1.xpose.msra.mxu0 0.0
        %2293 = vmatprep.subr.mxu0 0.0
        %2294 = vmatpush1.xpose.msra.mxu0 0.0
        %2295 = vmatprep.subr.mxu0 0.0
        %2296 = vmatpush1.xpose.msra.mxu0 0.0
        %2297 = vmatprep.subr.mxu0 0.0
        %2298 = vmatpush1.xpose.msra.mxu0 0.0
        %2299 = vmatprep.subr.mxu0 0.0
        %2300 = vmatpush1.xpose.msra.mxu0 0.0
        %2301 = vmatprep.subr.mxu0 0.0
        %2302 = vmatpush1.xpose.msra.mxu0 0.0
        %2303 = vmatprep.subr.mxu0 0.0
        %2304 = vmatpush1.xpose.msra.mxu0 0.0
        %2305 = vmatprep.subr.mxu0 0.0
        %2306 = vmatpush1.xpose.msra.mxu0 0.0
        %2307 = vmatprep.subr.mxu0 0.0
        %2308 = vmatpush1.xpose.msra.mxu0 0.0
        %2309 = vmatprep.subr.mxu0 0.0
        %2310 = vmatpush1.xpose.msra.mxu0 0.0
        %2311 = vmatprep.subr.mxu0 0.0
        %2312 = vmatpush1.xpose.msra.mxu0 0.0
        %2313 = vmatprep.subr.mxu0 0.0
        %2314 = vmatpush1.xpose.msra.mxu0 0.0
        %2315 = vmatprep.subr.mxu0 0.0
        %2316 = vmatpush1.xpose.msra.mxu0 0.0
        %2317 = vmatprep.subr.mxu0 0.0
        %2318 = vmatpush1.xpose.msra.mxu0 0.0
        %2319 = vmatprep.subr.mxu0 0.0
        %2320 = vmatpush1.xpose.msra.mxu0 0.0
        %2321 = vmatprep.subr.mxu0 0.0
        %2322 = vmatpush1.xpose.msra.mxu0 0.0
        %2323 = vmatprep.subr.mxu0 0.0
        %2324 = vmatpush1.xpose.msra.mxu0 0.0
        %2325 = vmatprep.subr.mxu0 0.0
        %2326 = vmatpush1.xpose.msra.mxu0 0.0
        %2327 = vmatprep.subr.mxu0 0.0
        %2328 = vmatpush1.xpose.msra.mxu0 0.0
        %2329 = vmatprep.subr.mxu0 0.0
        %2330 = vmatpush1.xpose.msra.mxu0 0.0
        %2331 = vmatprep.subr.mxu0 0.0
        %2332 = vmatpush1.xpose.msra.mxu0 0.0
        %2333 = vmatprep.subr.mxu0 0.0
        %2334 = vmatpush1.xpose.msra.mxu0 0.0
        %2335 = vmatprep.mubr.f32.mxu0 0.0
        %2336 = vmatmul.mubr.f32.gmra.mrb[0].mxu0 %v2267
        %v2337 = vpop.f32.mrb[0].mxu0
        %v2338 = vadd.f32 0.0, %v2337
        %v2339 = vpop.f32.mrb[0].mxu0
        %2340 = vdwg.mxu0
        %v2341 = vsel %vm313, %v2338, -inf
        %2342 = vmax.xlane.f32.xlu0 %v2341
        %v2343 = vpop.xlane.xlu0 %2342
        %v2344 = vsub.f32 %v2338, %v2343
        %v2345 = vmul.f32 %v2344, 1.442695
        %v2346 = vpow.pop %v2345
        %v2347 = vsel %vm313, %v2346, 0.0
        %2348 = vadd.xlane.f32.xlu0 %v2347
        %v2349 = vpop.xlane.xlu0 %2348
        %v2352 = vsel %vm313, %v2346, 0
        %2354 = vmatprep.subr.mxu0 0.0
        %2355 = vmatpush1.msra.mxu0 %v2266
        %2356 = vmatprep.subr.mxu0 0.0
        %2357 = vmatpush1.msra.mxu0 0.0
        %2358 = vmatprep.subr.mxu0 0.0
        %2359 = vmatpush1.msra.mxu0 0.0
        %2360 = vmatprep.subr.mxu0 0.0
        %2361 = vmatpush1.msra.mxu0 0.0
        %2362 = vmatprep.subr.mxu0 0.0
        %2363 = vmatpush1.msra.mxu0 0.0
        %2364 = vmatprep.subr.mxu0 0.0
        %2365 = vmatpush1.msra.mxu0 0.0
        %2366 = vmatprep.subr.mxu0 0.0
        %2367 = vmatpush1.msra.mxu0 0.0
        %2368 = vmatprep.subr.mxu0 0.0
        %2369 = vmatpush1.msra.mxu0 0.0
        %2370 = vmatprep.subr.mxu0 0.0
        %2371 = vmatpush1.msra.mxu0 0.0
        %2372 = vmatprep.subr.mxu0 0.0
        %2373 = vmatpush1.msra.mxu0 0.0
        %2374 = vmatprep.subr.mxu0 0.0
        %2375 = vmatpush1.msra.mxu0 0.0
        %2376 = vmatprep.subr.mxu0 0.0
        %2377 = vmatpush1.msra.mxu0 0.0
        %2378 = vmatprep.subr.mxu0 0.0
        %2379 = vmatpush1.msra.mxu0 0.0
        %2380 = vmatprep.subr.mxu0 0.0
        %2381 = vmatpush1.msra.mxu0 0.0
        %2382 = vmatprep.subr.mxu0 0.0
        %2383 = vmatpush1.msra.mxu0 0.0
        %2384 = vmatprep.subr.mxu0 0.0
        %2385 = vmatpush1.msra.mxu0 0.0
        %2386 = vmatprep.subr.mxu0 0.0
        %2387 = vmatpush1.msra.mxu0 0.0
        %2388 = vmatprep.subr.mxu0 0.0
        %2389 = vmatpush1.msra.mxu0 0.0
        %2390 = vmatprep.subr.mxu0 0.0
        %2391 = vmatpush1.msra.mxu0 0.0
        %2392 = vmatprep.subr.mxu0 0.0
        %2393 = vmatpush1.msra.mxu0 0.0
        %2394 = vmatprep.subr.mxu0 0.0
        %2395 = vmatpush1.msra.mxu0 0.0
        %2396 = vmatprep.subr.mxu0 0.0
        %2397 = vmatpush1.msra.mxu0 0.0
        %2398 = vmatprep.subr.mxu0 0.0
        %2399 = vmatpush1.msra.mxu0 0.0
        %2400 = vmatprep.subr.mxu0 0.0
        %2401 = vmatpush1.msra.mxu0 0.0
        %2402 = vmatprep.subr.mxu0 0.0
        %2403 = vmatpush1.msra.mxu0 0.0
        %2404 = vmatprep.subr.mxu0 0.0
        %2405 = vmatpush1.msra.mxu0 0.0
        %2406 = vmatprep.subr.mxu0 0.0
        %2407 = vmatpush1.msra.mxu0 0.0
        %2408 = vmatprep.subr.mxu0 0.0
        %2409 = vmatpush1.msra.mxu0 0.0
        %2410 = vmatprep.subr.mxu0 0.0
        %2411 = vmatpush1.msra.mxu0 0.0
        %2412 = vmatprep.subr.mxu0 0.0
        %2413 = vmatpush1.msra.mxu0 0.0
        %2414 = vmatprep.subr.mxu0 0.0
        %2415 = vmatpush1.msra.mxu0 0.0
        %2416 = vmatprep.subr.mxu0 0.0
        %2417 = vmatpush1.msra.mxu0 0.0
        %2418 = vmatprep.mubr.f32.mxu0 0.0
        %2419 = vmatmul.mubr.f32.gmra.mrb[0].mxu0 %v2352
        %v2420 = vpop.f32.mrb[0].mxu0
        %v2421 = vadd.f32 0.0, %v2420
        %v2422 = vpop.f32.mrb[0].mxu0
        %2423 = vdwg.mxu0
        %v2424 = vrcp.pop %v2349
        %v2425 = vmul.f32 %v2424, 0.35355338
        %v2426 = vmul.f32 %v2421, %v2425
        %s2427 = scalar_lea.vmem %s3, 48
        %v2428 = vld [vmem:[%s2427] sm:$0xff]
        %v2430 = vsel %vm313, %v2426, 0
        %2432 = vmatprep.subr.mxu0 0.0
        %2433 = vmatpush1.msra.mxu0 %v2428
        %2434 = vmatprep.subr.mxu0 0.0
        %2435 = vmatpush1.msra.mxu0 0.0
        %2436 = vmatprep.subr.mxu0 0.0
        %2437 = vmatpush1.msra.mxu0 0.0
        %2438 = vmatprep.subr.mxu0 0.0
        %2439 = vmatpush1.msra.mxu0 0.0
        %2440 = vmatprep.subr.mxu0 0.0
        %2441 = vmatpush1.msra.mxu0 0.0
        %2442 = vmatprep.subr.mxu0 0.0
        %2443 = vmatpush1.msra.mxu0 0.0
        %2444 = vmatprep.subr.mxu0 0.0
        %2445 = vmatpush1.msra.mxu0 0.0
        %2446 = vmatprep.subr.mxu0 0.0
        %2447 = vmatpush1.msra.mxu0 0.0
        %2448 = vmatprep.subr.mxu0 0.0
        %2449 = vmatpush1.msra.mxu0 0.0
        %2450 = vmatprep.subr.mxu0 0.0
        %2451 = vmatpush1.msra.mxu0 0.0
        %2452 = vmatprep.subr.mxu0 0.0
        %2453 = vmatpush1.msra.mxu0 0.0
        %2454 = vmatprep.subr.mxu0 0.0
        %2455 = vmatpush1.msra.mxu0 0.0
        %2456 = vmatprep.subr.mxu0 0.0
        %2457 = vmatpush1.msra.mxu0 0.0
        %2458 = vmatprep.subr.mxu0 0.0
        %2459 = vmatpush1.msra.mxu0 0.0
        %2460 = vmatprep.subr.mxu0 0.0
        %2461 = vmatpush1.msra.mxu0 0.0
        %2462 = vmatprep.subr.mxu0 0.0
        %2463 = vmatpush1.msra.mxu0 0.0
        %2464 = vmatprep.subr.mxu0 0.0
        %2465 = vmatpush1.msra.mxu0 0.0
        %2466 = vmatprep.subr.mxu0 0.0
        %2467 = vmatpush1.msra.mxu0 0.0
        %2468 = vmatprep.subr.mxu0 0.0
        %2469 = vmatpush1.msra.mxu0 0.0
        %2470 = vmatprep.subr.mxu0 0.0
        %2471 = vmatpush1.msra.mxu0 0.0
        %2472 = vmatprep.subr.mxu0 0.0
        %2473 = vmatpush1.msra.mxu0 0.0
        %2474 = vmatprep.subr.mxu0 0.0
        %2475 = vmatpush1.msra.mxu0 0.0
        %2476 = vmatprep.subr.mxu0 0.0
        %2477 = vmatpush1.msra.mxu0 0.0
        %2478 = vmatprep.subr.mxu0 0.0
        %2479 = vmatpush1.msra.mxu0 0.0
        %2480 = vmatprep.subr.mxu0 0.0
        %2481 = vmatpush1.msra.mxu0 0.0
        %2482 = vmatprep.subr.mxu0 0.0
        %2483 = vmatpush1.msra.mxu0 0.0
        %2484 = vmatprep.subr.mxu0 0.0
        %2485 = vmatpush1.msra.mxu0 0.0
        %2486 = vmatprep.subr.mxu0 0.0
        %2487 = vmatpush1.msra.mxu0 0.0
        %2488 = vmatprep.subr.mxu0 0.0
        %2489 = vmatpush1.msra.mxu0 0.0
        %2490 = vmatprep.subr.mxu0 0.0
        %2491 = vmatpush1.msra.mxu0 0.0
        %2492 = vmatprep.subr.mxu0 0.0
        %2493 = vmatpush1.msra.mxu0 0.0
        %2494 = vmatprep.subr.mxu0 0.0
        %2495 = vmatpush1.msra.mxu0 0.0
        %2496 = vmatprep.mubr.f32.mxu0 0.0
        %2497 = vmatmul.mubr.f32.gmra.mrb[0].mxu0 %v2430
        %v2498 = vpop.f32.mrb[0].mxu0
        %v2499 = vadd.f32 0.0, %v2498
        %v2500 = vpop.f32.mrb[0].mxu0
        %2501 = vdwg.mxu0
        %v2502 = vadd.f32 %v2176, %v2499
        %s2503 = scalar_lea.vmem %s1, 448
        %v2504 = vld [vmem:[%s2503] sm:$0xff]
        %v2505 = vld [vmem:[%s2503 + $0x8] sm:$0xff]
        %v2506 = vld [vmem:[%s2503 + $0x10] sm:$0xff]
        %v2507 = vld [vmem:[%s2503 + $0x18] sm:$0xff]
        %v2508 = vld [vmem:[%s2503 + $0x20] sm:$0xff]
        %v2509 = vld [vmem:[%s2503 + $0x28] sm:$0xff]
        %v2510 = vld [vmem:[%s2503 + $0x30] sm:$0xff]
        %v2511 = vld [vmem:[%s2503 + $0x38] sm:$0xff]
        %s2512 = scalar_lea.vmem %s2, 7
        %v2513 = vld [vmem:[%s2512] sm:$0x1]
        %v2515 = vlaneseq
        %v2516 = vshrl.u32 %v2515, 7
        %v2517 = vsub.s32 0, %v2516
        %v2518 = vrot.slane %v2513, %v2517
        %2520 = vmatprep.subr.mxu0 0.0
        %2521 = vmatpush1.msra.mxu0 %v2504
        %2522 = vmatprep.subr.mxu0 0.0
        %2523 = vmatpush1.msra.mxu0 %v2505
        %2524 = vmatprep.subr.mxu0 0.0
        %2525 = vmatpush1.msra.mxu0 %v2506
        %2526 = vmatprep.subr.mxu0 0.0
        %2527 = vmatpush1.msra.mxu0 %v2507
        %2528 = vmatprep.subr.mxu0 0.0
        %2529 = vmatpush1.msra.mxu0 %v2508
        %2530 = vmatprep.subr.mxu0 0.0
        %2531 = vmatpush1.msra.mxu0 %v2509
        %2532 = vmatprep.subr.mxu0 0.0
        %2533 = vmatpush1.msra.mxu0 %v2510
        %2534 = vmatprep.subr.mxu0 0.0
        %2535 = vmatpush1.msra.mxu0 %v2511
        %2536 = vmatprep.subr.mxu0 0.0
        %2537 = vmatpush1.msra.mxu0 0.0
        %2538 = vmatprep.subr.mxu0 0.0
        %2539 = vmatpush1.msra.mxu0 0.0
        %2540 = vmatprep.subr.mxu0 0.0
        %2541 = vmatpush1.msra.mxu0 0.0
        %2542 = vmatprep.subr.mxu0 0.0
        %2543 = vmatpush1.msra.mxu0 0.0
        %2544 = vmatprep.subr.mxu0 0.0
        %2545 = vmatpush1.msra.mxu0 0.0
        %2546 = vmatprep.subr.mxu0 0.0
        %2547 = vmatpush1.msra.mxu0 0.0
        %2548 = vmatprep.subr.mxu0 0.0
        %2549 = vmatpush1.msra.mxu0 0.0
        %2550 = vmatprep.subr.mxu0 0.0
        %2551 = vmatpush1.msra.mxu0 0.0
        %2552 = vmatprep.subr.mxu0 0.0
        %2553 = vmatpush1.msra.mxu0 0.0
        %2554 = vmatprep.subr.mxu0 0.0
        %2555 = vmatpush1.msra.mxu0 0.0
        %2556 = vmatprep.subr.mxu0 0.0
        %2557 = vmatpush1.msra.mxu0 0.0
        %2558 = vmatprep.subr.mxu0 0.0
        %2559 = vmatpush1.msra.mxu0 0.0
        %2560 = vmatprep.subr.mxu0 0.0
        %2561 = vmatpush1.msra.mxu0 0.0
        %2562 = vmatprep.subr.mxu0 0.0
        %2563 = vmatpush1.msra.mxu0 0.0
        %2564 = vmatprep.subr.mxu0 0.0
        %2565 = vmatpush1.msra.mxu0 0.0
        %2566 = vmatprep.subr.mxu0 0.0
        %2567 = vmatpush1.msra.mxu0 0.0
        %2568 = vmatprep.subr.mxu0 0.0
        %2569 = vmatpush1.msra.mxu0 0.0
        %2570 = vmatprep.subr.mxu0 0.0
        %2571 = vmatpush1.msra.mxu0 0.0
        %2572 = vmatprep.subr.mxu0 0.0
        %2573 = vmatpush1.msra.mxu0 0.0
        %2574 = vmatprep.subr.mxu0 0.0
        %2575 = vmatpush1.msra.mxu0 0.0
        %2576 = vmatprep.subr.mxu0 0.0
        %2577 = vmatpush1.msra.mxu0 0.0
        %2578 = vmatprep.subr.mxu0 0.0
        %2579 = vmatpush1.msra.mxu0 0.0
        %2580 = vmatprep.subr.mxu0 0.0
        %2581 = vmatpush1.msra.mxu0 0.0
        %2582 = vmatprep.subr.mxu0 0.0
        %2583 = vmatpush1.msra.mxu0 0.0
        %2584 = vmatprep.mubr.f32.mxu0 0.0
        %2585 = vmatmul.mubr.f32.gmra.mrb[0].mxu0 %v238
        %v2586 = vpop.f32.mrb[0].mxu0
        %v2587 = vadd.f32 %v2518, %v2586
        %v2588 = vpop.f32.mrb[0].mxu0
        %2589 = vdwg.mxu0
        %2591 = vrot.lane.b32.xlu0 %v2587, 120
        %v2592 = vpop.permute.xlu0 %2591
        %v2593 = vsel %vm313, %v2587, 0
        %v2595 = vsel %vm313, %v2592, 0
        %2597 = vmatprep.subr.mxu0 0.0
        %2598 = vmatpush1.xpose.msra.mxu0 %v2595
        %2599 = vmatprep.subr.mxu0 0.0
        %2600 = vmatpush1.xpose.msra.mxu0 0.0
        %2601 = vmatprep.subr.mxu0 0.0
        %2602 = vmatpush1.xpose.msra.mxu0 0.0
        %2603 = vmatprep.subr.mxu0 0.0
        %2604 = vmatpush1.xpose.msra.mxu0 0.0
        %2605 = vmatprep.subr.mxu0 0.0
        %2606 = vmatpush1.xpose.msra.mxu0 0.0
        %2607 = vmatprep.subr.mxu0 0.0
        %2608 = vmatpush1.xpose.msra.mxu0 0.0
        %2609 = vmatprep.subr.mxu0 0.0
        %2610 = vmatpush1.xpose.msra.mxu0 0.0
        %2611 = vmatprep.subr.mxu0 0.0
        %2612 = vmatpush1.xpose.msra.mxu0 0.0
        %2613 = vmatprep.subr.mxu0 0.0
        %2614 = vmatpush1.xpose.msra.mxu0 0.0
        %2615 = vmatprep.subr.mxu0 0.0
        %2616 = vmatpush1.xpose.msra.mxu0 0.0
        %2617 = vmatprep.subr.mxu0 0.0
        %2618 = vmatpush1.xpose.msra.mxu0 0.0
        %2619 = vmatprep.subr.mxu0 0.0
        %2620 = vmatpush1.xpose.msra.mxu0 0.0
        %2621 = vmatprep.subr.mxu0 0.0
        %2622 = vmatpush1.xpose.msra.mxu0 0.0
        %2623 = vmatprep.subr.mxu0 0.0
        %2624 = vmatpush1.xpose.msra.mxu0 0.0
        %2625 = vmatprep.subr.mxu0 0.0
        %2626 = vmatpush1.xpose.msra.mxu0 0.0
        %2627 = vmatprep.subr.mxu0 0.0
        %2628 = vmatpush1.xpose.msra.mxu0 0.0
        %2629 = vmatprep.subr.mxu0 0.0
        %2630 = vmatpush1.xpose.msra.mxu0 0.0
        %2631 = vmatprep.subr.mxu0 0.0
        %2632 = vmatpush1.xpose.msra.mxu0 0.0
        %2633 = vmatprep.subr.mxu0 0.0
        %2634 = vmatpush1.xpose.msra.mxu0 0.0
        %2635 = vmatprep.subr.mxu0 0.0
        %2636 = vmatpush1.xpose.msra.mxu0 0.0
        %2637 = vmatprep.subr.mxu0 0.0
        %2638 = vmatpush1.xpose.msra.mxu0 0.0
        %2639 = vmatprep.subr.mxu0 0.0
        %2640 = vmatpush1.xpose.msra.mxu0 0.0
        %2641 = vmatprep.subr.mxu0 0.0
        %2642 = vmatpush1.xpose.msra.mxu0 0.0
        %2643 = vmatprep.subr.mxu0 0.0
        %2644 = vmatpush1.xpose.msra.mxu0 0.0
        %2645 = vmatprep.subr.mxu0 0.0
        %2646 = vmatpush1.xpose.msra.mxu0 0.0
        %2647 = vmatprep.subr.mxu0 0.0
        %2648 = vmatpush1.xpose.msra.mxu0 0.0
        %2649 = vmatprep.subr.mxu0 0.0
        %2650 = vmatpush1.xpose.msra.mxu0 0.0
        %2651 = vmatprep.subr.mxu0 0.0
        %2652 = vmatpush1.xpose.msra.mxu0 0.0
        %2653 = vmatprep.subr.mxu0 0.0
        %2654 = vmatpush1.xpose.msra.mxu0 0.0
        %2655 = vmatprep.subr.mxu0 0.0
        %2656 = vmatpush1.xpose.msra.mxu0 0.0
        %2657 = vmatprep.subr.mxu0 0.0
        %2658 = vmatpush1.xpose.msra.mxu0 0.0
        %2659 = vmatprep.subr.mxu0 0.0
        %2660 = vmatpush1.xpose.msra.mxu0 0.0
        %2661 = vmatprep.mubr.f32.mxu0 0.0
        %2662 = vmatmul.mubr.f32.gmra.mrb[0].mxu0 %v2593
        %v2663 = vpop.f32.mrb[0].mxu0
        %v2664 = vadd.f32 0.0, %v2663
        %v2665 = vpop.f32.mrb[0].mxu0
        %2666 = vdwg.mxu0
        %v2667 = vsel %vm313, %v2664, -inf
        %2668 = vmax.xlane.f32.xlu0 %v2667
        %v2669 = vpop.xlane.xlu0 %2668
        %v2670 = vsub.f32 %v2664, %v2669
        %v2671 = vmul.f32 %v2670, 1.442695
        %v2672 = vpow.pop %v2671
        %v2673 = vsel %vm313, %v2672, 0.0
        %2674 = vadd.xlane.f32.xlu0 %v2673
        %v2675 = vpop.xlane.xlu0 %2674
        %v2678 = vsel %vm313, %v2672, 0
        %2680 = vmatprep.subr.mxu0 0.0
        %2681 = vmatpush1.msra.mxu0 %v2592
        %2682 = vmatprep.subr.mxu0 0.0
        %2683 = vmatpush1.msra.mxu0 0.0
        %2684 = vmatprep.subr.mxu0 0.0
        %2685 = vmatpush1.msra.mxu0 0.0
        %2686 = vmatprep.subr.mxu0 0.0
        %2687 = vmatpush1.msra.mxu0 0.0
        %2688 = vmatprep.subr.mxu0 0.0
        %2689 = vmatpush1.msra.mxu0 0.0
        %2690 = vmatprep.subr.mxu0 0.0
        %2691 = vmatpush1.msra.mxu0 0.0
        %2692 = vmatprep.subr.mxu0 0.0
        %2693 = vmatpush1.msra.mxu0 0.0
        %2694 = vmatprep.subr.mxu0 0.0
        %2695 = vmatpush1.msra.mxu0 0.0
        %2696 = vmatprep.subr.mxu0 0.0
        %2697 = vmatpush1.msra.mxu0 0.0
        %2698 = vmatprep.subr.mxu0 0.0
        %2699 = vmatpush1.msra.mxu0 0.0
        %2700 = vmatprep.subr.mxu0 0.0
        %2701 = vmatpush1.msra.mxu0 0.0
        %2702 = vmatprep.subr.mxu0 0.0
        %2703 = vmatpush1.msra.mxu0 0.0
        %2704 = vmatprep.subr.mxu0 0.0
        %2705 = vmatpush1.msra.mxu0 0.0
        %2706 = vmatprep.subr.mxu0 0.0
        %2707 = vmatpush1.msra.mxu0 0.0
        %2708 = vmatprep.subr.mxu0 0.0
        %2709 = vmatpush1.msra.mxu0 0.0
        %2710 = vmatprep.subr.mxu0 0.0
        %2711 = vmatpush1.msra.mxu0 0.0
        %2712 = vmatprep.subr.mxu0 0.0
        %2713 = vmatpush1.msra.mxu0 0.0
        %2714 = vmatprep.subr.mxu0 0.0
        %2715 = vmatpush1.msra.mxu0 0.0
        %2716 = vmatprep.subr.mxu0 0.0
        %2717 = vmatpush1.msra.mxu0 0.0
        %2718 = vmatprep.subr.mxu0 0.0
        %2719 = vmatpush1.msra.mxu0 0.0
        %2720 = vmatprep.subr.mxu0 0.0
        %2721 = vmatpush1.msra.mxu0 0.0
        %2722 = vmatprep.subr.mxu0 0.0
        %2723 = vmatpush1.msra.mxu0 0.0
        %2724 = vmatprep.subr.mxu0 0.0
        %2725 = vmatpush1.msra.mxu0 0.0
        %2726 = vmatprep.subr.mxu0 0.0
        %2727 = vmatpush1.msra.mxu0 0.0
        %2728 = vmatprep.subr.mxu0 0.0
        %2729 = vmatpush1.msra.mxu0 0.0
        %2730 = vmatprep.subr.mxu0 0.0
        %2731 = vmatpush1.msra.mxu0 0.0
        %2732 = vmatprep.subr.mxu0 0.0
        %2733 = vmatpush1.msra.mxu0 0.0
        %2734 = vmatprep.subr.mxu0 0.0
        %2735 = vmatpush1.msra.mxu0 0.0
        %2736 = vmatprep.subr.mxu0 0.0
        %2737 = vmatpush1.msra.mxu0 0.0
        %2738 = vmatprep.subr.mxu0 0.0
        %2739 = vmatpush1.msra.mxu0 0.0
        %2740 = vmatprep.subr.mxu0 0.0
        %2741 = vmatpush1.msra.mxu0 0.0
        %2742 = vmatprep.subr.mxu0 0.0
        %2743 = vmatpush1.msra.mxu0 0.0
        %2744 = vmatprep.mubr.f32.mxu0 0.0
        %2745 = vmatmul.mubr.f32.gmra.mrb[0].mxu0 %v2678
        %v2746 = vpop.f32.mrb[0].mxu0
        %v2747 = vadd.f32 0.0, %v2746
        %v2748 = vpop.f32.mrb[0].mxu0
        %2749 = vdwg.mxu0
        %v2750 = vrcp.pop %v2675
        %v2751 = vmul.f32 %v2750, 0.35355338
        %v2752 = vmul.f32 %v2747, %v2751
        %s2753 = scalar_lea.vmem %s3, 56
        %v2754 = vld [vmem:[%s2753] sm:$0xff]
        %v2756 = vsel %vm313, %v2752, 0
        %2758 = vmatprep.subr.mxu0 0.0
        %2759 = vmatpush1.msra.mxu0 %v2754
        %2760 = vmatprep.subr.mxu0 0.0
        %2761 = vmatpush1.msra.mxu0 0.0
        %2762 = vmatprep.subr.mxu0 0.0
        %2763 = vmatpush1.msra.mxu0 0.0
        %2764 = vmatprep.subr.mxu0 0.0
        %2765 = vmatpush1.msra.mxu0 0.0
        %2766 = vmatprep.subr.mxu0 0.0
        %2767 = vmatpush1.msra.mxu0 0.0
        %2768 = vmatprep.subr.mxu0 0.0
        %2769 = vmatpush1.msra.mxu0 0.0
        %2770 = vmatprep.subr.mxu0 0.0
        %2771 = vmatpush1.msra.mxu0 0.0
        %2772 = vmatprep.subr.mxu0 0.0
        %2773 = vmatpush1.msra.mxu0 0.0
        %2774 = vmatprep.subr.mxu0 0.0
        %2775 = vmatpush1.msra.mxu0 0.0
        %2776 = vmatprep.subr.mxu0 0.0
        %2777 = vmatpush1.msra.mxu0 0.0
        %2778 = vmatprep.subr.mxu0 0.0
        %2779 = vmatpush1.msra.mxu0 0.0
        %2780 = vmatprep.subr.mxu0 0.0
        %2781 = vmatpush1.msra.mxu0 0.0
        %2782 = vmatprep.subr.mxu0 0.0
        %2783 = vmatpush1.msra.mxu0 0.0
        %2784 = vmatprep.subr.mxu0 0.0
        %2785 = vmatpush1.msra.mxu0 0.0
        %2786 = vmatprep.subr.mxu0 0.0
        %2787 = vmatpush1.msra.mxu0 0.0
        %2788 = vmatprep.subr.mxu0 0.0
        %2789 = vmatpush1.msra.mxu0 0.0
        %2790 = vmatprep.subr.mxu0 0.0
        %2791 = vmatpush1.msra.mxu0 0.0
        %2792 = vmatprep.subr.mxu0 0.0
        %2793 = vmatpush1.msra.mxu0 0.0
        %2794 = vmatprep.subr.mxu0 0.0
        %2795 = vmatpush1.msra.mxu0 0.0
        %2796 = vmatprep.subr.mxu0 0.0
        %2797 = vmatpush1.msra.mxu0 0.0
        %2798 = vmatprep.subr.mxu0 0.0
        %2799 = vmatpush1.msra.mxu0 0.0
        %2800 = vmatprep.subr.mxu0 0.0
        %2801 = vmatpush1.msra.mxu0 0.0
        %2802 = vmatprep.subr.mxu0 0.0
        %2803 = vmatpush1.msra.mxu0 0.0
        %2804 = vmatprep.subr.mxu0 0.0
        %2805 = vmatpush1.msra.mxu0 0.0
        %2806 = vmatprep.subr.mxu0 0.0
        %2807 = vmatpush1.msra.mxu0 0.0
        %2808 = vmatprep.subr.mxu0 0.0
        %2809 = vmatpush1.msra.mxu0 0.0
        %2810 = vmatprep.subr.mxu0 0.0
        %2811 = vmatpush1.msra.mxu0 0.0
        %2812 = vmatprep.subr.mxu0 0.0
        %2813 = vmatpush1.msra.mxu0 0.0
        %2814 = vmatprep.subr.mxu0 0.0
        %2815 = vmatpush1.msra.mxu0 0.0
        %2816 = vmatprep.subr.mxu0 0.0
        %2817 = vmatpush1.msra.mxu0 0.0
        %2818 = vmatprep.subr.mxu0 0.0
        %2819 = vmatpush1.msra.mxu0 0.0
        %2820 = vmatprep.subr.mxu0 0.0
        %2821 = vmatpush1.msra.mxu0 0.0
        %2822 = vmatprep.mubr.f32.mxu0 0.0
        %2823 = vmatmul.mubr.f32.gmra.mrb[0].mxu0 %v2756
        %v2824 = vpop.f32.mrb[0].mxu0
        %v2825 = vadd.f32 0.0, %v2824
        %v2826 = vpop.f32.mrb[0].mxu0
        %2827 = vdwg.mxu0
        %v2828 = vadd.f32 %v2502, %v2825
        %v2829 = vld [vmem:[%s4] sm:$0x1]
        %v2831 = vlaneseq
        %v2832 = vshrl.u32 %v2831, 7
        %v2833 = vsub.s32 0, %v2832
        %v2834 = vrot.slane %v2829, %v2833
        %v2836 = vadd.f32 %v2828, %v2834
        %2837 = vst.msk [vmem:[%s215] sm:$0xff] %vm236, %v2836
        %s2838 = sand.u32 %s137, 1
        %s2839 = scalar_lea.sflag [#allocation3], %s2838
        %s2840 = sand.u32 %s137, 1
        %s2841 = smul.addr %s2840, 8
        %s2842 = scalar_lea.vmem [#allocation2], %s2841
        // Predicated region
        $region41: #{tpu_custom_call.1} parent=39 // pred_check
          %p2843 = pneg %p147
        $region42: #{tpu_custom_call.1} parent=39 // pred_check_branch
          %2845 = sbr.rel (%p2843) target = $region44
        $region43: #{tpu_custom_call.1} parent=39 // pred_region
          %s2847 = ssub.s32 128, 128
          %2848 = vsyncadd %s2839, %s2847
          %s2849 = smul.addr %s19, 128
          %s2850 = scalar_lea.hbm %s5, %s2849
          %s2852 = sshll.u32 %s2842, 4
          %s2853 = int_to_ptr.vmem [resolvable:$true] %s2852
          %2855 = dma.vmem_to_hbm [thread:$0]  %s2853, 128, %s2850, %s2839
        $region44: #{tpu_custom_call.1} parent=39 // pred_fallthru
          _
      $region40: #{tpu_custom_call.1} parent=5 // pred_fallthru
        _
      %p2856 = scmp.le.s32.totalorder 2, %s14
      // Predicated region
      $region45: #{tpu_custom_call.1} parent=5 // pred_check
        %p2857 = pneg %p2856
      $region46: #{tpu_custom_call.1} parent=5 // pred_check_branch
        %2859 = sbr.rel (%p2857) target = $region48
      $region47: #{tpu_custom_call.1} parent=5 // pred_region
        %s2860 = ssub.s32 %s14, 2
        // Predicated region
        $region49: #{tpu_custom_call.1} parent=47 // pred_check
          %p2861 = pneg %p153
        $region50: #{tpu_custom_call.1} parent=47 // pred_check_branch
          %2863 = sbr.rel (%p2861) target = $region52
        $region51: #{tpu_custom_call.1} parent=47 // pred_region
          %s2864 = sand.u32 %s138, 1
          %s2865 = scalar_lea.sflag [#allocation3], %s2864
          %s2866 = sand.u32 %s138, 1
          %s2867 = smul.addr %s2866, 8
          %s2868 = scalar_lea.vmem [#allocation2], %s2867
          %2869 = dma.done %s2865, 128
        $region52: #{tpu_custom_call.1} parent=47 // pred_fallthru
          _
      $region48: #{tpu_custom_call.1} parent=5 // pred_fallthru
        _
    $region6: #{tpu_custom_call.1} parent=1 // loop_footer
      %s18 = sadd.s32 1, %s14
    $region7: #{tpu_custom_call.1} parent=1 // loop_footer_branch
      %13 = sbr.rel target = $region3
    $region8: #{tpu_custom_call.1} parent=1 // loop_exit
      _
    %2870 = vsyncpa [#allocation3], 1
    %s2871 = scalar_lea.sflag [#allocation3], 1
    %2872 = vsyncpa %s2871, 1

</llo_original>
